<compile_context>
chip_gen: v5e
topology: v5e:2x2
jax: 0.10.0
libtpu: 0.0.40
codegen_flags: <defaults>
</compile_context>

<pallas_src>
import functools
import math

import jax
import jax.numpy as jnp
from jax.experimental import pallas as pl
from jax.experimental.pallas import tpu as pltpu


# ----------------------------- tiling helpers -------------------------------

_MAX_ROW_TILE = 256   # rows per block (multiple of 8 sublanes); sweep per chip
_MAX_COL_TILE = 256   # output cols per block (multiple of 128 lanes -> unmasked vst)


def _tile(extent: int, cap: int) -> int:
    # Full extent is always a legal block dim; otherwise use the (8,128)-aligned cap
    # and let the cdiv grid mask the ragged edge block (no padding copies in HBM).
    return extent if extent <= cap else cap


# ------------------------------- kernels -------------------------------------

def _rmsnorm_matmul_kernel(x_ref, g_ref, w_ref, o_ref, xn_ref, *, eps):
    # x_ref: (tm, K) f32 residual stream; g_ref: (1, K) f32; w_ref: (K, tn) bf16.
    # Norm stats in f32, normalized*gamma tile cached in bf16 scratch once per row
    # tile (j is the inner 'arbitrary' axis) and reused for every column tile.
    @pl.when(pl.program_id(1) == 0)
    def _():
        x = x_ref[...].astype(jnp.float32)
        k = x.shape[-1]
        inv = jax.lax.rsqrt(jnp.sum(x * x, axis=-1, keepdims=True) * (1.0 / k) + eps)
        xn_ref[...] = ((x * inv) * g_ref[...]).astype(xn_ref.dtype)
    o_ref[...] = jnp.dot(xn_ref[...], w_ref[...],
                         preferred_element_type=jnp.float32).astype(o_ref.dtype)
    # TODO(synk): wqkv_bias=True configs (Qwen2) would add a (1, tn) bias operand here.


def _rmsnorm_gate_up_kernel(x_ref, g_ref, w1_ref, w3_ref, o_ref, xn_ref, *, eps):
    @pl.when(pl.program_id(1) == 0)
    def _():
        x = x_ref[...].astype(jnp.float32)
        k = x.shape[-1]
        inv = jax.lax.rsqrt(jnp.sum(x * x, axis=-1, keepdims=True) * (1.0 / k) + eps)
        xn_ref[...] = ((x * inv) * g_ref[...]).astype(xn_ref.dtype)
    xn = xn_ref[...]
    h1 = jnp.dot(xn, w1_ref[...], preferred_element_type=jnp.float32)
    h3 = jnp.dot(xn, w3_ref[...], preferred_element_type=jnp.float32)
    # SiLU: sigmoid via EUP exp + approx reciprocal (no divide on the VALU path).
    silu = h1 * pl.reciprocal(1.0 + jnp.exp(-h1), approx=True)
    o_ref[...] = (silu * h3).astype(o_ref.dtype)


def _matmul_residual_kernel(x_ref, w_ref, r_ref, o_ref):
    acc = jnp.dot(x_ref[...], w_ref[...], preferred_element_type=jnp.float32)
    o_ref[...] = (acc + r_ref[...].astype(jnp.float32)).astype(o_ref.dtype)


def _rope_half(x, cos, sin):
    # x: (S, D) f32 in half-split RoPE layout [evens | odds]; cos/sin: (S, D//2) f32.
    d2 = cos.shape[-1]
    x1 = x[:, :d2]
    x2 = x[:, d2:]
    return jnp.concatenate([x1 * cos - x2 * sin, x2 * cos + x1 * sin], axis=-1)


def _attention_kernel(qkv_ref, cos_ref, sin_ref, bias_ref, o_ref, *,
                      n_head, n_kv, head_dim, scale):
    # qkv_ref: (S, (n_head + 2*n_kv)*D) bf16 — one batch row-block of the fused QKV
    # projection output (q/k columns already permuted to half-split RoPE layout).
    # bias_ref: (S, S) f32 additive mask; cos/sin: (S, D//2) f32.
    # o_ref: (S, n_head*D) bf16, written as one lane-dense block (matches the
    # (B, S, dim) layout the wo projection consumes, so no transposes anywhere).
    d = head_dim
    rep = n_head // n_kv
    cos = cos_ref[...]
    sin = sin_ref[...]
    bias = bias_ref[...]
    k_off = n_head * d
    v_off = (n_head + n_kv) * d
    outs = []
    # TODO(synk): full-sequence softmax per head; switch to flash/online-softmax
    # kv tiling (grid over q tiles, kv as an 'arbitrary' axis) for long contexts.
    for j in range(n_kv):
        k = _rope_half(qkv_ref[:, k_off + j * d:k_off + (j + 1) * d].astype(jnp.float32),
                       cos, sin).astype(jnp.bfloat16)
        v = qkv_ref[:, v_off + j * d:v_off + (j + 1) * d]
        for r in range(rep):
            h = j * rep + r
            q = _rope_half(qkv_ref[:, h * d:(h + 1) * d].astype(jnp.float32), cos, sin)
            q = (q * scale).astype(jnp.bfloat16)       # fold 1/sqrt(d) into q (SxD, not SxS)
            s = jax.lax.dot_general(q, k, (((1,), (1,)), ((), ())),
                                    preferred_element_type=jnp.float32)
            s = s + bias
            s = s - jnp.max(s, axis=-1, keepdims=True)
            p = jnp.exp(s)
            p = p * pl.reciprocal(jnp.sum(p, axis=-1, keepdims=True), approx=True)
            outs.append(jnp.dot(p.astype(jnp.bfloat16), v,
                                preferred_element_type=jnp.float32))
    o_ref[...] = jnp.concatenate(outs, axis=-1).astype(o_ref.dtype)


# ------------------------------- wrappers -------------------------------------
# TODO(synk): at production dims (K=4096+) add a K ('arbitrary') grid axis with an
# f32 accumulator scratch and set vmem_limit_bytes explicitly so the double-buffered
# pipeline fits v5e's 16 MiB / v7x's 32 MiB scoped VMEM defaults.

def rmsnorm_matmul(x, gamma, w_t, eps):
    m, k = x.shape
    n = w_t.shape[1]
    tm, tn = _tile(m, _MAX_ROW_TILE), _tile(n, _MAX_COL_TILE)
    return pl.pallas_call(
        functools.partial(_rmsnorm_matmul_kernel, eps=eps),
        out_shape=jax.ShapeDtypeStruct((m, n), w_t.dtype),
        grid_spec=pltpu.PrefetchScalarGridSpec(
            num_scalar_prefetch=0,
            grid=(pl.cdiv(m, tm), pl.cdiv(n, tn)),
            in_specs=[
                pl.BlockSpec((tm, k), lambda i, j: (i, 0)),
                pl.BlockSpec((1, k), lambda i, j: (0, 0)),
                pl.BlockSpec((k, tn), lambda i, j: (0, j)),
            ],
            out_specs=pl.BlockSpec((tm, tn), lambda i, j: (i, j)),
            scratch_shapes=[pltpu.VMEM((tm, k), jnp.bfloat16)],
        ),
        compiler_params=pltpu.CompilerParams(
            dimension_semantics=("parallel", "arbitrary")),
    )(x, gamma.reshape(1, k), w_t)


def rmsnorm_gate_up(x, gamma, w1_t, w3_t, eps):
    m, k = x.shape
    n = w1_t.shape[1]
    tm, tn = _tile(m, _MAX_ROW_TILE), _tile(n, _MAX_COL_TILE)
    return pl.pallas_call(
        functools.partial(_rmsnorm_gate_up_kernel, eps=eps),
        out_shape=jax.ShapeDtypeStruct((m, n), w1_t.dtype),
        grid_spec=pltpu.PrefetchScalarGridSpec(
            num_scalar_prefetch=0,
            grid=(pl.cdiv(m, tm), pl.cdiv(n, tn)),
            in_specs=[
                pl.BlockSpec((tm, k), lambda i, j: (i, 0)),
                pl.BlockSpec((1, k), lambda i, j: (0, 0)),
                pl.BlockSpec((k, tn), lambda i, j: (0, j)),
                pl.BlockSpec((k, tn), lambda i, j: (0, j)),
            ],
            out_specs=pl.BlockSpec((tm, tn), lambda i, j: (i, j)),
            scratch_shapes=[pltpu.VMEM((tm, k), jnp.bfloat16)],
        ),
        compiler_params=pltpu.CompilerParams(
            dimension_semantics=("parallel", "arbitrary")),
    )(x, gamma.reshape(1, k), w1_t, w3_t)


def matmul_residual(x, w_t, resid):
    m, k = x.shape
    n = w_t.shape[1]
    tm, tn = _tile(m, _MAX_ROW_TILE), _tile(n, _MAX_COL_TILE)
    return pl.pallas_call(
        _matmul_residual_kernel,
        out_shape=jax.ShapeDtypeStruct((m, n), resid.dtype),
        grid_spec=pltpu.PrefetchScalarGridSpec(
            num_scalar_prefetch=0,
            grid=(pl.cdiv(m, tm), pl.cdiv(n, tn)),
            in_specs=[
                pl.BlockSpec((tm, k), lambda i, j: (i, 0)),
                pl.BlockSpec((k, tn), lambda i, j: (0, j)),
                pl.BlockSpec((tm, tn), lambda i, j: (i, j)),
            ],
            out_specs=pl.BlockSpec((tm, tn), lambda i, j: (i, j)),
        ),
        input_output_aliases={2: 0},     # accumulate into the residual buffer
        compiler_params=pltpu.CompilerParams(
            dimension_semantics=("parallel", "parallel")),
    )(x, w_t, resid)


def attention_core(qkv, cos, sin, bias, *, n_head, n_kv, head_dim, seqlen):
    m, total = qkv.shape
    b = m // seqlen
    dim = n_head * head_dim
    scale = 1.0 / math.sqrt(head_dim)
    return pl.pallas_call(
        functools.partial(_attention_kernel, n_head=n_head, n_kv=n_kv,
                          head_dim=head_dim, scale=scale),
        out_shape=jax.ShapeDtypeStruct((m, dim), qkv.dtype),
        grid_spec=pltpu.PrefetchScalarGridSpec(
            num_scalar_prefetch=0,
            grid=(b,),
            in_specs=[
                pl.BlockSpec((seqlen, total), lambda i: (i, 0)),          # this batch's q|k|v
                pl.BlockSpec((seqlen, head_dim // 2), lambda i: (0, 0)),  # cos (loaded once)
                pl.BlockSpec((seqlen, head_dim // 2), lambda i: (0, 0)),  # sin (loaded once)
                pl.BlockSpec((seqlen, seqlen), lambda i: (0, 0)),         # additive mask bias
            ],
            out_specs=pl.BlockSpec((seqlen, dim), lambda i: (i, 0)),
        ),
        compiler_params=pltpu.CompilerParams(dimension_semantics=("parallel",)),
    )(qkv, cos, sin, bias)


# ----------------------- one-time parameter preparation -----------------------

def _deinterleave_qk_columns(wqkv_t, n_head, n_kv, head_dim):
    """Permute q/k output columns of Wqkv^T from interleaved-pair RoPE order to
    half-split order.  The same per-head orthogonal permutation is applied to q and
    k, so q.k^T (and hence the attention output) is mathematically unchanged, while
    the in-kernel rotary becomes two static half-slices instead of a lane swizzle."""
    d = head_dim
    perm = jnp.concatenate([jnp.arange(0, d, 2), jnp.arange(1, d, 2)])  # evens | odds
    qk_heads = n_head + n_kv
    head_idx = (jnp.arange(qk_heads)[:, None] * d + perm[None, :]).reshape(-1)
    full_idx = jnp.concatenate([head_idx, jnp.arange(qk_heads * d, wqkv_t.shape[1])])
    return wqkv_t[:, full_idx]


def prepare_params(p, *, n_head, n_local_heads, head_dim):
    """Cast weights to bf16 (MXU-native) and pre-permute the RoPE columns."""
    bf = lambda w: w.astype(jnp.bfloat16)
    return {
        "attn_norm_w": p["attn_norm_w"].astype(jnp.float32),
        "ffn_norm_w": p["ffn_norm_w"].astype(jnp.float32),
        "wqkv_t": _deinterleave_qk_columns(bf(p["wqkv_t"]), n_head, n_local_heads, head_dim),
        "wo_t": bf(p["wo_t"]),
        "w1_t": bf(p["w1_t"]),
        "w3_t": bf(p["w3_t"]),
        "w2_t": bf(p["w2_t"]),
    }


# ------------------------------ forward pass ----------------------------------

def transformer_block(x, p, freqs_cis, mask, *, n_head, n_local_heads, head_dim, eps):
    b, s, dim = x.shape
    m = b * s
    x2d = x.reshape(m, dim)

    cos = freqs_cis[..., 0]                      # (S, D//2)
    sin = freqs_cis[..., 1]
    # TODO(synk): only a single broadcast (S, S) mask is handled (the reference
    # harness passes (1, 1, S, S)); per-batch/per-head masks need a batch index_map.
    bias = jnp.where(mask.reshape(s, s), 0.0, -1e30).astype(jnp.float32)

    # --- attention sub-block (attention_norm fused into the QKV projection) ---
    qkv = rmsnorm_matmul(x2d, p["attn_norm_w"], p["wqkv_t"], eps)          # (m, T) bf16
    y2d = attention_core(qkv, cos, sin, bias, n_head=n_head, n_kv=n_local_heads,
                         head_dim=head_dim, seqlen=s)                      # (m, dim) bf16
    h2d = matmul_residual(y2d, p["wo_t"], x2d)                             # h = x + wo(attn)

    # --- feed-forward sub-block (ffn_norm fused into w1/w3 gate-up) ---
    gate = rmsnorm_gate_up(h2d, p["ffn_norm_w"], p["w1_t"], p["w3_t"], eps)
    out2d = matmul_residual(gate, p["w2_t"], h2d)                          # out = h + w2(...)
    return out2d.reshape(b, s, dim)


# ----------------------------- pure-JAX reference -----------------------------

def apply_rotary_emb_ref(x, freqs_cis):
    # x: (B, S, H, D); freqs_cis: (S, D//2, 2) — mirrors the PyTorch helper.
    b, s, h, d = x.shape
    xs = x.astype(jnp.float32).reshape(b, s, h, d // 2, 2)
    fc = freqs_cis.reshape(1, s, 1, d // 2, 2)
    out = jnp.stack(
        [xs[..., 0] * fc[..., 0] - xs[..., 1] * fc[..., 1],
         xs[..., 1] * fc[..., 0] + xs[..., 0] * fc[..., 1]], axis=-1)
    return out.reshape(b, s, h, d).astype(x.dtype)


def _rmsnorm_ref(x, w, eps):
    xf = x.astype(jnp.float32)
    n = xf * jax.lax.rsqrt(jnp.mean(xf * xf, axis=-1, keepdims=True) + eps)
    return n.astype(x.dtype) * w


def transformer_block_ref(x, p, freqs_cis, mask, *, n_head, n_local_heads, head_dim, eps):
    b, s, dim = x.shape
    kv_size = n_local_heads * head_dim
    xa = _rmsnorm_ref(x, p["attn_norm_w"], eps)
    qkv = xa @ p["wqkv_t"]
    q, k, v = jnp.split(qkv, [dim, dim + kv_size], axis=-1)
    q = q.reshape(b, s, n_head, head_dim)
    k = k.reshape(b, s, n_local_heads, head_dim)
    v = v.reshape(b, s, n_local_heads, head_dim)
    q = apply_rotary_emb_ref(q, freqs_cis)
    k = apply_rotary_emb_ref(k, freqs_cis)
    q, k, v = (t.transpose(0, 2, 1, 3) for t in (q, k, v))
    rep = n_head // n_local_heads
    k = jnp.repeat(k, rep, axis=1)
    v = jnp.repeat(v, rep, axis=1)
    scores = jnp.einsum("bhqd,bhkd->bhqk", q, k) * (1.0 / math.sqrt(head_dim))
    scores = jnp.where(mask, scores, -1e30)
    probs = jax.nn.softmax(scores, axis=-1)
    y = jnp.einsum("bhqk,bhkd->bhqd", probs, v)
    y = y.transpose(0, 2, 1, 3).reshape(b, s, dim)
    h = x + y @ p["wo_t"]
    hn = _rmsnorm_ref(h, p["ffn_norm_w"], eps)
    g1 = hn @ p["w1_t"]
    g3 = hn @ p["w3_t"]
    ff = (g1 * jax.nn.sigmoid(g1) * g3) @ p["w2_t"]
    return h + ff


# ----------------------------------- main -------------------------------------

if __name__ == "__main__":
    # Small Llama-style config: dim=256, n_head=4 (head_dim=64), n_local_heads=2 (GQA), ffn=512.
    dim, n_head, n_local_heads = 256, 4, 2
    head_dim = dim // n_head
    intermediate = 512
    eps = 1e-5
    rope_base = 10000.0
    bsz, seqlen = 2, 16
    total_head_dim = (n_head + 2 * n_local_heads) * head_dim

    key = jax.random.PRNGKey(0)
    ks = jax.random.split(key, 8)
    sw = 0.05
    params = {
        "attn_norm_w": 1.0 + 0.1 * jax.random.normal(ks[0], (dim,), jnp.float32),
        "ffn_norm_w": 1.0 + 0.1 * jax.random.normal(ks[1], (dim,), jnp.float32),
        "wqkv_t": sw * jax.random.normal(ks[2], (dim, total_head_dim), jnp.float32),
        "wo_t": sw * jax.random.normal(ks[3], (dim, dim), jnp.float32),
        "w1_t": sw * jax.random.normal(ks[4], (dim, intermediate), jnp.float32),
        "w3_t": sw * jax.random.normal(ks[5], (dim, intermediate), jnp.float32),
        "w2_t": sw * jax.random.normal(ks[6], (intermediate, dim), jnp.float32),
    }
    x = jax.random.normal(ks[7], (bsz, seqlen, dim), jnp.float32)

    # Rotary table (S, head_dim//2, 2) of (cos, sin), matching the reference model's freqs_cis.
    freqs = 1.0 / (rope_base ** (jnp.arange(0, head_dim, 2, dtype=jnp.float32) / head_dim))
    angles = jnp.outer(jnp.arange(seqlen, dtype=jnp.float32), freqs)
    freqs_cis = jnp.stack([jnp.cos(angles), jnp.sin(angles)], axis=-1)

    # Causal attention mask (True = attend), shape (1, 1, S, S).
    mask = jnp.tril(jnp.ones((seqlen, seqlen), dtype=bool)).reshape(1, 1, seqlen, seqlen)

    prepared = prepare_params(params, n_head=n_head, n_local_heads=n_local_heads,
                              head_dim=head_dim)

    fwd = functools.partial(transformer_block, n_head=n_head,
                            n_local_heads=n_local_heads, head_dim=head_dim, eps=eps)
    out = jax.jit(fwd)(x, prepared, freqs_cis, mask)
    out = jax.block_until_ready(out)

    # Reference uses the same bf16-quantized weights (upcast to f32, original column
    # layout + interleaved rotary) so the check isolates kernel numerics (bf16 MXU
    # operands / approx reciprocal) rather than weight quantization.
    ref_params = {k: (v.astype(jnp.bfloat16).astype(jnp.float32) if k.endswith("_t") else v)
                  for k, v in params.items()}
    ref = transformer_block_ref(x, ref_params, freqs_cis, mask, n_head=n_head,
                                n_local_heads=n_local_heads, head_dim=head_dim, eps=eps)

    assert out.shape == x.shape and out.dtype == x.dtype
    err = float(jnp.max(jnp.abs(out - ref) / (1.0 + jnp.abs(ref))))
    assert err < 3e-2, f"max scaled err {err}"
    print("KERNEL_OK")
</pallas_src>

<mosaic_0001>
module attributes {stable_mosaic.version = 11 : i64} {
  func.func @_rmsnorm_gate_up_kernel(%arg0: i32, %arg1: i32, %arg2: memref<32x256xf32, #tpu.memory_space<vmem>>, %arg3: memref<1x256xf32, #tpu.memory_space<vmem>>, %arg4: memref<256x256xbf16, #tpu.memory_space<vmem>>, %arg5: memref<256x256xbf16, #tpu.memory_space<vmem>>, %arg6: memref<32x256xbf16, #tpu.memory_space<vmem>>, %arg7: memref<32x256xbf16, #tpu.memory_space<vmem>>) attributes {dimension_semantics = [#tpu.dimension_semantics<parallel>, #tpu.dimension_semantics<arbitrary>], iteration_bounds = array<i64: 1, 2>, scalar_prefetch = 0 : i64, scratch_operands = 1 : i64, tpu.core_type = #tpu.core_type<tc>, window_params = [{transform_indices = @transform_0, window_bounds = array<i64: 32, 256>}, {pipeline_mode = #tpu.pipeline_mode<synchronous>, transform_indices = @transform_1, window_bounds = array<i64: 1, 256>}, {transform_indices = @transform_2, window_bounds = array<i64: 256, 256>}, {transform_indices = @transform_3, window_bounds = array<i64: 256, 256>}, {transform_indices = @transform_4, window_bounds = array<i64: 32, 256>}]} {
    %c0_i32 = arith.constant 0 : i32
    %0 = arith.cmpi eq, %arg1, %c0_i32 : i32
    %1 = arith.extui %0 : i1 to i32
    %c0_i32_0 = arith.constant 0 : i32
    %2 = arith.cmpi ne, %1, %c0_i32_0 : i32
    scf.if %2 {
      %c0_11 = arith.constant 0 : index
      %c0_12 = arith.constant 0 : index
      %18 = vector.load %arg2[%c0_11, %c0_12] : memref<32x256xf32, #tpu.memory_space<vmem>>, vector<32x256xf32>
      %19 = arith.mulf %18, %18 : vector<32x256xf32>
      %cst_13 = arith.constant dense<0.000000e+00> : vector<32xf32>
      %20 = vector.multi_reduction <add>, %19, %cst_13 [1] : vector<32x256xf32> to vector<32xf32>
      %21 = vector.shape_cast %20 : vector<32xf32> to vector<32x1xf32>
      %cst_14 = arith.constant 3.906250e-03 : f32
      %22 = vector.broadcast %cst_14 : f32 to vector<32x1xf32>
      %23 = arith.mulf %21, %22 : vector<32x1xf32>
      %cst_15 = arith.constant 9.99999974E-6 : f32
      %24 = vector.broadcast %cst_15 : f32 to vector<32x1xf32>
      %25 = arith.addf %23, %24 : vector<32x1xf32>
      %26 = math.rsqrt %25 : vector<32x1xf32>
      %27 = vector.broadcast %26 : vector<32x1xf32> to vector<32x256xf32>
      %28 = arith.mulf %18, %27 : vector<32x256xf32>
      %c0_16 = arith.constant 0 : index
      %c0_17 = arith.constant 0 : index
      %29 = vector.load %arg3[%c0_16, %c0_17] : memref<1x256xf32, #tpu.memory_space<vmem>>, vector<1x256xf32>
      %30 = vector.broadcast %29 : vector<1x256xf32> to vector<32x256xf32>
      %31 = arith.mulf %28, %30 : vector<32x256xf32>
      %32 = arith.truncf %31 : vector<32x256xf32> to vector<32x256xbf16>
      %c0_18 = arith.constant 0 : index
      %c0_19 = arith.constant 0 : index
      %33 = vector.load %arg7[%c0_18, %c0_19] : memref<32x256xbf16, #tpu.memory_space<vmem>>, vector<32x256xbf16>
      tpu.vector_store %arg7[%c0_18, %c0_19], %32 {strides = array<i32>} : memref<32x256xbf16, #tpu.memory_space<vmem>>, vector<32x256xbf16>,
    } else {
    }
    %c0 = arith.constant 0 : index
    %c0_1 = arith.constant 0 : index
    %3 = vector.load %arg7[%c0, %c0_1] : memref<32x256xbf16, #tpu.memory_space<vmem>>, vector<32x256xbf16>
    %c0_2 = arith.constant 0 : index
    %c0_3 = arith.constant 0 : index
    %4 = vector.load %arg4[%c0_2, %c0_3] : memref<256x256xbf16, #tpu.memory_space<vmem>>, vector<256x256xbf16>
    %cst = arith.constant dense<0.000000e+00> : vector<32x256xf32>
    %5 = tpu.matmul %3, %4, %cst {dimension_numbers = #tpu.dot_dimension_numbers<[1], [0], [0], [1], [0, 0, 1, 1], [], []>} : vector<32x256xbf16>, vector<256x256xbf16>, vector<32x256xf32> -> vector<32x256xf32>
    %c0_4 = arith.constant 0 : index
    %c0_5 = arith.constant 0 : index
    %6 = vector.load %arg5[%c0_4, %c0_5] : memref<256x256xbf16, #tpu.memory_space<vmem>>, vector<256x256xbf16>
    %cst_6 = arith.constant dense<0.000000e+00> : vector<32x256xf32>
    %7 = tpu.matmul %3, %6, %cst_6 {dimension_numbers = #tpu.dot_dimension_numbers<[1], [0], [0], [1], [0, 0, 1, 1], [], []>} : vector<32x256xbf16>, vector<256x256xbf16>, vector<32x256xf32> -> vector<32x256xf32>
    %cst_7 = arith.constant 0.000000e+00 : f32
    %8 = vector.broadcast %cst_7 : f32 to vector<32x256xf32>
    %9 = arith.subf %8, %5 : vector<32x256xf32>
    %10 = math.exp %9 : vector<32x256xf32>
    %cst_8 = arith.constant 1.000000e+00 : f32
    %11 = vector.broadcast %cst_8 : f32 to vector<32x256xf32>
    %12 = arith.addf %11, %10 : vector<32x256xf32>
    %13 = tpu.reciprocal %12 {approx = true} : vector<32x256xf32> -> vector<32x256xf32>
    %14 = arith.mulf %5, %13 : vector<32x256xf32>
    %15 = arith.mulf %14, %7 : vector<32x256xf32>
    %16 = arith.truncf %15 : vector<32x256xf32> to vector<32x256xbf16>
    %c0_9 = arith.constant 0 : index
    %c0_10 = arith.constant 0 : index
    %17 = vector.load %arg6[%c0_9, %c0_10] : memref<32x256xbf16, #tpu.memory_space<vmem>>, vector<32x256xbf16>
    tpu.vector_store %arg6[%c0_9, %c0_10], %16 {strides = array<i32>} : memref<32x256xbf16, #tpu.memory_space<vmem>>, vector<32x256xbf16>,
    return
  }
  func.func @transform_0(%arg0: i32, %arg1: i32) -> (i32, i32) {
    %c0_i32 = arith.constant 0 : i32
    %c0_i32_0 = arith.constant 0 : i32
    return %arg0, %c0_i32 : i32, i32
  }
  func.func @transform_1(%arg0: i32, %arg1: i32) -> (i32, i32) {
    %c0_i32 = arith.constant 0 : i32
    %c0_i32_0 = arith.constant 0 : i32
    %c0_i32_1 = arith.constant 0 : i32
    return %c0_i32, %c0_i32_0 : i32, i32
  }
  func.func @transform_2(%arg0: i32, %arg1: i32) -> (i32, i32) {
    %c0_i32 = arith.constant 0 : i32
    %c0_i32_0 = arith.constant 0 : i32
    return %c0_i32, %arg1 : i32, i32
  }
  func.func @transform_3(%arg0: i32, %arg1: i32) -> (i32, i32) {
    %c0_i32 = arith.constant 0 : i32
    %c0_i32_0 = arith.constant 0 : i32
    return %c0_i32, %arg1 : i32, i32
  }
  func.func @transform_4(%arg0: i32, %arg1: i32) -> (i32, i32) {
    %c0_i32 = arith.constant 0 : i32
    return %arg0, %arg1 : i32, i32
  }
}

module attributes {stable_mosaic.version = 11 : i64} {
  func.func @_matmul_residual_kernel(%arg0: i32, %arg1: i32, %arg2: memref<32x256xbf16, #tpu.memory_space<vmem>>, %arg3: memref<256x256xbf16, #tpu.memory_space<vmem>>, %arg4: memref<32x256xf32, #tpu.memory_space<vmem>>, %arg5: memref<32x256xf32, #tpu.memory_space<vmem>>) attributes {dimension_semantics = [#tpu.dimension_semantics<parallel>, #tpu.dimension_semantics<parallel>], iteration_bounds = array<i64: 1, 1>, scalar_prefetch = 0 : i64, scratch_operands = 0 : i64, tpu.core_type = #tpu.core_type<tc>, window_params = [{transform_indices = @transform_0, window_bounds = array<i64: 32, 256>}, {transform_indices = @transform_1, window_bounds = array<i64: 256, 256>}, {transform_indices = @transform_2, window_bounds = array<i64: 32, 256>}, {transform_indices = @transform_3, window_bounds = array<i64: 32, 256>}]} {
    %c0 = arith.constant 0 : index
    %c0_0 = arith.constant 0 : index
    %0 = vector.load %arg2[%c0, %c0_0] : memref<32x256xbf16, #tpu.memory_space<vmem>>, vector<32x256xbf16>
    %c0_1 = arith.constant 0 : index
    %c0_2 = arith.constant 0 : index
    %1 = vector.load %arg3[%c0_1, %c0_2] : memref<256x256xbf16, #tpu.memory_space<vmem>>, vector<256x256xbf16>
    %cst = arith.constant dense<0.000000e+00> : vector<32x256xf32>
    %2 = tpu.matmul %0, %1, %cst {dimension_numbers = #tpu.dot_dimension_numbers<[1], [0], [0], [1], [0, 0, 1, 1], [], []>} : vector<32x256xbf16>, vector<256x256xbf16>, vector<32x256xf32> -> vector<32x256xf32>
    %c0_3 = arith.constant 0 : index
    %c0_4 = arith.constant 0 : index
    %3 = vector.load %arg4[%c0_3, %c0_4] : memref<32x256xf32, #tpu.memory_space<vmem>>, vector<32x256xf32>
    %4 = arith.addf %2, %3 : vector<32x256xf32>
    %c0_5 = arith.constant 0 : index
    %c0_6 = arith.constant 0 : index
    %5 = vector.load %arg5[%c0_5, %c0_6] : memref<32x256xf32, #tpu.memory_space<vmem>>, vector<32x256xf32>
    tpu.vector_store %arg5[%c0_5, %c0_6], %4 {strides = array<i32>} : memref<32x256xf32, #tpu.memory_space<vmem>>, vector<32x256xf32>,
    return
  }
  func.func @transform_0(%arg0: i32, %arg1: i32) -> (i32, i32) {
    %c0_i32 = arith.constant 0 : i32
    %c0_i32_0 = arith.constant 0 : i32
    return %arg0, %c0_i32 : i32, i32
  }
  func.func @transform_1(%arg0: i32, %arg1: i32) -> (i32, i32) {
    %c0_i32 = arith.constant 0 : i32
    %c0_i32_0 = arith.constant 0 : i32
    return %c0_i32, %arg1 : i32, i32
  }
  func.func @transform_2(%arg0: i32, %arg1: i32) -> (i32, i32) {
    %c0_i32 = arith.constant 0 : i32
    return %arg0, %arg1 : i32, i32
  }
  func.func @transform_3(%arg0: i32, %arg1: i32) -> (i32, i32) {
    %c0_i32 = arith.constant 0 : i32
    return %arg0, %arg1 : i32, i32
  }
}

module attributes {stable_mosaic.version = 11 : i64} {
  func.func @_rmsnorm_matmul_kernel(%arg0: i32, %arg1: i32, %arg2: memref<32x256xf32, #tpu.memory_space<vmem>>, %arg3: memref<1x256xf32, #tpu.memory_space<vmem>>, %arg4: memref<256x256xbf16, #tpu.memory_space<vmem>>, %arg5: memref<32x256xbf16, #tpu.memory_space<vmem>>, %arg6: memref<32x256xbf16, #tpu.memory_space<vmem>>) attributes {dimension_semantics = [#tpu.dimension_semantics<parallel>, #tpu.dimension_semantics<arbitrary>], iteration_bounds = array<i64: 1, 2>, scalar_prefetch = 0 : i64, scratch_operands = 1 : i64, tpu.core_type = #tpu.core_type<tc>, window_params = [{transform_indices = @transform_0, window_bounds = array<i64: 32, 256>}, {pipeline_mode = #tpu.pipeline_mode<synchronous>, transform_indices = @transform_1, window_bounds = array<i64: 1, 256>}, {transform_indices = @transform_2, window_bounds = array<i64: 256, 256>}, {transform_indices = @transform_3, window_bounds = array<i64: 32, 256>}]} {
    %c0_i32 = arith.constant 0 : i32
    %0 = arith.cmpi eq, %arg1, %c0_i32 : i32
    %1 = arith.extui %0 : i1 to i32
    %c0_i32_0 = arith.constant 0 : i32
    %2 = arith.cmpi ne, %1, %c0_i32_0 : i32
    scf.if %2 {
      %c0_6 = arith.constant 0 : index
      %c0_7 = arith.constant 0 : index
      %8 = vector.load %arg2[%c0_6, %c0_7] : memref<32x256xf32, #tpu.memory_space<vmem>>, vector<32x256xf32>
      %9 = arith.mulf %8, %8 : vector<32x256xf32>
      %cst_8 = arith.constant dense<0.000000e+00> : vector<32xf32>
      %10 = vector.multi_reduction <add>, %9, %cst_8 [1] : vector<32x256xf32> to vector<32xf32>
      %11 = vector.shape_cast %10 : vector<32xf32> to vector<32x1xf32>
      %cst_9 = arith.constant 3.906250e-03 : f32
      %12 = vector.broadcast %cst_9 : f32 to vector<32x1xf32>
      %13 = arith.mulf %11, %12 : vector<32x1xf32>
      %cst_10 = arith.constant 9.99999974E-6 : f32
      %14 = vector.broadcast %cst_10 : f32 to vector<32x1xf32>
      %15 = arith.addf %13, %14 : vector<32x1xf32>
      %16 = math.rsqrt %15 : vector<32x1xf32>
      %17 = vector.broadcast %16 : vector<32x1xf32> to vector<32x256xf32>
      %18 = arith.mulf %8, %17 : vector<32x256xf32>
      %c0_11 = arith.constant 0 : index
      %c0_12 = arith.constant 0 : index
      %19 = vector.load %arg3[%c0_11, %c0_12] : memref<1x256xf32, #tpu.memory_space<vmem>>, vector<1x256xf32>
      %20 = vector.broadcast %19 : vector<1x256xf32> to vector<32x256xf32>
      %21 = arith.mulf %18, %20 : vector<32x256xf32>
      %22 = arith.truncf %21 : vector<32x256xf32> to vector<32x256xbf16>
      %c0_13 = arith.constant 0 : index
      %c0_14 = arith.constant 0 : index
      %23 = vector.load %arg6[%c0_13, %c0_14] : memref<32x256xbf16, #tpu.memory_space<vmem>>, vector<32x256xbf16>
      tpu.vector_store %arg6[%c0_13, %c0_14], %22 {strides = array<i32>} : memref<32x256xbf16, #tpu.memory_space<vmem>>, vector<32x256xbf16>,
    } else {
    }
    %c0 = arith.constant 0 : index
    %c0_1 = arith.constant 0 : index
    %3 = vector.load %arg6[%c0, %c0_1] : memref<32x256xbf16, #tpu.memory_space<vmem>>, vector<32x256xbf16>
    %c0_2 = arith.constant 0 : index
    %c0_3 = arith.constant 0 : index
    %4 = vector.load %arg4[%c0_2, %c0_3] : memref<256x256xbf16, #tpu.memory_space<vmem>>, vector<256x256xbf16>
    %cst = arith.constant dense<0.000000e+00> : vector<32x256xf32>
    %5 = tpu.matmul %3, %4, %cst {dimension_numbers = #tpu.dot_dimension_numbers<[1], [0], [0], [1], [0, 0, 1, 1], [], []>} : vector<32x256xbf16>, vector<256x256xbf16>, vector<32x256xf32> -> vector<32x256xf32>
    %6 = arith.truncf %5 : vector<32x256xf32> to vector<32x256xbf16>
    %c0_4 = arith.constant 0 : index
    %c0_5 = arith.constant 0 : index
    %7 = vector.load %arg5[%c0_4, %c0_5] : memref<32x256xbf16, #tpu.memory_space<vmem>>, vector<32x256xbf16>
    tpu.vector_store %arg5[%c0_4, %c0_5], %6 {strides = array<i32>} : memref<32x256xbf16, #tpu.memory_space<vmem>>, vector<32x256xbf16>,
    return
  }
  func.func @transform_0(%arg0: i32, %arg1: i32) -> (i32, i32) {
    %c0_i32 = arith.constant 0 : i32
    %c0_i32_0 = arith.constant 0 : i32
    return %arg0, %c0_i32 : i32, i32
  }
  func.func @transform_1(%arg0: i32, %arg1: i32) -> (i32, i32) {
    %c0_i32 = arith.constant 0 : i32
    %c0_i32_0 = arith.constant 0 : i32
    %c0_i32_1 = arith.constant 0 : i32
    return %c0_i32, %c0_i32_0 : i32, i32
  }
  func.func @transform_2(%arg0: i32, %arg1: i32) -> (i32, i32) {
    %c0_i32 = arith.constant 0 : i32
    %c0_i32_0 = arith.constant 0 : i32
    return %c0_i32, %arg1 : i32, i32
  }
  func.func @transform_3(%arg0: i32, %arg1: i32) -> (i32, i32) {
    %c0_i32 = arith.constant 0 : i32
    return %arg0, %arg1 : i32, i32
  }
}

module attributes {stable_mosaic.version = 11 : i64} {
  func.func @_attention_kernel(%arg0: i32, %arg1: memref<16x512xbf16, #tpu.memory_space<vmem>>, %arg2: memref<16x32xf32, #tpu.memory_space<vmem>>, %arg3: memref<16x32xf32, #tpu.memory_space<vmem>>, %arg4: memref<16x16xf32, #tpu.memory_space<vmem>>, %arg5: memref<16x256xbf16, #tpu.memory_space<vmem>>) attributes {dimension_semantics = [#tpu.dimension_semantics<parallel>], iteration_bounds = array<i64: 2>, scalar_prefetch = 0 : i64, scratch_operands = 0 : i64, tpu.core_type = #tpu.core_type<tc>, window_params = [{transform_indices = @transform_0, window_bounds = array<i64: 16, 512>}, {pipeline_mode = #tpu.pipeline_mode<synchronous>, transform_indices = @transform_1, window_bounds = array<i64: 16, 32>}, {pipeline_mode = #tpu.pipeline_mode<synchronous>, transform_indices = @transform_2, window_bounds = array<i64: 16, 32>}, {pipeline_mode = #tpu.pipeline_mode<synchronous>, transform_indices = @transform_3, window_bounds = array<i64: 16, 16>}, {transform_indices = @transform_4, window_bounds = array<i64: 16, 256>}]} {
    %c0 = arith.constant 0 : index
    %c0_0 = arith.constant 0 : index
    %0 = vector.load %arg2[%c0, %c0_0] : memref<16x32xf32, #tpu.memory_space<vmem>>, vector<16x32xf32>
    %c0_1 = arith.constant 0 : index
    %c0_2 = arith.constant 0 : index
    %1 = vector.load %arg3[%c0_1, %c0_2] : memref<16x32xf32, #tpu.memory_space<vmem>>, vector<16x32xf32>
    %c0_3 = arith.constant 0 : index
    %c0_4 = arith.constant 0 : index
    %2 = vector.load %arg4[%c0_3, %c0_4] : memref<16x16xf32, #tpu.memory_space<vmem>>, vector<16x16xf32>
    %c0_5 = arith.constant 0 : index
    %c256 = arith.constant 256 : index
    %3 = vector.load %arg1[%c0_5, %c256] : memref<16x512xbf16, #tpu.memory_space<vmem>>, vector<16x64xbf16>
    %4 = arith.extf %3 : vector<16x64xbf16> to vector<16x64xf32>
    %5 = vector.extract_strided_slice %4 {offsets = [0, 0], sizes = [16, 32], strides = [1, 1]} : vector<16x64xf32> to vector<16x32xf32>
    %6 = vector.extract_strided_slice %4 {offsets = [0, 32], sizes = [16, 32], strides = [1, 1]} : vector<16x64xf32> to vector<16x32xf32>
    %7 = arith.mulf %5, %0 : vector<16x32xf32>
    %8 = arith.mulf %6, %1 : vector<16x32xf32>
    %9 = arith.subf %7, %8 : vector<16x32xf32>
    %10 = arith.mulf %6, %0 : vector<16x32xf32>
    %11 = arith.mulf %5, %1 : vector<16x32xf32>
    %12 = arith.addf %10, %11 : vector<16x32xf32>
    %13 = tpu.concatenate %9, %12 in 1 : vector<16x32xf32>, vector<16x32xf32> -> vector<16x64xf32>
    %14 = arith.truncf %13 : vector<16x64xf32> to vector<16x64xbf16>
    %c0_6 = arith.constant 0 : index
    %c384 = arith.constant 384 : index
    %15 = vector.load %arg1[%c0_6, %c384] : memref<16x512xbf16, #tpu.memory_space<vmem>>, vector<16x64xbf16>
    %c0_7 = arith.constant 0 : index
    %c0_8 = arith.constant 0 : index
    %16 = vector.load %arg1[%c0_7, %c0_8] : memref<16x512xbf16, #tpu.memory_space<vmem>>, vector<16x64xbf16>
    %17 = arith.extf %16 : vector<16x64xbf16> to vector<16x64xf32>
    %18 = vector.extract_strided_slice %17 {offsets = [0, 0], sizes = [16, 32], strides = [1, 1]} : vector<16x64xf32> to vector<16x32xf32>
    %19 = vector.extract_strided_slice %17 {offsets = [0, 32], sizes = [16, 32], strides = [1, 1]} : vector<16x64xf32> to vector<16x32xf32>
    %20 = arith.mulf %18, %0 : vector<16x32xf32>
    %21 = arith.mulf %19, %1 : vector<16x32xf32>
    %22 = arith.subf %20, %21 : vector<16x32xf32>
    %23 = arith.mulf %19, %0 : vector<16x32xf32>
    %24 = arith.mulf %18, %1 : vector<16x32xf32>
    %25 = arith.addf %23, %24 : vector<16x32xf32>
    %26 = tpu.concatenate %22, %25 in 1 : vector<16x32xf32>, vector<16x32xf32> -> vector<16x64xf32>
    %cst = arith.constant 1.250000e-01 : f32
    %27 = vector.broadcast %cst : f32 to vector<16x64xf32>
    %28 = arith.mulf %26, %27 : vector<16x64xf32>
    %29 = arith.truncf %28 : vector<16x64xf32> to vector<16x64xbf16>
    %cst_9 = arith.constant dense<0.000000e+00> : vector<16x16xf32>
    %30 = tpu.matmul %29, %14, %cst_9 {dimension_numbers = #tpu.dot_dimension_numbers<[1], [1], [0], [0], [0, 0, 1, 0], [], []>} : vector<16x64xbf16>, vector<16x64xbf16>, vector<16x16xf32> -> vector<16x16xf32>
    %31 = arith.addf %30, %2 : vector<16x16xf32>
    %cst_10 = arith.constant dense<0xFF800000> : vector<16xf32>
    %32 = vector.multi_reduction <maximumf>, %31, %cst_10 [1] : vector<16x16xf32> to vector<16xf32>
    %33 = vector.shape_cast %32 : vector<16xf32> to vector<16x1xf32>
    %34 = vector.broadcast %33 : vector<16x1xf32> to vector<16x16xf32>
    %35 = arith.subf %31, %34 : vector<16x16xf32>
    %36 = math.exp %35 : vector<16x16xf32>
    %cst_11 = arith.constant dense<0.000000e+00> : vector<16xf32>
    %37 = vector.multi_reduction <add>, %36, %cst_11 [1] : vector<16x16xf32> to vector<16xf32>
    %38 = vector.shape_cast %37 : vector<16xf32> to vector<16x1xf32>
    %39 = tpu.reciprocal %38 {approx = true} : vector<16x1xf32> -> vector<16x1xf32>
    %40 = vector.broadcast %39 : vector<16x1xf32> to vector<16x16xf32>
    %41 = arith.mulf %36, %40 : vector<16x16xf32>
    %42 = arith.truncf %41 : vector<16x16xf32> to vector<16x16xbf16>
    %cst_12 = arith.constant dense<0.000000e+00> : vector<16x64xf32>
    %43 = tpu.matmul %42, %15, %cst_12 {dimension_numbers = #tpu.dot_dimension_numbers<[1], [0], [0], [1], [0, 0, 1, 1], [], []>} : vector<16x16xbf16>, vector<16x64xbf16>, vector<16x64xf32> -> vector<16x64xf32>
    %c0_13 = arith.constant 0 : index
    %c64 = arith.constant 64 : index
    %44 = vector.load %arg1[%c0_13, %c64] : memref<16x512xbf16, #tpu.memory_space<vmem>>, vector<16x64xbf16>
    %45 = arith.extf %44 : vector<16x64xbf16> to vector<16x64xf32>
    %46 = vector.extract_strided_slice %45 {offsets = [0, 0], sizes = [16, 32], strides = [1, 1]} : vector<16x64xf32> to vector<16x32xf32>
    %47 = vector.extract_strided_slice %45 {offsets = [0, 32], sizes = [16, 32], strides = [1, 1]} : vector<16x64xf32> to vector<16x32xf32>
    %48 = arith.mulf %46, %0 : vector<16x32xf32>
    %49 = arith.mulf %47, %1 : vector<16x32xf32>
    %50 = arith.subf %48, %49 : vector<16x32xf32>
    %51 = arith.mulf %47, %0 : vector<16x32xf32>
    %52 = arith.mulf %46, %1 : vector<16x32xf32>
    %53 = arith.addf %51, %52 : vector<16x32xf32>
    %54 = tpu.concatenate %50, %53 in 1 : vector<16x32xf32>, vector<16x32xf32> -> vector<16x64xf32>
    %cst_14 = arith.constant 1.250000e-01 : f32
    %55 = vector.broadcast %cst_14 : f32 to vector<16x64xf32>
    %56 = arith.mulf %54, %55 : vector<16x64xf32>
    %57 = arith.truncf %56 : vector<16x64xf32> to vector<16x64xbf16>
    %cst_15 = arith.constant dense<0.000000e+00> : vector<16x16xf32>
    %58 = tpu.matmul %57, %14, %cst_15 {dimension_numbers = #tpu.dot_dimension_numbers<[1], [1], [0], [0], [0, 0, 1, 0], [], []>} : vector<16x64xbf16>, vector<16x64xbf16>, vector<16x16xf32> -> vector<16x16xf32>
    %59 = arith.addf %58, %2 : vector<16x16xf32>
    %cst_16 = arith.constant dense<0xFF800000> : vector<16xf32>
    %60 = vector.multi_reduction <maximumf>, %59, %cst_16 [1] : vector<16x16xf32> to vector<16xf32>
    %61 = vector.shape_cast %60 : vector<16xf32> to vector<16x1xf32>
    %62 = vector.broadcast %61 : vector<16x1xf32> to vector<16x16xf32>
    %63 = arith.subf %59, %62 : vector<16x16xf32>
    %64 = math.exp %63 : vector<16x16xf32>
    %cst_17 = arith.constant dense<0.000000e+00> : vector<16xf32>
    %65 = vector.multi_reduction <add>, %64, %cst_17 [1] : vector<16x16xf32> to vector<16xf32>
    %66 = vector.shape_cast %65 : vector<16xf32> to vector<16x1xf32>
    %67 = tpu.reciprocal %66 {approx = true} : vector<16x1xf32> -> vector<16x1xf32>
    %68 = vector.broadcast %67 : vector<16x1xf32> to vector<16x16xf32>
    %69 = arith.mulf %64, %68 : vector<16x16xf32>
    %70 = arith.truncf %69 : vector<16x16xf32> to vector<16x16xbf16>
    %cst_18 = arith.constant dense<0.000000e+00> : vector<16x64xf32>
    %71 = tpu.matmul %70, %15, %cst_18 {dimension_numbers = #tpu.dot_dimension_numbers<[1], [0], [0], [1], [0, 0, 1, 1], [], []>} : vector<16x16xbf16>, vector<16x64xbf16>, vector<16x64xf32> -> vector<16x64xf32>
    %c0_19 = arith.constant 0 : index
    %c320 = arith.constant 320 : index
    %72 = vector.load %arg1[%c0_19, %c320] : memref<16x512xbf16, #tpu.memory_space<vmem>>, vector<16x64xbf16>
    %73 = arith.extf %72 : vector<16x64xbf16> to vector<16x64xf32>
    %74 = vector.extract_strided_slice %73 {offsets = [0, 0], sizes = [16, 32], strides = [1, 1]} : vector<16x64xf32> to vector<16x32xf32>
    %75 = vector.extract_strided_slice %73 {offsets = [0, 32], sizes = [16, 32], strides = [1, 1]} : vector<16x64xf32> to vector<16x32xf32>
    %76 = arith.mulf %74, %0 : vector<16x32xf32>
    %77 = arith.mulf %75, %1 : vector<16x32xf32>
    %78 = arith.subf %76, %77 : vector<16x32xf32>
    %79 = arith.mulf %75, %0 : vector<16x32xf32>
    %80 = arith.mulf %74, %1 : vector<16x32xf32>
    %81 = arith.addf %79, %80 : vector<16x32xf32>
    %82 = tpu.concatenate %78, %81 in 1 : vector<16x32xf32>, vector<16x32xf32> -> vector<16x64xf32>
    %83 = arith.truncf %82 : vector<16x64xf32> to vector<16x64xbf16>
    %c0_20 = arith.constant 0 : index
    %c448 = arith.constant 448 : index
    %84 = vector.load %arg1[%c0_20, %c448] : memref<16x512xbf16, #tpu.memory_space<vmem>>, vector<16x64xbf16>
    %c0_21 = arith.constant 0 : index
    %c128 = arith.constant 128 : index
    %85 = vector.load %arg1[%c0_21, %c128] : memref<16x512xbf16, #tpu.memory_space<vmem>>, vector<16x64xbf16>
    %86 = arith.extf %85 : vector<16x64xbf16> to vector<16x64xf32>
    %87 = vector.extract_strided_slice %86 {offsets = [0, 0], sizes = [16, 32], strides = [1, 1]} : vector<16x64xf32> to vector<16x32xf32>
    %88 = vector.extract_strided_slice %86 {offsets = [0, 32], sizes = [16, 32], strides = [1, 1]} : vector<16x64xf32> to vector<16x32xf32>
    %89 = arith.mulf %87, %0 : vector<16x32xf32>
    %90 = arith.mulf %88, %1 : vector<16x32xf32>
    %91 = arith.subf %89, %90 : vector<16x32xf32>
    %92 = arith.mulf %88, %0 : vector<16x32xf32>
    %93 = arith.mulf %87, %1 : vector<16x32xf32>
    %94 = arith.addf %92, %93 : vector<16x32xf32>
    %95 = tpu.concatenate %91, %94 in 1 : vector<16x32xf32>, vector<16x32xf32> -> vector<16x64xf32>
    %cst_22 = arith.constant 1.250000e-01 : f32
    %96 = vector.broadcast %cst_22 : f32 to vector<16x64xf32>
    %97 = arith.mulf %95, %96 : vector<16x64xf32>
    %98 = arith.truncf %97 : vector<16x64xf32> to vector<16x64xbf16>
    %cst_23 = arith.constant dense<0.000000e+00> : vector<16x16xf32>
    %99 = tpu.matmul %98, %83, %cst_23 {dimension_numbers = #tpu.dot_dimension_numbers<[1], [1], [0], [0], [0, 0, 1, 0], [], []>} : vector<16x64xbf16>, vector<16x64xbf16>, vector<16x16xf32> -> vector<16x16xf32>
    %100 = arith.addf %99, %2 : vector<16x16xf32>
    %cst_24 = arith.constant dense<0xFF800000> : vector<16xf32>
    %101 = vector.multi_reduction <maximumf>, %100, %cst_24 [1] : vector<16x16xf32> to vector<16xf32>
    %102 = vector.shape_cast %101 : vector<16xf32> to vector<16x1xf32>
    %103 = vector.broadcast %102 : vector<16x1xf32> to vector<16x16xf32>
    %104 = arith.subf %100, %103 : vector<16x16xf32>
    %105 = math.exp %104 : vector<16x16xf32>
    %cst_25 = arith.constant dense<0.000000e+00> : vector<16xf32>
    %106 = vector.multi_reduction <add>, %105, %cst_25 [1] : vector<16x16xf32> to vector<16xf32>
    %107 = vector.shape_cast %106 : vector<16xf32> to vector<16x1xf32>
    %108 = tpu.reciprocal %107 {approx = true} : vector<16x1xf32> -> vector<16x1xf32>
    %109 = vector.broadcast %108 : vector<16x1xf32> to vector<16x16xf32>
    %110 = arith.mulf %105, %109 : vector<16x16xf32>
    %111 = arith.truncf %110 : vector<16x16xf32> to vector<16x16xbf16>
    %cst_26 = arith.constant dense<0.000000e+00> : vector<16x64xf32>
    %112 = tpu.matmul %111, %84, %cst_26 {dimension_numbers = #tpu.dot_dimension_numbers<[1], [0], [0], [1], [0, 0, 1, 1], [], []>} : vector<16x16xbf16>, vector<16x64xbf16>, vector<16x64xf32> -> vector<16x64xf32>
    %c0_27 = arith.constant 0 : index
    %c192 = arith.constant 192 : index
    %113 = vector.load %arg1[%c0_27, %c192] : memref<16x512xbf16, #tpu.memory_space<vmem>>, vector<16x64xbf16>
    %114 = arith.extf %113 : vector<16x64xbf16> to vector<16x64xf32>
    %115 = vector.extract_strided_slice %114 {offsets = [0, 0], sizes = [16, 32], strides = [1, 1]} : vector<16x64xf32> to vector<16x32xf32>
    %116 = vector.extract_strided_slice %114 {offsets = [0, 32], sizes = [16, 32], strides = [1, 1]} : vector<16x64xf32> to vector<16x32xf32>
    %117 = arith.mulf %115, %0 : vector<16x32xf32>
    %118 = arith.mulf %116, %1 : vector<16x32xf32>
    %119 = arith.subf %117, %118 : vector<16x32xf32>
    %120 = arith.mulf %116, %0 : vector<16x32xf32>
    %121 = arith.mulf %115, %1 : vector<16x32xf32>
    %122 = arith.addf %120, %121 : vector<16x32xf32>
    %123 = tpu.concatenate %119, %122 in 1 : vector<16x32xf32>, vector<16x32xf32> -> vector<16x64xf32>
    %cst_28 = arith.constant 1.250000e-01 : f32
    %124 = vector.broadcast %cst_28 : f32 to vector<16x64xf32>
    %125 = arith.mulf %123, %124 : vector<16x64xf32>
    %126 = arith.truncf %125 : vector<16x64xf32> to vector<16x64xbf16>
    %cst_29 = arith.constant dense<0.000000e+00> : vector<16x16xf32>
    %127 = tpu.matmul %126, %83, %cst_29 {dimension_numbers = #tpu.dot_dimension_numbers<[1], [1], [0], [0], [0, 0, 1, 0], [], []>} : vector<16x64xbf16>, vector<16x64xbf16>, vector<16x16xf32> -> vector<16x16xf32>
    %128 = arith.addf %127, %2 : vector<16x16xf32>
    %cst_30 = arith.constant dense<0xFF800000> : vector<16xf32>
    %129 = vector.multi_reduction <maximumf>, %128, %cst_30 [1] : vector<16x16xf32> to vector<16xf32>
    %130 = vector.shape_cast %129 : vector<16xf32> to vector<16x1xf32>
    %131 = vector.broadcast %130 : vector<16x1xf32> to vector<16x16xf32>
    %132 = arith.subf %128, %131 : vector<16x16xf32>
    %133 = math.exp %132 : vector<16x16xf32>
    %cst_31 = arith.constant dense<0.000000e+00> : vector<16xf32>
    %134 = vector.multi_reduction <add>, %133, %cst_31 [1] : vector<16x16xf32> to vector<16xf32>
    %135 = vector.shape_cast %134 : vector<16xf32> to vector<16x1xf32>
    %136 = tpu.reciprocal %135 {approx = true} : vector<16x1xf32> -> vector<16x1xf32>
    %137 = vector.broadcast %136 : vector<16x1xf32> to vector<16x16xf32>
    %138 = arith.mulf %133, %137 : vector<16x16xf32>
    %139 = arith.truncf %138 : vector<16x16xf32> to vector<16x16xbf16>
    %cst_32 = arith.constant dense<0.000000e+00> : vector<16x64xf32>
    %140 = tpu.matmul %139, %84, %cst_32 {dimension_numbers = #tpu.dot_dimension_numbers<[1], [0], [0], [1], [0, 0, 1, 1], [], []>} : vector<16x16xbf16>, vector<16x64xbf16>, vector<16x64xf32> -> vector<16x64xf32>
    %141 = tpu.concatenate %43, %71, %112, %140 in 1 : vector<16x64xf32>, vector<16x64xf32>, vector<16x64xf32>, vector<16x64xf32> -> vector<16x256xf32>
    %142 = arith.truncf %141 : vector<16x256xf32> to vector<16x256xbf16>
    %c0_33 = arith.constant 0 : index
    %c0_34 = arith.constant 0 : index
    %143 = vector.load %arg5[%c0_33, %c0_34] : memref<16x256xbf16, #tpu.memory_space<vmem>>, vector<16x256xbf16>
    tpu.vector_store %arg5[%c0_33, %c0_34], %142 {strides = array<i32>} : memref<16x256xbf16, #tpu.memory_space<vmem>>, vector<16x256xbf16>,
    return
  }
  func.func @transform_0(%arg0: i32) -> (i32, i32) {
    %c0_i32 = arith.constant 0 : i32
    %c0_i32_0 = arith.constant 0 : i32
    return %arg0, %c0_i32 : i32, i32
  }
  func.func @transform_1(%arg0: i32) -> (i32, i32) {
    %c0_i32 = arith.constant 0 : i32
    %c0_i32_0 = arith.constant 0 : i32
    %c0_i32_1 = arith.constant 0 : i32
    return %c0_i32, %c0_i32_0 : i32, i32
  }
  func.func @transform_2(%arg0: i32) -> (i32, i32) {
    %c0_i32 = arith.constant 0 : i32
    %c0_i32_0 = arith.constant 0 : i32
    %c0_i32_1 = arith.constant 0 : i32
    return %c0_i32, %c0_i32_0 : i32, i32
  }
  func.func @transform_3(%arg0: i32) -> (i32, i32) {
    %c0_i32 = arith.constant 0 : i32
    %c0_i32_0 = arith.constant 0 : i32
    %c0_i32_1 = arith.constant 0 : i32
    return %c0_i32, %c0_i32_0 : i32, i32
  }
  func.func @transform_4(%arg0: i32) -> (i32, i32) {
    %c0_i32 = arith.constant 0 : i32
    %c0_i32_0 = arith.constant 0 : i32
    return %arg0, %c0_i32 : i32, i32
  }
}

module attributes {stable_mosaic.version = 11 : i64} {
  func.func @_matmul_residual_kernel(%arg0: i32, %arg1: i32, %arg2: memref<32x512xbf16, #tpu.memory_space<vmem>>, %arg3: memref<512x256xbf16, #tpu.memory_space<vmem>>, %arg4: memref<32x256xf32, #tpu.memory_space<vmem>>, %arg5: memref<32x256xf32, #tpu.memory_space<vmem>>) attributes {dimension_semantics = [#tpu.dimension_semantics<parallel>, #tpu.dimension_semantics<parallel>], iteration_bounds = array<i64: 1, 1>, scalar_prefetch = 0 : i64, scratch_operands = 0 : i64, tpu.core_type = #tpu.core_type<tc>, window_params = [{transform_indices = @transform_0, window_bounds = array<i64: 32, 512>}, {transform_indices = @transform_1, window_bounds = array<i64: 512, 256>}, {transform_indices = @transform_2, window_bounds = array<i64: 32, 256>}, {transform_indices = @transform_3, window_bounds = array<i64: 32, 256>}]} {
    %c0 = arith.constant 0 : index
    %c0_0 = arith.constant 0 : index
    %0 = vector.load %arg2[%c0, %c0_0] : memref<32x512xbf16, #tpu.memory_space<vmem>>, vector<32x512xbf16>
    %c0_1 = arith.constant 0 : index
    %c0_2 = arith.constant 0 : index
    %1 = vector.load %arg3[%c0_1, %c0_2] : memref<512x256xbf16, #tpu.memory_space<vmem>>, vector<512x256xbf16>
    %cst = arith.constant dense<0.000000e+00> : vector<32x256xf32>
    %2 = tpu.matmul %0, %1, %cst {dimension_numbers = #tpu.dot_dimension_numbers<[1], [0], [0], [1], [0, 0, 1, 1], [], []>} : vector<32x512xbf16>, vector<512x256xbf16>, vector<32x256xf32> -> vector<32x256xf32>
    %c0_3 = arith.constant 0 : index
    %c0_4 = arith.constant 0 : index
    %3 = vector.load %arg4[%c0_3, %c0_4] : memref<32x256xf32, #tpu.memory_space<vmem>>, vector<32x256xf32>
    %4 = arith.addf %2, %3 : vector<32x256xf32>
    %c0_5 = arith.constant 0 : index
    %c0_6 = arith.constant 0 : index
    %5 = vector.load %arg5[%c0_5, %c0_6] : memref<32x256xf32, #tpu.memory_space<vmem>>, vector<32x256xf32>
    tpu.vector_store %arg5[%c0_5, %c0_6], %4 {strides = array<i32>} : memref<32x256xf32, #tpu.memory_space<vmem>>, vector<32x256xf32>,
    return
  }
  func.func @transform_0(%arg0: i32, %arg1: i32) -> (i32, i32) {
    %c0_i32 = arith.constant 0 : i32
    %c0_i32_0 = arith.constant 0 : i32
    return %arg0, %c0_i32 : i32, i32
  }
  func.func @transform_1(%arg0: i32, %arg1: i32) -> (i32, i32) {
    %c0_i32 = arith.constant 0 : i32
    %c0_i32_0 = arith.constant 0 : i32
    return %c0_i32, %arg1 : i32, i32
  }
  func.func @transform_2(%arg0: i32, %arg1: i32) -> (i32, i32) {
    %c0_i32 = arith.constant 0 : i32
    return %arg0, %arg1 : i32, i32
  }
  func.func @transform_3(%arg0: i32, %arg1: i32) -> (i32, i32) {
    %c0_i32 = arith.constant 0 : i32
    return %arg0, %arg1 : i32, i32
  }
}

</mosaic_0001>

<llo_original>
// kernel: transformer_block.5
$region0: #{transformer_block.5}
  #allocation0 [shape = 'u32[]', space=smem, size = 0x4, offset = 0x4, fixed_abs, tag = 'smem constant byte address 0x4 - core index']
  #allocation1 [shape = 'u32[72,128]{1,0:T(1,128)}', space=vmem, size = 0x9000, scoped, tag = 'internal scratch']
  #allocation2 [shape = 'bf16[32,256]{1,0:T(8,128)(2,1)}', space=vmem, size = 0x4000, scoped, tag = 'scratch operand']
  %s0 = inlined_call_operand.vmem [shape: f32[32,256], index: 0, kind: input, shape index: {}]
  %s1 = inlined_call_operand.vmem [shape: f32[1,256], index: 1, kind: input, shape index: {}]
  %s2 = inlined_call_operand.hbm [shape: bf16[256,512], index: 2, kind: input, shape index: {}]
  %s3 = inlined_call_operand.vmem [shape: bf16[32,512], index: 3, kind: output, shape index: {}]
  %s4 = sld [smem:[#allocation0]]
  $region87: #{transformer_block.5} parent=0
    _
  %s6 = ssub.s32 1, %s4
  %s7 = scalar_select 0, %s6, %s4
  $region1: #{transformer_block.5} parent=0
    #allocation3 [shape = 'u8[262144]{0}', space=vmem, size = 0x40000, scoped, tag = 'input window, operand 2']
    #allocation4 [shape = 's32[2]{0}', space=sflag, size = 0x8, scoped, tag = 'scoped memory for transformer_block.5']
    #allocation5 [shape = 'u8[32768]{0}', space=vmem, size = 0x8000, scoped, tag = 'output window, operand 0']
    %8 = vsyncpa [#allocation4], 0
    %s9 = scalar_lea.sflag [#allocation4], 1
    %10 = vsyncpa %s9, 0
    loop: start=0, step=1, limit=4
    $region2: #{transformer_block.5} parent=1 // loop_pre_header
      _
    $region3: #{transformer_block.5} parent=1 // loop_header
      %s12 = sphi 0, %s16
      %p13 = scmp.ge.s32.totalorder %s12, 4
      %s19 = sphi 0, %s31
      %s20 = sphi 0, %s27
      %s21 = sphi 0, %s19
      %s22 = sphi 0, %s20
      %s23 = sphi 0, %s21
      %s24 = sphi 0, %s22
      %s34 = sphi 0, %s36
      %s37 = sphi 0, %s34
      %s38 = sphi 0, %s37
      %s54 = sphi 0, %s38
      %s58 = sphi 0, %s58
      %s60 = sphi 0, %s58
      %s61 = sphi 0, %s60
      %s75 = sphi 0, %s61
      %s81 = sphi 0, %s83
      %s84 = sphi 0, %s81
      %s85 = sphi 0, %s84
      %s101 = sphi 0, %s85
      %s109 = sphi 0, %s111
      %s112 = sphi 0, %s109
      %s113 = sphi 0, %s112
      %s129 = sphi 0, %s113
    $region4: #{transformer_block.5} parent=1 // loop_header_branch
      %15 = sbr.rel (%p13) target = $region8
    $region5: #{transformer_block.5} parent=1 // loop_body
      %s17 = ssub.s32 %s12, 1
      %s18 = ssub.s32 %s12, 2
      %s25 = sadd.s32 1, %s20
      %p26 = scmp.ge.s32.totalorder %s25, 2
      %s27 = scalar_select %p26, 0, %s25
      %s28 = sadd.s32 1, %s19
      %s29 = scalar_select %p26, %s28, %s19
      %p30 = scmp.ge.s32.totalorder %s29, 1
      %s31 = scalar_select %p30, 0, %s29
      %s32 = ssub.s32 %s19, %s31
      %p33 = scmp.eq.s32.totalorder %s32, 0
      %s35 = sadd.s32 %s34, 1
      %s36 = scalar_select %p33, %s34, %s35
      %p39 = pneg %p33
      %p40 = scmp.eq.s32.totalorder %s12, 1
      %p41 = por %p39, %p40
      %p42 = scmp.ne.s32.totalorder %s34, %s37
      %p43 = scmp.eq.s32.totalorder %s12, 0
      %p44 = por %p42, %p43
      %p45 = scmp.ne.s32.totalorder %s34, %s37
      %p46 = scmp.eq.s32.totalorder %s17, 1
      %p47 = por %p45, %p46
      %p48 = scmp.ne.s32.totalorder %s37, %s38
      %p49 = scmp.eq.s32.totalorder %s17, 0
      %p50 = por %p48, %p49
      %p51 = scmp.ne.s32.totalorder %s37, %s38
      %p52 = scmp.eq.s32.totalorder %s18, 1
      %p53 = por %p51, %p52
      %p55 = scmp.ne.s32.totalorder %s38, %s54
      %p56 = scmp.eq.s32.totalorder %s18, 0
      %p57 = por %p55, %p56
      %s59 = sadd.s32 %s58, 1
      %p62 = scmp.eq.s32.totalorder %s12, 1
      %p63 = scmp.ne.s32.totalorder %s58, %s60
      %p64 = scmp.eq.s32.totalorder %s12, 0
      %p65 = por %p63, %p64
      %p66 = scmp.ne.s32.totalorder %s58, %s60
      %p67 = scmp.eq.s32.totalorder %s17, 1
      %p68 = por %p66, %p67
      %p69 = scmp.ne.s32.totalorder %s60, %s61
      %p70 = scmp.eq.s32.totalorder %s17, 0
      %p71 = por %p69, %p70
      %p72 = scmp.ne.s32.totalorder %s60, %s61
      %p73 = scmp.eq.s32.totalorder %s18, 1
      %p74 = por %p72, %p73
      %p76 = scmp.ne.s32.totalorder %s61, %s75
      %p77 = scmp.eq.s32.totalorder %s18, 0
      %p78 = por %p76, %p77
      %s79 = ssub.s32 %s20, %s27
      %p80 = scmp.eq.s32.totalorder %s79, 0
      %s82 = sadd.s32 %s81, 1
      %s83 = scalar_select %p80, %s81, %s82
      %p86 = pneg %p80
      %p87 = scmp.eq.s32.totalorder %s12, 1
      %p88 = por %p86, %p87
      %p89 = scmp.ne.s32.totalorder %s81, %s84
      %p90 = scmp.eq.s32.totalorder %s12, 0
      %p91 = por %p89, %p90
      %p92 = scmp.ne.s32.totalorder %s81, %s84
      %p93 = scmp.eq.s32.totalorder %s17, 1
      %p94 = por %p92, %p93
      %p95 = scmp.ne.s32.totalorder %s84, %s85
      %p96 = scmp.eq.s32.totalorder %s17, 0
      %p97 = por %p95, %p96
      %p98 = scmp.ne.s32.totalorder %s84, %s85
      %p99 = scmp.eq.s32.totalorder %s18, 1
      %p100 = por %p98, %p99
      %p102 = scmp.ne.s32.totalorder %s85, %s101
      %p103 = scmp.eq.s32.totalorder %s18, 0
      %p104 = por %p102, %p103
      %s105 = ssub.s32 %s19, %s31
      %s106 = ssub.s32 %s20, %s27
      %s107 = sor.u32 %s105, %s106
      %p108 = scmp.eq.s32.totalorder %s107, 0
      %s110 = sadd.s32 %s109, 1
      %s111 = scalar_select %p108, %s109, %s110
      %p114 = pneg %p108
      %p115 = scmp.eq.s32.totalorder %s12, 1
      %p116 = por %p114, %p115
      %p117 = scmp.ne.s32.totalorder %s109, %s112
      %p118 = scmp.eq.s32.totalorder %s12, 0
      %p119 = por %p117, %p118
      %p120 = scmp.ne.s32.totalorder %s109, %s112
      %p121 = scmp.eq.s32.totalorder %s17, 1
      %p122 = por %p120, %p121
      %p123 = scmp.ne.s32.totalorder %s112, %s113
      %p124 = scmp.eq.s32.totalorder %s17, 0
      %p125 = por %p123, %p124
      %p126 = scmp.ne.s32.totalorder %s112, %s113
      %p127 = scmp.eq.s32.totalorder %s18, 1
      %p128 = por %p126, %p127
      %p130 = scmp.ne.s32.totalorder %s113, %s129
      %p131 = scmp.eq.s32.totalorder %s18, 0
      %p132 = por %p130, %p131
      %p133 = scmp.le.s32.totalorder 1, %s12
      %p134 = scmp.lt.s32.totalorder %s12, 3
      %p135 = pnand %p133, %p134
      %p136 = pneg %p135
      // Predicated region
      $region9: #{transformer_block.5} parent=5 // pred_check
        _
      $region10: #{transformer_block.5} parent=5 // pred_check_branch
        %138 = sbr.rel (%p135) target = $region12
      $region11: #{transformer_block.5} parent=5 // pred_region
        %s139 = ssub.s32 %s12, 1
        // Predicated region
        $region13: #{transformer_block.5} parent=11 // pred_check
          %p140 = pneg %p50
        $region14: #{transformer_block.5} parent=11 // pred_check_branch
          %142 = sbr.rel (%p140) target = $region16
        $region15: #{transformer_block.5} parent=11 // pred_region
          %s143 = smul.u32 4, %s21
          %p144 = scmp.lt.s32.totalorder %s143, 3
          %s145 = scalar_select %p144, %s143, 3
          %s146 = smul.addr %s145, 2
          %s147 = smul.addr %s146, 8
          %s148 = scalar_lea.vmem %s0, %s147
          %s149 = smul.u32 4, %s21
        $region16: #{transformer_block.5} parent=11 // pred_fallthru
          _
        // Predicated region
        $region17: #{transformer_block.5} parent=11 // pred_check
          %p150 = pneg %p71
        $region18: #{transformer_block.5} parent=11 // pred_check_branch
          %152 = sbr.rel (%p150) target = $region20
        $region19: #{transformer_block.5} parent=11 // pred_region
          _
        $region20: #{transformer_block.5} parent=11 // pred_fallthru
          _
      $region12: #{transformer_block.5} parent=5 // pred_fallthru
        _
      %p153 = scmp.lt.s32.totalorder %s12, 2
      // Predicated region
      $region21: #{transformer_block.5} parent=5 // pred_check
        %p154 = pneg %p153
      $region22: #{transformer_block.5} parent=5 // pred_check_branch
        %156 = sbr.rel (%p154) target = $region24
      $region23: #{transformer_block.5} parent=5 // pred_region
        // Predicated region
        $region25: #{transformer_block.5} parent=23 // pred_check
          %p157 = pneg %p91
        $region26: #{transformer_block.5} parent=23 // pred_check_branch
          %159 = sbr.rel (%p157) target = $region28
        $region27: #{transformer_block.5} parent=23 // pred_region
          %s160 = sand.u32 %s81, 1
          %s161 = scalar_lea.sflag [#allocation4], %s160
          %s162 = sand.u32 %s81, 1
          %s163 = smul.addr %s162, 256
          %s164 = scalar_lea.vmem [#allocation3], %s163
          %s165 = smul.u32 2, %s20
          %167 = vsyncadd %s161, 0
          %s168 = smul.addr %s165, 4
          %s169 = scalar_lea.hbm %s2, %s168
          %s170 = sshll.u32 %s169, 4
          %s171 = int_to_ptr.hbm [resolvable:$true] %s170
          %s172 = sshll.u32 %s164, 4
          %s173 = int_to_ptr.vmem [resolvable:$true] %s172
          %178 = dma.hbm_to_vmem [thread:$0]  %s171, 4096, %s173, %s161, 256, 128, 8
        $region28: #{transformer_block.5} parent=23 // pred_fallthru
          _
      $region24: #{transformer_block.5} parent=5 // pred_fallthru
        _
      %p179 = scmp.le.s32.totalorder 1, %s12
      %p180 = scmp.lt.s32.totalorder %s12, 3
      %p181 = pnand %p179, %p180
      %p182 = pneg %p181
      // Predicated region
      $region29: #{transformer_block.5} parent=5 // pred_check
        _
      $region30: #{transformer_block.5} parent=5 // pred_check_branch
        %184 = sbr.rel (%p181) target = $region32
      $region31: #{transformer_block.5} parent=5 // pred_region
        %s185 = ssub.s32 %s12, 1
        %s186 = sand.u32 %s84, 1
        %s187 = scalar_lea.sflag [#allocation4], %s186
        %s188 = sand.u32 %s84, 1
        %s189 = smul.addr %s188, 256
        %s190 = scalar_lea.vmem [#allocation3], %s189
        // Predicated region
        $region33: #{transformer_block.5} parent=31 // pred_check
          %p191 = pneg %p97
        $region34: #{transformer_block.5} parent=31 // pred_check_branch
          %193 = sbr.rel (%p191) target = $region36
        $region35: #{transformer_block.5} parent=31 // pred_region
          %195 = dma.done %s187, 4096
        $region36: #{transformer_block.5} parent=31 // pred_fallthru
          _
        %s196 = smul.u32 4, %s21
        %p197 = scmp.lt.s32.totalorder %s196, 3
        %s198 = scalar_select %p197, %s196, 3
        %s199 = smul.addr %s198, 2
        %s200 = smul.addr %s199, 8
        %s201 = scalar_lea.vmem %s0, %s200
        %p202 = pneg %p50
        %p203 = pneg %p47
        %p204 = pneg %p71
        %p205 = pneg %p68
        %s206 = sand.u32 %s84, 1
        %s207 = scalar_lea.sflag [#allocation4], %s206
        %s208 = sand.u32 %s84, 1
        %s209 = smul.addr %s208, 256
        %s210 = scalar_lea.vmem [#allocation3], %s209
        %p211 = pneg %p97
        %p212 = pneg %p94
        %p213 = pneg %p125
        %p214 = pneg %p122
        %s215 = sand.u32 %s112, 1
        %s216 = sand.u32 %s112, 1
        %s217 = smul.addr %s216, 32
        %s218 = scalar_lea.vmem [#allocation5], %s217
        %s219 = smul.u32 4, %s21
        %p220 = scmp.lt.s32.totalorder %s219, 3
        %s221 = scalar_select %p220, %s219, 3
        %s222 = smul.addr %s221, 2
        %s223 = smul.addr %s222, 8
        %s224 = scalar_lea.vmem %s0, %s223
        %s225 = smul.u32 4, %s21
        %s226 = smul.u32 2, %s22
        %s227 = smul.u32 4, %s21
        %s228 = smul.u32 2, %s22
        %p229 = scmp.eq.s32.totalorder %s22, 0
        // Predicated region
        $region37: #{transformer_block.5} parent=31 // pred_check
          %p230 = pneg %p229
        $region38: #{transformer_block.5} parent=31 // pred_check_branch
          %232 = sbr.rel (%p230) target = $region40
        $region39: #{transformer_block.5} parent=31 // pred_region
          %v233 = vld [vmem:[%s224] sm:$0xff]
          %v234 = vld [vmem:[%s224 + $0x8] sm:$0xff]
          %v235 = vld [vmem:[%s224 + $0x10] sm:$0xff]
          %v236 = vld [vmem:[%s224 + $0x18] sm:$0xff]
          %v237 = vld [vmem:[%s224 + $0x20] sm:$0xff]
          %v238 = vld [vmem:[%s224 + $0x28] sm:$0xff]
          %v239 = vld [vmem:[%s224 + $0x30] sm:$0xff]
          %v240 = vld [vmem:[%s224 + $0x38] sm:$0xff]
          %v241 = vmul.f32 %v233, %v233
          %v242 = vmul.f32 %v234, %v234
          %v243 = vmul.f32 %v235, %v235
          %v244 = vmul.f32 %v236, %v236
          %v245 = vmul.f32 %v237, %v237
          %v246 = vmul.f32 %v238, %v238
          %v247 = vmul.f32 %v239, %v239
          %v248 = vmul.f32 %v240, %v240
          %v249 = vadd.f32 %v241, %v242
          %250 = vadd.xlane.f32.xlu0 %v249
          %v251 = vpop.xlane.xlu0 %250
          %v252 = vadd.f32 %v243, %v244
          %253 = vadd.xlane.f32.xlu0 %v252
          %v254 = vpop.xlane.xlu0 %253
          %v255 = vadd.f32 %v245, %v246
          %256 = vadd.xlane.f32.xlu0 %v255
          %v257 = vpop.xlane.xlu0 %256
          %v258 = vadd.f32 %v247, %v248
          %259 = vadd.xlane.f32.xlu0 %v258
          %v260 = vpop.xlane.xlu0 %259
          %v261 = vmul.f32 %v251, 0.00390625
          %v262 = vmul.f32 %v254, 0.00390625
          %v263 = vmul.f32 %v257, 0.00390625
          %v264 = vmul.f32 %v260, 0.00390625
          %v265 = vadd.f32 %v261, 1e-05
          %v266 = vadd.f32 %v262, 1e-05
          %v267 = vadd.f32 %v263, 1e-05
          %v268 = vadd.f32 %v264, 1e-05
          %v269 = vrsqrt.pop %v265
          %v270 = vmul.f32 %v269, %v265
          %v271 = vmul.f32 %v270, %v269
          %v272 = vmul.f32 0.5, %v271
          %v273 = vsub.f32 1.5, %v272
          %v274 = vmul.f32 %v269, %v273
          %vm275 = vweird.f32 %v265
          %vm276 = vweird.f32 %v269
          %vm277 = vmor %vm275, %vm276
          %v278 = vsel %vm277, %v269, %v274
          %v279 = vrsqrt.pop %v266
          %v280 = vmul.f32 %v279, %v266
          %v281 = vmul.f32 %v280, %v279
          %v282 = vmul.f32 0.5, %v281
          %v283 = vsub.f32 1.5, %v282
          %v284 = vmul.f32 %v279, %v283
          %vm285 = vweird.f32 %v266
          %vm286 = vweird.f32 %v279
          %vm287 = vmor %vm285, %vm286
          %v288 = vsel %vm287, %v279, %v284
          %v289 = vrsqrt.pop %v267
          %v290 = vmul.f32 %v289, %v267
          %v291 = vmul.f32 %v290, %v289
          %v292 = vmul.f32 0.5, %v291
          %v293 = vsub.f32 1.5, %v292
          %v294 = vmul.f32 %v289, %v293
          %vm295 = vweird.f32 %v267
          %vm296 = vweird.f32 %v289
          %vm297 = vmor %vm295, %vm296
          %v298 = vsel %vm297, %v289, %v294
          %v299 = vrsqrt.pop %v268
          %v300 = vmul.f32 %v299, %v268
          %v301 = vmul.f32 %v300, %v299
          %v302 = vmul.f32 0.5, %v301
          %v303 = vsub.f32 1.5, %v302
          %v304 = vmul.f32 %v299, %v303
          %vm305 = vweird.f32 %v268
          %vm306 = vweird.f32 %v299
          %vm307 = vmor %vm305, %vm306
          %v308 = vsel %vm307, %v299, %v304
          %v309 = vmul.f32 %v233, %v278
          %v310 = vmul.f32 %v234, %v278
          %v311 = vmul.f32 %v235, %v288
          %v312 = vmul.f32 %v236, %v288
          %v313 = vmul.f32 %v237, %v298
          %v314 = vmul.f32 %v238, %v298
          %v315 = vmul.f32 %v239, %v308
          %v316 = vmul.f32 %v240, %v308
          %v317 = vld [vmem:[%s1] sm:$0x3]
          %v319 = vperm.slane %v317, 0
          %v320 = vperm.slane %v317, 1
          %v323 = vmul.f32 %v309, %v319
          %v324 = vmul.f32 %v310, %v320
          %v325 = vmul.f32 %v311, %v319
          %v326 = vmul.f32 %v312, %v320
          %v327 = vmul.f32 %v313, %v319
          %v328 = vmul.f32 %v314, %v320
          %v329 = vmul.f32 %v315, %v319
          %v330 = vmul.f32 %v316, %v320
          %v331 = vpack.c.bf16 %v324, %v323
          %v332 = vpack.c.bf16 %v326, %v325
          %v333 = vpack.c.bf16 %v328, %v327
          %v334 = vpack.c.bf16 %v330, %v329
          %335 = vst [vmem:[#allocation2] sm:$0xff] %v331
          %336 = vst [vmem:[#allocation2 + $0x8] sm:$0xff] %v332
          %337 = vst [vmem:[#allocation2 + $0x10] sm:$0xff] %v333
          %338 = vst [vmem:[#allocation2 + $0x18] sm:$0xff] %v334
        $region40: #{transformer_block.5} parent=31 // pred_fallthru
          _
        %v339 = vld [vmem:[#allocation2] sm:$0xff]
        %v340 = vld [vmem:[#allocation2 + $0x8] sm:$0xff]
        %v341 = vld [vmem:[#allocation2 + $0x10] sm:$0xff]
        %v342 = vld [vmem:[#allocation2 + $0x18] sm:$0xff]
        %v343 = vld [vmem:[%s190] sm:$0xff]
        %v344 = vld [vmem:[%s190 + $0x8] sm:$0xff]
        %v345 = vld [vmem:[%s190 + $0x10] sm:$0xff]
        %v346 = vld [vmem:[%s190 + $0x18] sm:$0xff]
        %v347 = vld [vmem:[%s190 + $0x20] sm:$0xff]
        %v348 = vld [vmem:[%s190 + $0x28] sm:$0xff]
        %v349 = vld [vmem:[%s190 + $0x30] sm:$0xff]
        %v350 = vld [vmem:[%s190 + $0x38] sm:$0xff]
        %v351 = vld [vmem:[%s190 + $0x40] sm:$0xff]
        %v352 = vld [vmem:[%s190 + $0x48] sm:$0xff]
        %v353 = vld [vmem:[%s190 + $0x50] sm:$0xff]
        %v354 = vld [vmem:[%s190 + $0x58] sm:$0xff]
        %v355 = vld [vmem:[%s190 + $0x60] sm:$0xff]
        %v356 = vld [vmem:[%s190 + $0x68] sm:$0xff]
        %v357 = vld [vmem:[%s190 + $0x70] sm:$0xff]
        %v358 = vld [vmem:[%s190 + $0x78] sm:$0xff]
        %v359 = vld [vmem:[%s190 + $0x80] sm:$0xff]
        %v360 = vld [vmem:[%s190 + $0x88] sm:$0xff]
        %v361 = vld [vmem:[%s190 + $0x90] sm:$0xff]
        %v362 = vld [vmem:[%s190 + $0x98] sm:$0xff]
        %v363 = vld [vmem:[%s190 + $0xa0] sm:$0xff]
        %v364 = vld [vmem:[%s190 + $0xa8] sm:$0xff]
        %v365 = vld [vmem:[%s190 + $0xb0] sm:$0xff]
        %v366 = vld [vmem:[%s190 + $0xb8] sm:$0xff]
        %v367 = vld [vmem:[%s190 + $0xc0] sm:$0xff]
        %v368 = vld [vmem:[%s190 + $0xc8] sm:$0xff]
        %v369 = vld [vmem:[%s190 + $0xd0] sm:$0xff]
        %v370 = vld [vmem:[%s190 + $0xd8] sm:$0xff]
        %v371 = vld [vmem:[%s190 + $0xe0] sm:$0xff]
        %v372 = vld [vmem:[%s190 + $0xe8] sm:$0xff]
        %v373 = vld [vmem:[%s190 + $0xf0] sm:$0xff]
        %v374 = vld [vmem:[%s190 + $0xf8] sm:$0xff]
        %v379 = vunpack.c.l.b16 %v339
        %v380 = vunpack.c.h.b16 %v339
        %v381 = vunpack.c.l.b16 %v340
        %v382 = vunpack.c.h.b16 %v340
        %v383 = vunpack.c.l.b16 %v341
        %v384 = vunpack.c.h.b16 %v341
        %v385 = vunpack.c.l.b16 %v342
        %v386 = vunpack.c.h.b16 %v342
        %v387 = vpack.c.b16 %v381, %v379
        %v388 = vpack.c.b16 %v382, %v380
        %v389 = vpack.c.b16 %v385, %v383
        %v390 = vpack.c.b16 %v386, %v384
        %v427 = vunpack.c.l.b16 %v343
        %v428 = vunpack.c.h.b16 %v343
        %v429 = vunpack.c.l.b16 %v344
        %v430 = vunpack.c.h.b16 %v344
        %v431 = vunpack.c.l.b16 %v345
        %v432 = vunpack.c.h.b16 %v345
        %v433 = vunpack.c.l.b16 %v346
        %v434 = vunpack.c.h.b16 %v346
        %v435 = vunpack.c.l.b16 %v347
        %v436 = vunpack.c.h.b16 %v347
        %v437 = vunpack.c.l.b16 %v348
        %v438 = vunpack.c.h.b16 %v348
        %v439 = vunpack.c.l.b16 %v349
        %v440 = vunpack.c.h.b16 %v349
        %v441 = vunpack.c.l.b16 %v350
        %v442 = vunpack.c.h.b16 %v350
        %v443 = vunpack.c.l.b16 %v351
        %v444 = vunpack.c.h.b16 %v351
        %v445 = vunpack.c.l.b16 %v352
        %v446 = vunpack.c.h.b16 %v352
        %v447 = vunpack.c.l.b16 %v353
        %v448 = vunpack.c.h.b16 %v353
        %v449 = vunpack.c.l.b16 %v354
        %v450 = vunpack.c.h.b16 %v354
        %v451 = vunpack.c.l.b16 %v355
        %v452 = vunpack.c.h.b16 %v355
        %v453 = vunpack.c.l.b16 %v356
        %v454 = vunpack.c.h.b16 %v356
        %v455 = vunpack.c.l.b16 %v357
        %v456 = vunpack.c.h.b16 %v357
        %v457 = vunpack.c.l.b16 %v358
        %v458 = vunpack.c.h.b16 %v358
        %v459 = vunpack.c.l.b16 %v359
        %v460 = vunpack.c.h.b16 %v359
        %v461 = vunpack.c.l.b16 %v360
        %v462 = vunpack.c.h.b16 %v360
        %v463 = vunpack.c.l.b16 %v361
        %v464 = vunpack.c.h.b16 %v361
        %v465 = vunpack.c.l.b16 %v362
        %v466 = vunpack.c.h.b16 %v362
        %v467 = vunpack.c.l.b16 %v363
        %v468 = vunpack.c.h.b16 %v363
        %v469 = vunpack.c.l.b16 %v364
        %v470 = vunpack.c.h.b16 %v364
        %v471 = vunpack.c.l.b16 %v365
        %v472 = vunpack.c.h.b16 %v365
        %v473 = vunpack.c.l.b16 %v366
        %v474 = vunpack.c.h.b16 %v366
        %v475 = vunpack.c.l.b16 %v367
        %v476 = vunpack.c.h.b16 %v367
        %v477 = vunpack.c.l.b16 %v368
        %v478 = vunpack.c.h.b16 %v368
        %v479 = vunpack.c.l.b16 %v369
        %v480 = vunpack.c.h.b16 %v369
        %v481 = vunpack.c.l.b16 %v370
        %v482 = vunpack.c.h.b16 %v370
        %v483 = vunpack.c.l.b16 %v371
        %v484 = vunpack.c.h.b16 %v371
        %v485 = vunpack.c.l.b16 %v372
        %v486 = vunpack.c.h.b16 %v372
        %v487 = vunpack.c.l.b16 %v373
        %v488 = vunpack.c.h.b16 %v373
        %v489 = vunpack.c.l.b16 %v374
        %v490 = vunpack.c.h.b16 %v374
        %v491 = vpack.c.b16 %v429, %v427
        %v492 = vpack.c.b16 %v430, %v428
        %v493 = vpack.c.b16 %v433, %v431
        %v494 = vpack.c.b16 %v434, %v432
        %v495 = vpack.c.b16 %v437, %v435
        %v496 = vpack.c.b16 %v438, %v436
        %v497 = vpack.c.b16 %v441, %v439
        %v498 = vpack.c.b16 %v442, %v440
        %v499 = vpack.c.b16 %v445, %v443
        %v500 = vpack.c.b16 %v446, %v444
        %v501 = vpack.c.b16 %v449, %v447
        %v502 = vpack.c.b16 %v450, %v448
        %v503 = vpack.c.b16 %v453, %v451
        %v504 = vpack.c.b16 %v454, %v452
        %v505 = vpack.c.b16 %v457, %v455
        %v506 = vpack.c.b16 %v458, %v456
        %v507 = vpack.c.b16 %v461, %v459
        %v508 = vpack.c.b16 %v462, %v460
        %v509 = vpack.c.b16 %v465, %v463
        %v510 = vpack.c.b16 %v466, %v464
        %v511 = vpack.c.b16 %v469, %v467
        %v512 = vpack.c.b16 %v470, %v468
        %v513 = vpack.c.b16 %v473, %v471
        %v514 = vpack.c.b16 %v474, %v472
        %v515 = vpack.c.b16 %v477, %v475
        %v516 = vpack.c.b16 %v478, %v476
        %v517 = vpack.c.b16 %v481, %v479
        %v518 = vpack.c.b16 %v482, %v480
        %v519 = vpack.c.b16 %v485, %v483
        %v520 = vpack.c.b16 %v486, %v484
        %v521 = vpack.c.b16 %v489, %v487
        %v522 = vpack.c.b16 %v490, %v488
        %555 = vmatpush.bf16.msra.mxu0 %v505
        %556 = vmatpush.bf16.msra.mxu0 %v503
        %557 = vmatpush.bf16.msra.mxu0 %v501
        %558 = vmatpush.bf16.msra.mxu0 %v499
        %559 = vmatpush.bf16.msra.mxu0 %v497
        %560 = vmatpush.bf16.msra.mxu0 %v495
        %561 = vmatpush.bf16.msra.mxu0 %v493
        %562 = vmatpush.bf16.msra.mxu0 %v491
        %563 = vmatmul.bf16.gmra.mxu0 %v387
        %v564 = vpop.f32.mrf.mxu0
        %v565 = vadd.f32 0.0, %v564
        %v566 = vpop.f32.mrf.mxu0
        %v567 = vadd.f32 0.0, %v566
        %568 = vmatmul.bf16.gmra.mxu0 %v389
        %v569 = vpop.f32.mrf.mxu0
        %v570 = vadd.f32 0.0, %v569
        %v571 = vpop.f32.mrf.mxu0
        %v572 = vadd.f32 0.0, %v571
        %573 = vdwg.mxu0
        %574 = vmatpush.bf16.msra.mxu0 %v521
        %575 = vmatpush.bf16.msra.mxu0 %v519
        %576 = vmatpush.bf16.msra.mxu0 %v517
        %577 = vmatpush.bf16.msra.mxu0 %v515
        %578 = vmatpush.bf16.msra.mxu0 %v513
        %579 = vmatpush.bf16.msra.mxu0 %v511
        %580 = vmatpush.bf16.msra.mxu0 %v509
        %581 = vmatpush.bf16.msra.mxu0 %v507
        %582 = vmatmul.bf16.gmra.mxu0 %v388
        %v583 = vpop.f32.mrf.mxu0
        %v584 = vadd.f32 %v565, %v583
        %v585 = vpop.f32.mrf.mxu0
        %v586 = vadd.f32 %v567, %v585
        %587 = vmatmul.bf16.gmra.mxu0 %v390
        %v588 = vpop.f32.mrf.mxu0
        %v589 = vadd.f32 %v570, %v588
        %v590 = vpop.f32.mrf.mxu0
        %v591 = vadd.f32 %v572, %v590
        %592 = vdwg.mxu0
        %593 = vmatpush.bf16.msra.mxu0 %v506
        %594 = vmatpush.bf16.msra.mxu0 %v504
        %595 = vmatpush.bf16.msra.mxu0 %v502
        %596 = vmatpush.bf16.msra.mxu0 %v500
        %597 = vmatpush.bf16.msra.mxu0 %v498
        %598 = vmatpush.bf16.msra.mxu0 %v496
        %599 = vmatpush.bf16.msra.mxu0 %v494
        %600 = vmatpush.bf16.msra.mxu0 %v492
        %601 = vmatmul.bf16.gmra.mxu0 %v387
        %v602 = vpop.f32.mrf.mxu0
        %v603 = vadd.f32 0.0, %v602
        %v604 = vpop.f32.mrf.mxu0
        %v605 = vadd.f32 0.0, %v604
        %606 = vmatmul.bf16.gmra.mxu0 %v389
        %v607 = vpop.f32.mrf.mxu0
        %v608 = vadd.f32 0.0, %v607
        %v609 = vpop.f32.mrf.mxu0
        %v610 = vadd.f32 0.0, %v609
        %611 = vdwg.mxu0
        %612 = vmatpush.bf16.msra.mxu0 %v522
        %613 = vmatpush.bf16.msra.mxu0 %v520
        %614 = vmatpush.bf16.msra.mxu0 %v518
        %615 = vmatpush.bf16.msra.mxu0 %v516
        %616 = vmatpush.bf16.msra.mxu0 %v514
        %617 = vmatpush.bf16.msra.mxu0 %v512
        %618 = vmatpush.bf16.msra.mxu0 %v510
        %619 = vmatpush.bf16.msra.mxu0 %v508
        %620 = vmatmul.bf16.gmra.mxu0 %v388
        %v621 = vpop.f32.mrf.mxu0
        %v622 = vadd.f32 %v603, %v621
        %v623 = vpop.f32.mrf.mxu0
        %v624 = vadd.f32 %v605, %v623
        %625 = vmatmul.bf16.gmra.mxu0 %v390
        %v626 = vpop.f32.mrf.mxu0
        %v627 = vadd.f32 %v608, %v626
        %v628 = vpop.f32.mrf.mxu0
        %v629 = vadd.f32 %v610, %v628
        %630 = vdwg.mxu0
        %v631 = vpack.c.bf16 %v622, %v584
        %v632 = vpack.c.bf16 %v624, %v586
        %v633 = vpack.c.bf16 %v627, %v589
        %v634 = vpack.c.bf16 %v629, %v591
        %635 = vst [vmem:[%s218] sm:$0xff] %v631
        %636 = vst [vmem:[%s218 + $0x8] sm:$0xff] %v632
        %637 = vst [vmem:[%s218 + $0x10] sm:$0xff] %v633
        %638 = vst [vmem:[%s218 + $0x18] sm:$0xff] %v634
        %s639 = sand.u32 %s112, 1
        %s640 = sand.u32 %s112, 1
        %s641 = smul.addr %s640, 32
        %s642 = scalar_lea.vmem [#allocation5], %s641
        // Predicated region
        $region41: #{transformer_block.5} parent=31 // pred_check
          %p643 = pneg %p122
        $region42: #{transformer_block.5} parent=31 // pred_check_branch
          %645 = sbr.rel (%p643) target = $region44
        $region43: #{transformer_block.5} parent=31 // pred_region
          %s646 = smul.u32 4, %s21
          %s647 = smul.u32 2, %s22
          %s648 = smul.addr %s646, 4
          %s649 = sadd.s32 %s647, %s648
          %s650 = smul.addr %s649, 4
          %s651 = scalar_lea.vmem %s3, %s650
          // Predicated region
          $region45: #{transformer_block.5} parent=43 // pred_check
            _
          $region46: #{transformer_block.5} parent=43 // pred_check_branch
            %653 = sbr.rel (0) target = $region48
          $region47: #{transformer_block.5} parent=43 // pred_region
            // Predicated region
            $region49: #{transformer_block.5} parent=47 // pred_check
              _
            $region50: #{transformer_block.5} parent=47 // pred_check_branch
              %655 = sbr.rel (0) target = $region52
            $region51: #{transformer_block.5} parent=47 // pred_region
              // Predicated region
              $region64: #{transformer_block.5} parent=51 // pred_check
                _
              $region65: #{transformer_block.5} parent=51 // pred_check_branch
                %677 = sbr.rel (0) target = $region67
              $region66: #{transformer_block.5} parent=51 // pred_region
                loop: start=0, step=1, limit=1
                $region68: #{transformer_block.5} parent=66 // loop_pre_header
                  _
                $region69: #{transformer_block.5} parent=66 // loop_header
                  %s679 = sphi 0, %s683
                  %p680 = scmp.ge.s32.totalorder %s679, 1
                  %s684 = sphi %s642, %s642
                  %s685 = sphi %s651, %s651
                $region70: #{transformer_block.5} parent=66 // loop_header_branch
                  %682 = sbr.rel (%p680) target = $region74
                $region71: #{transformer_block.5} parent=66 // loop_body
                  %v686 = vld [vmem:[%s684] sm:$0xff]
                  %687 = vst [vmem:[%s685] sm:$0xff] %v686
                  %v688 = vld [vmem:[%s684 + $0x8] sm:$0xff]
                  %689 = vst [vmem:[%s685 + $0x10] sm:$0xff] %v688
                  %v690 = vld [vmem:[%s684 + $0x10] sm:$0xff]
                  %691 = vst [vmem:[%s685 + $0x20] sm:$0xff] %v690
                  %v692 = vld [vmem:[%s684 + $0x18] sm:$0xff]
                  %693 = vst [vmem:[%s685 + $0x30] sm:$0xff] %v692
                $region72: #{transformer_block.5} parent=66 // loop_footer
                  %s683 = sadd.s32 1, %s679
                $region73: #{transformer_block.5} parent=66 // loop_footer_branch
                  %678 = sbr.rel target = $region69
                $region74: #{transformer_block.5} parent=66 // loop_exit
                  _
              $region67: #{transformer_block.5} parent=51 // pred_fallthru
                _
              // Predicated region
              $region75: #{transformer_block.5} parent=51 // pred_check
                _
              $region76: #{transformer_block.5} parent=51 // pred_check_branch
                %695 = sbr.rel target = $region78
              $region77: #{transformer_block.5} parent=51 // pred_region
                _
              $region78: #{transformer_block.5} parent=51 // pred_fallthru
                _
            $region52: #{transformer_block.5} parent=47 // pred_fallthru
              _
            // Predicated region
            $region53: #{transformer_block.5} parent=47 // pred_check
              _
            $region54: #{transformer_block.5} parent=47 // pred_check_branch
              %657 = sbr.rel target = $region56
            $region55: #{transformer_block.5} parent=47 // pred_region
              %s659 = ssub.s32 256, 1
              loop: start=0, step=1, limit=1
              $region57: #{transformer_block.5} parent=55 // loop_pre_header
                _
              $region58: #{transformer_block.5} parent=55 // loop_header
                %s661 = sphi 0, %s665
                %p662 = scmp.ge.s32.totalorder %s661, 1
                %s666 = sphi %s642, %s642
                %s667 = sphi %s651, %s651
              $region59: #{transformer_block.5} parent=55 // loop_header_branch
                %664 = sbr.rel (%p662) target = $region63
              $region60: #{transformer_block.5} parent=55 // loop_body
                %v668 = vld [vmem:[%s666] sm:%s659]
                %669 = vst [vmem:[%s667] sm:%s659] %v668
                %v670 = vld [vmem:[%s666 + $0x8] sm:%s659]
                %671 = vst [vmem:[%s667 + $0x10] sm:%s659] %v670
                %v672 = vld [vmem:[%s666 + $0x10] sm:%s659]
                %673 = vst [vmem:[%s667 + $0x20] sm:%s659] %v672
                %v674 = vld [vmem:[%s666 + $0x18] sm:%s659]
                %675 = vst [vmem:[%s667 + $0x30] sm:%s659] %v674
              $region61: #{transformer_block.5} parent=55 // loop_footer
                %s665 = sadd.s32 1, %s661
              $region62: #{transformer_block.5} parent=55 // loop_footer_branch
                %660 = sbr.rel target = $region58
              $region63: #{transformer_block.5} parent=55 // loop_exit
                _
            $region56: #{transformer_block.5} parent=47 // pred_fallthru
              _
          $region48: #{transformer_block.5} parent=43 // pred_fallthru
            _
          %696 = vnop
        $region44: #{transformer_block.5} parent=31 // pred_fallthru
          _
      $region32: #{transformer_block.5} parent=5 // pred_fallthru
        _
      %p697 = scmp.le.s32.totalorder 2, %s12
      // Predicated region
      $region79: #{transformer_block.5} parent=5 // pred_check
        %p698 = pneg %p697
      $region80: #{transformer_block.5} parent=5 // pred_check_branch
        %700 = sbr.rel (%p698) target = $region82
      $region81: #{transformer_block.5} parent=5 // pred_region
        %s701 = ssub.s32 %s12, 2
        // Predicated region
        $region83: #{transformer_block.5} parent=81 // pred_check
          %p702 = pneg %p128
        $region84: #{transformer_block.5} parent=81 // pred_check_branch
          %704 = sbr.rel (%p702) target = $region86
        $region85: #{transformer_block.5} parent=81 // pred_region
          %s705 = sand.u32 %s113, 1
          %s706 = sand.u32 %s113, 1
          %s707 = smul.addr %s706, 32
          %s708 = scalar_lea.vmem [#allocation5], %s707
        $region86: #{transformer_block.5} parent=81 // pred_fallthru
          _
      $region82: #{transformer_block.5} parent=5 // pred_fallthru
        _
    $region6: #{transformer_block.5} parent=1 // loop_footer
      %s16 = sadd.s32 1, %s12
    $region7: #{transformer_block.5} parent=1 // loop_footer_branch
      %11 = sbr.rel target = $region3
    $region8: #{transformer_block.5} parent=1 // loop_exit
      _
    %709 = vsyncpa [#allocation4], 1
    %s710 = scalar_lea.sflag [#allocation4], 1
    %711 = vsyncpa %s710, 1

// kernel: transformer_block.7
$region0: #{transformer_block.7}
  #allocation0 [shape = 'u32[]', space=smem, size = 0x4, offset = 0x4, fixed_abs, tag = 'smem constant byte address 0x4 - core index']
  #allocation1 [shape = 'u32[72,128]{1,0:T(1,128)}', space=vmem, size = 0x9000, scoped, tag = 'internal scratch']
  %s0 = inlined_call_operand.vmem [shape: bf16[32,256], index: 0, kind: input, shape index: {}]
  %s1 = inlined_call_operand.hbm [shape: bf16[256,256], index: 1, kind: input, shape index: {}]
  %s2 = inlined_call_operand.vmem [shape: f32[32,256], index: 2, kind: input, shape index: {}, may-alias: {2,3}]
  %s3 = inlined_call_operand.vmem [shape: f32[32,256], index: 3, kind: output, shape index: {}, may-alias: {2,3}]
  %s4 = sld [smem:[#allocation0]]
  $region26: #{transformer_block.7} parent=0
    _
  %s6 = ssub.s32 1, %s4
  %s7 = scalar_select 0, %s6, %s4
  $region1: #{transformer_block.7} parent=0
    #allocation2 [shape = 'u8[131072]{0}', space=vmem, size = 0x20000, scoped, tag = 'input window, operand 1, single buffered']
    #allocation3 [shape = 's32[1]{0}', space=sflag, size = 0x4, scoped, tag = 'scoped memory for transformer_block.7']
    %8 = vsyncpa [#allocation3], 0
    // Predicated region
    $region2: #{transformer_block.7} parent=1 // pred_check
      _
    $region3: #{transformer_block.7} parent=1 // pred_check_branch
      %10 = sbr.rel (0) target = $region5
    $region4: #{transformer_block.7} parent=1 // pred_region
      _
    $region5: #{transformer_block.7} parent=1 // pred_fallthru
      _
    // Predicated region
    $region6: #{transformer_block.7} parent=1 // pred_check
      _
    $region7: #{transformer_block.7} parent=1 // pred_check_branch
      %12 = sbr.rel (0) target = $region9
    $region8: #{transformer_block.7} parent=1 // pred_region
      %14 = vsyncadd [#allocation3], 0
      %s15 = sshll.u32 %s1, 4
      %s16 = int_to_ptr.hbm [resolvable:$true] %s15
      %s17 = sshll.u32 [#allocation2], 4
      %s18 = int_to_ptr.vmem [resolvable:$true] %s17
      %23 = dma.hbm_to_vmem [thread:$0]  %s16, 4096, %s18, [#allocation3], 128, 128, 8
    $region9: #{transformer_block.7} parent=1 // pred_fallthru
      _
    // Predicated region
    $region10: #{transformer_block.7} parent=1 // pred_check
      _
    $region11: #{transformer_block.7} parent=1 // pred_check_branch
      %25 = sbr.rel (0) target = $region13
    $region12: #{transformer_block.7} parent=1 // pred_region
      _
    $region13: #{transformer_block.7} parent=1 // pred_fallthru
      _
    // Predicated region
    $region14: #{transformer_block.7} parent=1 // pred_check
      _
    $region15: #{transformer_block.7} parent=1 // pred_check_branch
      %27 = sbr.rel (0) target = $region17
    $region16: #{transformer_block.7} parent=1 // pred_region
      %29 = dma.done [#allocation3], 4096
    $region17: #{transformer_block.7} parent=1 // pred_fallthru
      _
    %v30 = vld [vmem:[%s0] sm:$0xff]
    %v31 = vld [vmem:[%s0 + $0x8] sm:$0xff]
    %v32 = vld [vmem:[%s0 + $0x10] sm:$0xff]
    %v33 = vld [vmem:[%s0 + $0x18] sm:$0xff]
    %v34 = vld [vmem:[#allocation2] sm:$0xff]
    %v35 = vld [vmem:[#allocation2 + $0x8] sm:$0xff]
    %v36 = vld [vmem:[#allocation2 + $0x10] sm:$0xff]
    %v37 = vld [vmem:[#allocation2 + $0x18] sm:$0xff]
    %v38 = vld [vmem:[#allocation2 + $0x20] sm:$0xff]
    %v39 = vld [vmem:[#allocation2 + $0x28] sm:$0xff]
    %v40 = vld [vmem:[#allocation2 + $0x30] sm:$0xff]
    %v41 = vld [vmem:[#allocation2 + $0x38] sm:$0xff]
    %v42 = vld [vmem:[#allocation2 + $0x40] sm:$0xff]
    %v43 = vld [vmem:[#allocation2 + $0x48] sm:$0xff]
    %v44 = vld [vmem:[#allocation2 + $0x50] sm:$0xff]
    %v45 = vld [vmem:[#allocation2 + $0x58] sm:$0xff]
    %v46 = vld [vmem:[#allocation2 + $0x60] sm:$0xff]
    %v47 = vld [vmem:[#allocation2 + $0x68] sm:$0xff]
    %v48 = vld [vmem:[#allocation2 + $0x70] sm:$0xff]
    %v49 = vld [vmem:[#allocation2 + $0x78] sm:$0xff]
    %v50 = vld [vmem:[#allocation2 + $0x80] sm:$0xff]
    %v51 = vld [vmem:[#allocation2 + $0x88] sm:$0xff]
    %v52 = vld [vmem:[#allocation2 + $0x90] sm:$0xff]
    %v53 = vld [vmem:[#allocation2 + $0x98] sm:$0xff]
    %v54 = vld [vmem:[#allocation2 + $0xa0] sm:$0xff]
    %v55 = vld [vmem:[#allocation2 + $0xa8] sm:$0xff]
    %v56 = vld [vmem:[#allocation2 + $0xb0] sm:$0xff]
    %v57 = vld [vmem:[#allocation2 + $0xb8] sm:$0xff]
    %v58 = vld [vmem:[#allocation2 + $0xc0] sm:$0xff]
    %v59 = vld [vmem:[#allocation2 + $0xc8] sm:$0xff]
    %v60 = vld [vmem:[#allocation2 + $0xd0] sm:$0xff]
    %v61 = vld [vmem:[#allocation2 + $0xd8] sm:$0xff]
    %v62 = vld [vmem:[#allocation2 + $0xe0] sm:$0xff]
    %v63 = vld [vmem:[#allocation2 + $0xe8] sm:$0xff]
    %v64 = vld [vmem:[#allocation2 + $0xf0] sm:$0xff]
    %v65 = vld [vmem:[#allocation2 + $0xf8] sm:$0xff]
    %v66 = vld [vmem:[%s2] sm:$0xff]
    %v67 = vld [vmem:[%s2 + $0x8] sm:$0xff]
    %v68 = vld [vmem:[%s2 + $0x10] sm:$0xff]
    %v69 = vld [vmem:[%s2 + $0x18] sm:$0xff]
    %v70 = vld [vmem:[%s2 + $0x20] sm:$0xff]
    %v71 = vld [vmem:[%s2 + $0x28] sm:$0xff]
    %v72 = vld [vmem:[%s2 + $0x30] sm:$0xff]
    %v73 = vld [vmem:[%s2 + $0x38] sm:$0xff]
    %v78 = vunpack.c.l.b16 %v30
    %v79 = vunpack.c.h.b16 %v30
    %v80 = vunpack.c.l.b16 %v31
    %v81 = vunpack.c.h.b16 %v31
    %v82 = vunpack.c.l.b16 %v32
    %v83 = vunpack.c.h.b16 %v32
    %v84 = vunpack.c.l.b16 %v33
    %v85 = vunpack.c.h.b16 %v33
    %v86 = vpack.c.b16 %v80, %v78
    %v87 = vpack.c.b16 %v81, %v79
    %v88 = vpack.c.b16 %v84, %v82
    %v89 = vpack.c.b16 %v85, %v83
    %v126 = vunpack.c.l.b16 %v34
    %v127 = vunpack.c.h.b16 %v34
    %v128 = vunpack.c.l.b16 %v35
    %v129 = vunpack.c.h.b16 %v35
    %v130 = vunpack.c.l.b16 %v36
    %v131 = vunpack.c.h.b16 %v36
    %v132 = vunpack.c.l.b16 %v37
    %v133 = vunpack.c.h.b16 %v37
    %v134 = vunpack.c.l.b16 %v38
    %v135 = vunpack.c.h.b16 %v38
    %v136 = vunpack.c.l.b16 %v39
    %v137 = vunpack.c.h.b16 %v39
    %v138 = vunpack.c.l.b16 %v40
    %v139 = vunpack.c.h.b16 %v40
    %v140 = vunpack.c.l.b16 %v41
    %v141 = vunpack.c.h.b16 %v41
    %v142 = vunpack.c.l.b16 %v42
    %v143 = vunpack.c.h.b16 %v42
    %v144 = vunpack.c.l.b16 %v43
    %v145 = vunpack.c.h.b16 %v43
    %v146 = vunpack.c.l.b16 %v44
    %v147 = vunpack.c.h.b16 %v44
    %v148 = vunpack.c.l.b16 %v45
    %v149 = vunpack.c.h.b16 %v45
    %v150 = vunpack.c.l.b16 %v46
    %v151 = vunpack.c.h.b16 %v46
    %v152 = vunpack.c.l.b16 %v47
    %v153 = vunpack.c.h.b16 %v47
    %v154 = vunpack.c.l.b16 %v48
    %v155 = vunpack.c.h.b16 %v48
    %v156 = vunpack.c.l.b16 %v49
    %v157 = vunpack.c.h.b16 %v49
    %v158 = vunpack.c.l.b16 %v50
    %v159 = vunpack.c.h.b16 %v50
    %v160 = vunpack.c.l.b16 %v51
    %v161 = vunpack.c.h.b16 %v51
    %v162 = vunpack.c.l.b16 %v52
    %v163 = vunpack.c.h.b16 %v52
    %v164 = vunpack.c.l.b16 %v53
    %v165 = vunpack.c.h.b16 %v53
    %v166 = vunpack.c.l.b16 %v54
    %v167 = vunpack.c.h.b16 %v54
    %v168 = vunpack.c.l.b16 %v55
    %v169 = vunpack.c.h.b16 %v55
    %v170 = vunpack.c.l.b16 %v56
    %v171 = vunpack.c.h.b16 %v56
    %v172 = vunpack.c.l.b16 %v57
    %v173 = vunpack.c.h.b16 %v57
    %v174 = vunpack.c.l.b16 %v58
    %v175 = vunpack.c.h.b16 %v58
    %v176 = vunpack.c.l.b16 %v59
    %v177 = vunpack.c.h.b16 %v59
    %v178 = vunpack.c.l.b16 %v60
    %v179 = vunpack.c.h.b16 %v60
    %v180 = vunpack.c.l.b16 %v61
    %v181 = vunpack.c.h.b16 %v61
    %v182 = vunpack.c.l.b16 %v62
    %v183 = vunpack.c.h.b16 %v62
    %v184 = vunpack.c.l.b16 %v63
    %v185 = vunpack.c.h.b16 %v63
    %v186 = vunpack.c.l.b16 %v64
    %v187 = vunpack.c.h.b16 %v64
    %v188 = vunpack.c.l.b16 %v65
    %v189 = vunpack.c.h.b16 %v65
    %v190 = vpack.c.b16 %v128, %v126
    %v191 = vpack.c.b16 %v129, %v127
    %v192 = vpack.c.b16 %v132, %v130
    %v193 = vpack.c.b16 %v133, %v131
    %v194 = vpack.c.b16 %v136, %v134
    %v195 = vpack.c.b16 %v137, %v135
    %v196 = vpack.c.b16 %v140, %v138
    %v197 = vpack.c.b16 %v141, %v139
    %v198 = vpack.c.b16 %v144, %v142
    %v199 = vpack.c.b16 %v145, %v143
    %v200 = vpack.c.b16 %v148, %v146
    %v201 = vpack.c.b16 %v149, %v147
    %v202 = vpack.c.b16 %v152, %v150
    %v203 = vpack.c.b16 %v153, %v151
    %v204 = vpack.c.b16 %v156, %v154
    %v205 = vpack.c.b16 %v157, %v155
    %v206 = vpack.c.b16 %v160, %v158
    %v207 = vpack.c.b16 %v161, %v159
    %v208 = vpack.c.b16 %v164, %v162
    %v209 = vpack.c.b16 %v165, %v163
    %v210 = vpack.c.b16 %v168, %v166
    %v211 = vpack.c.b16 %v169, %v167
    %v212 = vpack.c.b16 %v172, %v170
    %v213 = vpack.c.b16 %v173, %v171
    %v214 = vpack.c.b16 %v176, %v174
    %v215 = vpack.c.b16 %v177, %v175
    %v216 = vpack.c.b16 %v180, %v178
    %v217 = vpack.c.b16 %v181, %v179
    %v218 = vpack.c.b16 %v184, %v182
    %v219 = vpack.c.b16 %v185, %v183
    %v220 = vpack.c.b16 %v188, %v186
    %v221 = vpack.c.b16 %v189, %v187
    %254 = vmatpush.bf16.msra.mxu0 %v204
    %255 = vmatpush.bf16.msra.mxu0 %v202
    %256 = vmatpush.bf16.msra.mxu0 %v200
    %257 = vmatpush.bf16.msra.mxu0 %v198
    %258 = vmatpush.bf16.msra.mxu0 %v196
    %259 = vmatpush.bf16.msra.mxu0 %v194
    %260 = vmatpush.bf16.msra.mxu0 %v192
    %261 = vmatpush.bf16.msra.mxu0 %v190
    %262 = vmatmul.bf16.gmra.mxu0 %v86
    %v263 = vpop.f32.mrf.mxu0
    %v264 = vadd.f32 %v66, %v263
    %v265 = vpop.f32.mrf.mxu0
    %v266 = vadd.f32 %v68, %v265
    %267 = vmatmul.bf16.gmra.mxu0 %v88
    %v268 = vpop.f32.mrf.mxu0
    %v269 = vadd.f32 %v70, %v268
    %v270 = vpop.f32.mrf.mxu0
    %v271 = vadd.f32 %v72, %v270
    %272 = vdwg.mxu0
    %273 = vmatpush.bf16.msra.mxu0 %v220
    %274 = vmatpush.bf16.msra.mxu0 %v218
    %275 = vmatpush.bf16.msra.mxu0 %v216
    %276 = vmatpush.bf16.msra.mxu0 %v214
    %277 = vmatpush.bf16.msra.mxu0 %v212
    %278 = vmatpush.bf16.msra.mxu0 %v210
    %279 = vmatpush.bf16.msra.mxu0 %v208
    %280 = vmatpush.bf16.msra.mxu0 %v206
    %281 = vmatmul.bf16.gmra.mxu0 %v87
    %v282 = vpop.f32.mrf.mxu0
    %v283 = vadd.f32 %v264, %v282
    %v284 = vpop.f32.mrf.mxu0
    %v285 = vadd.f32 %v266, %v284
    %286 = vmatmul.bf16.gmra.mxu0 %v89
    %v287 = vpop.f32.mrf.mxu0
    %v288 = vadd.f32 %v269, %v287
    %v289 = vpop.f32.mrf.mxu0
    %v290 = vadd.f32 %v271, %v289
    %291 = vdwg.mxu0
    %292 = vmatpush.bf16.msra.mxu0 %v205
    %293 = vmatpush.bf16.msra.mxu0 %v203
    %294 = vmatpush.bf16.msra.mxu0 %v201
    %295 = vmatpush.bf16.msra.mxu0 %v199
    %296 = vmatpush.bf16.msra.mxu0 %v197
    %297 = vmatpush.bf16.msra.mxu0 %v195
    %298 = vmatpush.bf16.msra.mxu0 %v193
    %299 = vmatpush.bf16.msra.mxu0 %v191
    %300 = vmatmul.bf16.gmra.mxu0 %v86
    %v301 = vpop.f32.mrf.mxu0
    %v302 = vadd.f32 %v67, %v301
    %v303 = vpop.f32.mrf.mxu0
    %v304 = vadd.f32 %v69, %v303
    %305 = vmatmul.bf16.gmra.mxu0 %v88
    %v306 = vpop.f32.mrf.mxu0
    %v307 = vadd.f32 %v71, %v306
    %v308 = vpop.f32.mrf.mxu0
    %v309 = vadd.f32 %v73, %v308
    %310 = vdwg.mxu0
    %311 = vmatpush.bf16.msra.mxu0 %v221
    %312 = vmatpush.bf16.msra.mxu0 %v219
    %313 = vmatpush.bf16.msra.mxu0 %v217
    %314 = vmatpush.bf16.msra.mxu0 %v215
    %315 = vmatpush.bf16.msra.mxu0 %v213
    %316 = vmatpush.bf16.msra.mxu0 %v211
    %317 = vmatpush.bf16.msra.mxu0 %v209
    %318 = vmatpush.bf16.msra.mxu0 %v207
    %319 = vmatmul.bf16.gmra.mxu0 %v87
    %v320 = vpop.f32.mrf.mxu0
    %v321 = vadd.f32 %v302, %v320
    %v322 = vpop.f32.mrf.mxu0
    %v323 = vadd.f32 %v304, %v322
    %324 = vmatmul.bf16.gmra.mxu0 %v89
    %v325 = vpop.f32.mrf.mxu0
    %v326 = vadd.f32 %v307, %v325
    %v327 = vpop.f32.mrf.mxu0
    %v328 = vadd.f32 %v309, %v327
    %329 = vdwg.mxu0
    %330 = vst [vmem:[%s3] sm:$0xff] %v283
    %331 = vst [vmem:[%s3 + $0x8] sm:$0xff] %v321
    %332 = vst [vmem:[%s3 + $0x10] sm:$0xff] %v285
    %333 = vst [vmem:[%s3 + $0x18] sm:$0xff] %v323
    %334 = vst [vmem:[%s3 + $0x20] sm:$0xff] %v288
    %335 = vst [vmem:[%s3 + $0x28] sm:$0xff] %v326
    %336 = vst [vmem:[%s3 + $0x30] sm:$0xff] %v290
    %337 = vst [vmem:[%s3 + $0x38] sm:$0xff] %v328
    // Predicated region
    $region18: #{transformer_block.7} parent=1 // pred_check
      _
    $region19: #{transformer_block.7} parent=1 // pred_check_branch
      %339 = sbr.rel (0) target = $region21
    $region20: #{transformer_block.7} parent=1 // pred_region
      _
    $region21: #{transformer_block.7} parent=1 // pred_fallthru
      _
    // Predicated region
    $region22: #{transformer_block.7} parent=1 // pred_check
      _
    $region23: #{transformer_block.7} parent=1 // pred_check_branch
      %341 = sbr.rel (0) target = $region25
    $region24: #{transformer_block.7} parent=1 // pred_region
      _
    $region25: #{transformer_block.7} parent=1 // pred_fallthru
      _
    %342 = vsyncpa [#allocation3], 1

// kernel: transformer_block.6
$region0: #{transformer_block.6}
  #allocation0 [shape = 'u32[]', space=smem, size = 0x4, offset = 0x4, fixed_abs, tag = 'smem constant byte address 0x4 - core index']
  #allocation1 [shape = 'u32[72,128]{1,0:T(1,128)}', space=vmem, size = 0x9000, scoped, tag = 'internal scratch']
  %s0 = inlined_call_operand.vmem [shape: bf16[32,512], index: 0, kind: input, shape index: {}]
  %s1 = inlined_call_operand.vmem [shape: f32[16,32], index: 1, kind: input, shape index: {}]
  %s2 = inlined_call_operand.vmem [shape: f32[16,32], index: 2, kind: input, shape index: {}]
  %s3 = inlined_call_operand.vmem [shape: f32[16,16], index: 3, kind: input, shape index: {}]
  %s4 = inlined_call_operand.vmem [shape: bf16[32,256], index: 4, kind: output, shape index: {}]
  %s5 = sld [smem:[#allocation0]]
  $region49: #{transformer_block.6} parent=0
    _
  %s7 = ssub.s32 1, %s5
  %s8 = scalar_select 0, %s7, %s5
  loop: start=0, step=1, limit=4
  $region2: #{transformer_block.6} parent=0 // loop_pre_header
    _
  $region3: #{transformer_block.6} parent=0 // loop_header
    %s10 = sphi 0, %s14
    %p11 = scmp.ge.s32.totalorder %s10, 4
    %s20 = sphi 0, %s22
    %s23 = sphi 0, %s20
    %s24 = sphi 0, %s23
    %s40 = sphi 0, %s24
    %s44 = sphi 0, %s44
    %s46 = sphi 0, %s44
    %s47 = sphi 0, %s46
    %s61 = sphi 0, %s47
    %s65 = sphi 0, %s65
    %s67 = sphi 0, %s65
    %s68 = sphi 0, %s67
    %s82 = sphi 0, %s68
    %s86 = sphi 0, %s86
    %s88 = sphi 0, %s86
    %s89 = sphi 0, %s88
    %s103 = sphi 0, %s89
    %s109 = sphi 0, %s111
    %s112 = sphi 0, %s109
    %s113 = sphi 0, %s112
    %s129 = sphi 0, %s113
  $region4: #{transformer_block.6} parent=0 // loop_header_branch
    %13 = sbr.rel (%p11) target = $region8
  $region5: #{transformer_block.6} parent=0 // loop_body
    %s15 = ssub.s32 %s10, 1
    %s16 = ssub.s32 %s10, 2
    %s17 = sadd.s32 %s10, 1
    %s18 = ssub.s32 %s10, %s17
    %p19 = scmp.eq.s32.totalorder %s18, 0
    %s21 = sadd.s32 %s20, 1
    %s22 = scalar_select %p19, %s20, %s21
    %p25 = pneg %p19
    %p26 = scmp.eq.s32.totalorder %s10, 1
    %p27 = por %p25, %p26
    %p28 = scmp.ne.s32.totalorder %s20, %s23
    %p29 = scmp.eq.s32.totalorder %s10, 0
    %p30 = por %p28, %p29
    %p31 = scmp.ne.s32.totalorder %s20, %s23
    %p32 = scmp.eq.s32.totalorder %s15, 1
    %p33 = por %p31, %p32
    %p34 = scmp.ne.s32.totalorder %s23, %s24
    %p35 = scmp.eq.s32.totalorder %s15, 0
    %p36 = por %p34, %p35
    %p37 = scmp.ne.s32.totalorder %s23, %s24
    %p38 = scmp.eq.s32.totalorder %s16, 1
    %p39 = por %p37, %p38
    %p41 = scmp.ne.s32.totalorder %s24, %s40
    %p42 = scmp.eq.s32.totalorder %s16, 0
    %p43 = por %p41, %p42
    %s45 = sadd.s32 %s44, 1
    %p48 = scmp.eq.s32.totalorder %s10, 1
    %p49 = scmp.ne.s32.totalorder %s44, %s46
    %p50 = scmp.eq.s32.totalorder %s10, 0
    %p51 = por %p49, %p50
    %p52 = scmp.ne.s32.totalorder %s44, %s46
    %p53 = scmp.eq.s32.totalorder %s15, 1
    %p54 = por %p52, %p53
    %p55 = scmp.ne.s32.totalorder %s46, %s47
    %p56 = scmp.eq.s32.totalorder %s15, 0
    %p57 = por %p55, %p56
    %p58 = scmp.ne.s32.totalorder %s46, %s47
    %p59 = scmp.eq.s32.totalorder %s16, 1
    %p60 = por %p58, %p59
    %p62 = scmp.ne.s32.totalorder %s47, %s61
    %p63 = scmp.eq.s32.totalorder %s16, 0
    %p64 = por %p62, %p63
    %s66 = sadd.s32 %s65, 1
    %p69 = scmp.eq.s32.totalorder %s10, 1
    %p70 = scmp.ne.s32.totalorder %s65, %s67
    %p71 = scmp.eq.s32.totalorder %s10, 0
    %p72 = por %p70, %p71
    %p73 = scmp.ne.s32.totalorder %s65, %s67
    %p74 = scmp.eq.s32.totalorder %s15, 1
    %p75 = por %p73, %p74
    %p76 = scmp.ne.s32.totalorder %s67, %s68
    %p77 = scmp.eq.s32.totalorder %s15, 0
    %p78 = por %p76, %p77
    %p79 = scmp.ne.s32.totalorder %s67, %s68
    %p80 = scmp.eq.s32.totalorder %s16, 1
    %p81 = por %p79, %p80
    %p83 = scmp.ne.s32.totalorder %s68, %s82
    %p84 = scmp.eq.s32.totalorder %s16, 0
    %p85 = por %p83, %p84
    %s87 = sadd.s32 %s86, 1
    %p90 = scmp.eq.s32.totalorder %s10, 1
    %p91 = scmp.ne.s32.totalorder %s86, %s88
    %p92 = scmp.eq.s32.totalorder %s10, 0
    %p93 = por %p91, %p92
    %p94 = scmp.ne.s32.totalorder %s86, %s88
    %p95 = scmp.eq.s32.totalorder %s15, 1
    %p96 = por %p94, %p95
    %p97 = scmp.ne.s32.totalorder %s88, %s89
    %p98 = scmp.eq.s32.totalorder %s15, 0
    %p99 = por %p97, %p98
    %p100 = scmp.ne.s32.totalorder %s88, %s89
    %p101 = scmp.eq.s32.totalorder %s16, 1
    %p102 = por %p100, %p101
    %p104 = scmp.ne.s32.totalorder %s89, %s103
    %p105 = scmp.eq.s32.totalorder %s16, 0
    %p106 = por %p104, %p105
    %s107 = ssub.s32 %s10, %s17
    %p108 = scmp.eq.s32.totalorder %s107, 0
    %s110 = sadd.s32 %s109, 1
    %s111 = scalar_select %p108, %s109, %s110
    %p114 = pneg %p108
    %p115 = scmp.eq.s32.totalorder %s10, 1
    %p116 = por %p114, %p115
    %p117 = scmp.ne.s32.totalorder %s109, %s112
    %p118 = scmp.eq.s32.totalorder %s10, 0
    %p119 = por %p117, %p118
    %p120 = scmp.ne.s32.totalorder %s109, %s112
    %p121 = scmp.eq.s32.totalorder %s15, 1
    %p122 = por %p120, %p121
    %p123 = scmp.ne.s32.totalorder %s112, %s113
    %p124 = scmp.eq.s32.totalorder %s15, 0
    %p125 = por %p123, %p124
    %p126 = scmp.ne.s32.totalorder %s112, %s113
    %p127 = scmp.eq.s32.totalorder %s16, 1
    %p128 = por %p126, %p127
    %p130 = scmp.ne.s32.totalorder %s113, %s129
    %p131 = scmp.eq.s32.totalorder %s16, 0
    %p132 = por %p130, %p131
    %p133 = scmp.le.s32.totalorder 1, %s10
    %p134 = scmp.lt.s32.totalorder %s10, 3
    %p135 = pnand %p133, %p134
    %p136 = pneg %p135
    // Predicated region
    $region9: #{transformer_block.6} parent=5 // pred_check
      _
    $region10: #{transformer_block.6} parent=5 // pred_check_branch
      %138 = sbr.rel (%p135) target = $region12
    $region11: #{transformer_block.6} parent=5 // pred_region
      %s139 = ssub.s32 %s10, 1
      // Predicated region
      $region13: #{transformer_block.6} parent=11 // pred_check
        %p140 = pneg %p57
      $region14: #{transformer_block.6} parent=11 // pred_check_branch
        %142 = sbr.rel (%p140) target = $region16
      $region15: #{transformer_block.6} parent=11 // pred_region
        _
      $region16: #{transformer_block.6} parent=11 // pred_fallthru
        _
      // Predicated region
      $region17: #{transformer_block.6} parent=11 // pred_check
        %p143 = pneg %p78
      $region18: #{transformer_block.6} parent=11 // pred_check_branch
        %145 = sbr.rel (%p143) target = $region20
      $region19: #{transformer_block.6} parent=11 // pred_region
        _
      $region20: #{transformer_block.6} parent=11 // pred_fallthru
        _
      // Predicated region
      $region21: #{transformer_block.6} parent=11 // pred_check
        %p146 = pneg %p99
      $region22: #{transformer_block.6} parent=11 // pred_check_branch
        %148 = sbr.rel (%p146) target = $region24
      $region23: #{transformer_block.6} parent=11 // pred_region
        _
      $region24: #{transformer_block.6} parent=11 // pred_fallthru
        _
    $region12: #{transformer_block.6} parent=5 // pred_fallthru
      _
    %p149 = scmp.lt.s32.totalorder %s10, 2
    // Predicated region
    $region25: #{transformer_block.6} parent=5 // pred_check
      %p150 = pneg %p149
    $region26: #{transformer_block.6} parent=5 // pred_check_branch
      %152 = sbr.rel (%p150) target = $region28
    $region27: #{transformer_block.6} parent=5 // pred_region
      // Predicated region
      $region29: #{transformer_block.6} parent=27 // pred_check
        %p153 = pneg %p30
      $region30: #{transformer_block.6} parent=27 // pred_check_branch
        %155 = sbr.rel (%p153) target = $region32
      $region31: #{transformer_block.6} parent=27 // pred_region
        %s156 = smul.u32 2, %s10
        %p157 = scmp.lt.s32.totalorder %s156, 3
        %s158 = scalar_select %p157, %s156, 3
        %s159 = smul.addr %s158, 4
        %s160 = smul.addr %s159, 4
        %s161 = scalar_lea.vmem %s0, %s160
        %s162 = smul.u32 2, %s10
      $region32: #{transformer_block.6} parent=27 // pred_fallthru
        _
    $region28: #{transformer_block.6} parent=5 // pred_fallthru
      _
    %p163 = scmp.le.s32.totalorder 1, %s10
    %p164 = scmp.lt.s32.totalorder %s10, 3
    %p165 = pnand %p163, %p164
    %p166 = pneg %p165
    // Predicated region
    $region33: #{transformer_block.6} parent=5 // pred_check
      _
    $region34: #{transformer_block.6} parent=5 // pred_check_branch
      %168 = sbr.rel (%p165) target = $region36
    $region35: #{transformer_block.6} parent=5 // pred_region
      %s169 = ssub.s32 %s10, 1
      %s170 = smul.u32 2, %s15
      %p171 = scmp.lt.s32.totalorder %s170, 3
      %s172 = scalar_select %p171, %s170, 3
      %s173 = smul.addr %s172, 4
      %s174 = smul.addr %s173, 4
      %s175 = scalar_lea.vmem %s0, %s174
      %p176 = pneg %p36
      %p177 = pneg %p33
      %p178 = pneg %p57
      %p179 = pneg %p54
      %p180 = pneg %p78
      %p181 = pneg %p75
      %p182 = pneg %p99
      %p183 = pneg %p96
      %p184 = pneg %p125
      %p185 = pneg %p122
      %s186 = smul.u32 2, %s15
      %p187 = scmp.lt.s32.totalorder %s186, 3
      %s188 = scalar_select %p187, %s186, 3
      %s189 = smul.addr %s188, 2
      %s190 = smul.addr %s189, 4
      %s191 = scalar_lea.vmem %s4, %s190
      %s192 = smul.u32 2, %s15
      %p193 = scmp.lt.s32.totalorder %s192, 3
      %s194 = scalar_select %p193, %s192, 3
      %s195 = smul.addr %s194, 4
      %s196 = smul.addr %s195, 4
      %s197 = scalar_lea.vmem %s0, %s196
      %s198 = smul.u32 2, %s15
      %s199 = smul.u32 2, %s15
      %p200 = scmp.lt.s32.totalorder %s199, 3
      %s201 = scalar_select %p200, %s199, 3
      %s202 = smul.addr %s201, 2
      %s203 = smul.addr %s202, 4
      %s204 = scalar_lea.vmem %s4, %s203
      %s205 = smul.u32 2, %s15
      %v207 = vld [vmem:[%s1] sm:$0xff]
      %v208 = vld [vmem:[%s1 + $0x8] sm:$0xff]
      %v209 = vld [vmem:[%s2] sm:$0xff]
      %v210 = vld [vmem:[%s2 + $0x8] sm:$0xff]
      %v211 = vld [vmem:[%s3] sm:$0xff]
      %v212 = vld [vmem:[%s3 + $0x8] sm:$0xff]
      %v213 = vld [vmem:[%s197 + $0x8] sm:$0xf]
      %v214 = vld [vmem:[%s197 + $0x18] sm:$0xf]
      %v215 = vunpack.c.l.bf16 %v213
      %v216 = vunpack.c.l.bf16 %v214
      %v217 = vmul.f32 %v215, %v207
      %v218 = vmul.f32 %v216, %v208
      %221 = vrot.lane.b32.xlu0 %v209, 32
      %v222 = vpop.permute.xlu0 %221
      %223 = vrot.lane.b32.xlu0 %v210, 32
      %v224 = vpop.permute.xlu0 %223
      %v227 = vmul.f32 %v215, %v222
      %v228 = vmul.f32 %v216, %v224
      %231 = vrot.lane.b32.xlu0 %v227, 96
      %v232 = vpop.permute.xlu0 %231
      %233 = vrot.lane.b32.xlu0 %v228, 96
      %v234 = vpop.permute.xlu0 %233
      %v237 = vsub.f32 %v217, %v232
      %v238 = vsub.f32 %v218, %v234
      %241 = vrot.lane.b32.xlu0 %v207, 32
      %v242 = vpop.permute.xlu0 %241
      %243 = vrot.lane.b32.xlu0 %v208, 32
      %v244 = vpop.permute.xlu0 %243
      %v247 = vmul.f32 %v215, %v242
      %v248 = vmul.f32 %v216, %v244
      %v249 = vmul.f32 %v215, %v209
      %v250 = vmul.f32 %v216, %v210
      %253 = vrot.lane.b32.xlu0 %v249, 32
      %v254 = vpop.permute.xlu0 %253
      %255 = vrot.lane.b32.xlu0 %v250, 32
      %v256 = vpop.permute.xlu0 %255
      %v259 = vadd.f32 %v247, %v254
      %v260 = vadd.f32 %v248, %v256
      %vm261 = vcmask 261120
      %v262 = vsel %vm261, %v237, %v259
      %v263 = vsel %vm261, %v238, %v260
      %v264 = vpack.c.bf16 %v263, %v262
      %v265 = vld [vmem:[%s197 + $0xc] sm:$0xf]
      %v266 = vld [vmem:[%s197 + $0x1c] sm:$0xf]
      %v267 = vld [vmem:[%s197] sm:$0xf]
      %v268 = vld [vmem:[%s197 + $0x10] sm:$0xf]
      %v269 = vunpack.c.l.bf16 %v267
      %v270 = vunpack.c.l.bf16 %v268
      %v271 = vmul.f32 %v269, %v207
      %v272 = vmul.f32 %v270, %v208
      %v273 = vmul.f32 %v269, %v222
      %v274 = vmul.f32 %v270, %v224
      %277 = vrot.lane.b32.xlu0 %v273, 96
      %v278 = vpop.permute.xlu0 %277
      %279 = vrot.lane.b32.xlu0 %v274, 96
      %v280 = vpop.permute.xlu0 %279
      %v283 = vsub.f32 %v271, %v278
      %v284 = vsub.f32 %v272, %v280
      %v285 = vmul.f32 %v269, %v242
      %v286 = vmul.f32 %v270, %v244
      %v287 = vmul.f32 %v269, %v209
      %v288 = vmul.f32 %v270, %v210
      %291 = vrot.lane.b32.xlu0 %v287, 32
      %v292 = vpop.permute.xlu0 %291
      %293 = vrot.lane.b32.xlu0 %v288, 32
      %v294 = vpop.permute.xlu0 %293
      %v297 = vadd.f32 %v285, %v292
      %v298 = vadd.f32 %v286, %v294
      %v299 = vsel %vm261, %v283, %v297
      %v300 = vsel %vm261, %v284, %v298
      %v301 = vmul.f32 %v299, 0.125
      %v302 = vmul.f32 %v300, 0.125
      %v303 = vpack.c.bf16 %v302, %v301
      %vm304 = vcmask 523264
      %v306 = vsel %vm304, %v303, 0
      %v309 = vsel %vm304, %v264, 0
      %311 = vmatpush.bf16.xpose.msra.mxu0 0
      %312 = vmatpush.bf16.xpose.msra.mxu0 0
      %313 = vmatpush.bf16.xpose.msra.mxu0 0
      %314 = vmatpush.bf16.xpose.msra.mxu0 0
      %315 = vmatpush.bf16.xpose.msra.mxu0 0
      %316 = vmatpush.bf16.xpose.msra.mxu0 0
      %317 = vmatpush.bf16.xpose.msra.mxu0 0
      %318 = vmatpush.bf16.xpose.msra.mxu0 %v309
      %319 = vmatmul.bf16.gmra.mxu0 %v306
      %v320 = vpop.f32.mrf.mxu0
      %v321 = vadd.f32 %v211, %v320
      %v322 = vpop.f32.mrf.mxu0
      %v323 = vadd.f32 %v212, %v322
      %324 = vdwg.mxu0
      %vm325 = vcmask 130048
      %v326 = vsel %vm325, %v321, -inf
      %327 = vmax.xlane.f32.xlu0 %v326
      %v328 = vpop.xlane.xlu0 %327
      %v329 = vsel %vm325, %v323, -inf
      %330 = vmax.xlane.f32.xlu0 %v329
      %v331 = vpop.xlane.xlu0 %330
      %v332 = vsub.f32 %v321, %v328
      %v333 = vsub.f32 %v323, %v331
      %v334 = vmul.f32 %v332, 1.442695
      %v335 = vpow.pop %v334
      %v336 = vmul.f32 %v333, 1.442695
      %v337 = vpow.pop %v336
      %v338 = vsel %vm325, %v335, 0.0
      %339 = vadd.xlane.f32.xlu0 %v338
      %v340 = vpop.xlane.xlu0 %339
      %v341 = vsel %vm325, %v337, 0.0
      %342 = vadd.xlane.f32.xlu0 %v341
      %v343 = vpop.xlane.xlu0 %342
      %v344 = vrcp.pop %v340
      %v345 = vrcp.pop %v343
      %v346 = vmul.f32 %v335, %v344
      %v347 = vmul.f32 %v337, %v345
      %v348 = vpack.c.bf16 %v347, %v346
      %v351 = vunpack.c.l.b16 %v265
      %v352 = vunpack.c.l.b16 %v266
      %v353 = vpack.c.b16 %v352, %v351
      %v356 = vsel %vm325, %v348, 0
      %358 = vmatpush.bf16.msra.mxu0 0
      %359 = vmatpush.bf16.msra.mxu0 0
      %360 = vmatpush.bf16.msra.mxu0 0
      %361 = vmatpush.bf16.msra.mxu0 0
      %362 = vmatpush.bf16.msra.mxu0 0
      %363 = vmatpush.bf16.msra.mxu0 0
      %364 = vmatpush.bf16.msra.mxu0 0
      %365 = vmatpush.bf16.msra.mxu0 %v353
      %366 = vmatmul.bf16.gmra.mxu0 %v356
      %v367 = vpop.f32.mrf.mxu0
      %v368 = vadd.f32 0.0, %v367
      %v369 = vpop.f32.mrf.mxu0
      %v370 = vadd.f32 0.0, %v369
      %371 = vdwg.mxu0
      %372 = vrot.lane.b32.xlu0 %v207, 64
      %v373 = vpop.permute.xlu0 %372
      %374 = vrot.lane.b32.xlu0 %v208, 64
      %v375 = vpop.permute.xlu0 %374
      %v378 = vmul.f32 %v269, %v373
      %v379 = vmul.f32 %v270, %v375
      %380 = vrot.lane.b32.xlu0 %v209, 96
      %v381 = vpop.permute.xlu0 %380
      %382 = vrot.lane.b32.xlu0 %v210, 96
      %v383 = vpop.permute.xlu0 %382
      %v386 = vmul.f32 %v269, %v381
      %v387 = vmul.f32 %v270, %v383
      %390 = vrot.lane.b32.xlu0 %v386, 96
      %v391 = vpop.permute.xlu0 %390
      %392 = vrot.lane.b32.xlu0 %v387, 96
      %v393 = vpop.permute.xlu0 %392
      %v396 = vsub.f32 %v378, %v391
      %v397 = vsub.f32 %v379, %v393
      %398 = vrot.lane.b32.xlu0 %v207, 96
      %v399 = vpop.permute.xlu0 %398
      %400 = vrot.lane.b32.xlu0 %v208, 96
      %v401 = vpop.permute.xlu0 %400
      %v404 = vmul.f32 %v269, %v399
      %v405 = vmul.f32 %v270, %v401
      %406 = vrot.lane.b32.xlu0 %v209, 64
      %v407 = vpop.permute.xlu0 %406
      %408 = vrot.lane.b32.xlu0 %v210, 64
      %v409 = vpop.permute.xlu0 %408
      %v412 = vmul.f32 %v269, %v407
      %v413 = vmul.f32 %v270, %v409
      %416 = vrot.lane.b32.xlu0 %v412, 32
      %v417 = vpop.permute.xlu0 %416
      %418 = vrot.lane.b32.xlu0 %v413, 32
      %v419 = vpop.permute.xlu0 %418
      %v422 = vadd.f32 %v404, %v417
      %v423 = vadd.f32 %v405, %v419
      %426 = vrot.lane.b32.xlu0 %v396, 64
      %v427 = vpop.permute.xlu0 %426
      %428 = vrot.lane.b32.xlu0 %v397, 64
      %v429 = vpop.permute.xlu0 %428
      %434 = vrot.lane.b32.xlu0 %v422, 64
      %v435 = vpop.permute.xlu0 %434
      %436 = vrot.lane.b32.xlu0 %v423, 64
      %v437 = vpop.permute.xlu0 %436
      %v440 = vsel %vm261, %v427, %v435
      %v441 = vsel %vm261, %v429, %v437
      %v442 = vmul.f32 %v440, 0.125
      %v443 = vmul.f32 %v441, 0.125
      %v444 = vpack.c.bf16 %v443, %v442
      %v446 = vsel %vm304, %v444, 0
      %448 = vmatpush.bf16.xpose.msra.mxu0 0
      %449 = vmatpush.bf16.xpose.msra.mxu0 0
      %450 = vmatpush.bf16.xpose.msra.mxu0 0
      %451 = vmatpush.bf16.xpose.msra.mxu0 0
      %452 = vmatpush.bf16.xpose.msra.mxu0 0
      %453 = vmatpush.bf16.xpose.msra.mxu0 0
      %454 = vmatpush.bf16.xpose.msra.mxu0 0
      %455 = vmatpush.bf16.xpose.msra.mxu0 %v309
      %456 = vmatmul.bf16.gmra.mxu0 %v446
      %v457 = vpop.f32.mrf.mxu0
      %v458 = vadd.f32 %v211, %v457
      %v459 = vpop.f32.mrf.mxu0
      %v460 = vadd.f32 %v212, %v459
      %461 = vdwg.mxu0
      %v462 = vsel %vm325, %v458, -inf
      %463 = vmax.xlane.f32.xlu0 %v462
      %v464 = vpop.xlane.xlu0 %463
      %v465 = vsel %vm325, %v460, -inf
      %466 = vmax.xlane.f32.xlu0 %v465
      %v467 = vpop.xlane.xlu0 %466
      %v468 = vsub.f32 %v458, %v464
      %v469 = vsub.f32 %v460, %v467
      %v470 = vmul.f32 %v468, 1.442695
      %v471 = vpow.pop %v470
      %v472 = vmul.f32 %v469, 1.442695
      %v473 = vpow.pop %v472
      %v474 = vsel %vm325, %v471, 0.0
      %475 = vadd.xlane.f32.xlu0 %v474
      %v476 = vpop.xlane.xlu0 %475
      %v477 = vsel %vm325, %v473, 0.0
      %478 = vadd.xlane.f32.xlu0 %v477
      %v479 = vpop.xlane.xlu0 %478
      %v480 = vrcp.pop %v476
      %v481 = vrcp.pop %v479
      %v482 = vmul.f32 %v471, %v480
      %v483 = vmul.f32 %v473, %v481
      %v484 = vpack.c.bf16 %v483, %v482
      %v486 = vsel %vm325, %v484, 0
      %488 = vmatpush.bf16.msra.mxu0 0
      %489 = vmatpush.bf16.msra.mxu0 0
      %490 = vmatpush.bf16.msra.mxu0 0
      %491 = vmatpush.bf16.msra.mxu0 0
      %492 = vmatpush.bf16.msra.mxu0 0
      %493 = vmatpush.bf16.msra.mxu0 0
      %494 = vmatpush.bf16.msra.mxu0 0
      %495 = vmatpush.bf16.msra.mxu0 %v353
      %496 = vmatmul.bf16.gmra.mxu0 %v486
      %v497 = vpop.f32.mrf.mxu0
      %v498 = vadd.f32 0.0, %v497
      %v499 = vpop.f32.mrf.mxu0
      %v500 = vadd.f32 0.0, %v499
      %501 = vdwg.mxu0
      %v502 = vmul.f32 %v215, %v373
      %v503 = vmul.f32 %v216, %v375
      %v504 = vmul.f32 %v215, %v381
      %v505 = vmul.f32 %v216, %v383
      %508 = vrot.lane.b32.xlu0 %v504, 96
      %v509 = vpop.permute.xlu0 %508
      %510 = vrot.lane.b32.xlu0 %v505, 96
      %v511 = vpop.permute.xlu0 %510
      %v514 = vsub.f32 %v502, %v509
      %v515 = vsub.f32 %v503, %v511
      %v516 = vmul.f32 %v215, %v399
      %v517 = vmul.f32 %v216, %v401
      %v518 = vmul.f32 %v215, %v407
      %v519 = vmul.f32 %v216, %v409
      %522 = vrot.lane.b32.xlu0 %v518, 32
      %v523 = vpop.permute.xlu0 %522
      %524 = vrot.lane.b32.xlu0 %v519, 32
      %v525 = vpop.permute.xlu0 %524
      %v528 = vadd.f32 %v516, %v523
      %v529 = vadd.f32 %v517, %v525
      %532 = vrot.lane.b32.xlu0 %v514, 64
      %v533 = vpop.permute.xlu0 %532
      %534 = vrot.lane.b32.xlu0 %v515, 64
      %v535 = vpop.permute.xlu0 %534
      %540 = vrot.lane.b32.xlu0 %v528, 64
      %v541 = vpop.permute.xlu0 %540
      %542 = vrot.lane.b32.xlu0 %v529, 64
      %v543 = vpop.permute.xlu0 %542
      %v546 = vsel %vm261, %v533, %v541
      %v547 = vsel %vm261, %v535, %v543
      %v548 = vpack.c.bf16 %v547, %v546
      %v549 = vld [vmem:[%s197 + $0x4] sm:$0xf]
      %v550 = vld [vmem:[%s197 + $0x14] sm:$0xf]
      %v551 = vunpack.c.l.bf16 %v549
      %v552 = vunpack.c.l.bf16 %v550
      %v553 = vmul.f32 %v551, %v207
      %v554 = vmul.f32 %v552, %v208
      %v555 = vmul.f32 %v551, %v222
      %v556 = vmul.f32 %v552, %v224
      %559 = vrot.lane.b32.xlu0 %v555, 96
      %v560 = vpop.permute.xlu0 %559
      %561 = vrot.lane.b32.xlu0 %v556, 96
      %v562 = vpop.permute.xlu0 %561
      %v565 = vsub.f32 %v553, %v560
      %v566 = vsub.f32 %v554, %v562
      %v567 = vmul.f32 %v551, %v242
      %v568 = vmul.f32 %v552, %v244
      %v569 = vmul.f32 %v551, %v209
      %v570 = vmul.f32 %v552, %v210
      %573 = vrot.lane.b32.xlu0 %v569, 32
      %v574 = vpop.permute.xlu0 %573
      %575 = vrot.lane.b32.xlu0 %v570, 32
      %v576 = vpop.permute.xlu0 %575
      %v579 = vadd.f32 %v567, %v574
      %v580 = vadd.f32 %v568, %v576
      %v581 = vsel %vm261, %v565, %v579
      %v582 = vsel %vm261, %v566, %v580
      %v583 = vmul.f32 %v581, 0.125
      %v584 = vmul.f32 %v582, 0.125
      %v585 = vpack.c.bf16 %v584, %v583
      %v587 = vsel %vm304, %v585, 0
      %v590 = vsel %vm304, %v548, 0
      %592 = vmatpush.bf16.xpose.msra.mxu0 0
      %593 = vmatpush.bf16.xpose.msra.mxu0 0
      %594 = vmatpush.bf16.xpose.msra.mxu0 0
      %595 = vmatpush.bf16.xpose.msra.mxu0 0
      %596 = vmatpush.bf16.xpose.msra.mxu0 0
      %597 = vmatpush.bf16.xpose.msra.mxu0 0
      %598 = vmatpush.bf16.xpose.msra.mxu0 0
      %599 = vmatpush.bf16.xpose.msra.mxu0 %v590
      %600 = vmatmul.bf16.gmra.mxu0 %v587
      %v601 = vpop.f32.mrf.mxu0
      %v602 = vadd.f32 %v211, %v601
      %v603 = vpop.f32.mrf.mxu0
      %v604 = vadd.f32 %v212, %v603
      %605 = vdwg.mxu0
      %v606 = vsel %vm325, %v602, -inf
      %607 = vmax.xlane.f32.xlu0 %v606
      %v608 = vpop.xlane.xlu0 %607
      %v609 = vsel %vm325, %v604, -inf
      %610 = vmax.xlane.f32.xlu0 %v609
      %v611 = vpop.xlane.xlu0 %610
      %v612 = vsub.f32 %v602, %v608
      %v613 = vsub.f32 %v604, %v611
      %v614 = vmul.f32 %v612, 1.442695
      %v615 = vpow.pop %v614
      %v616 = vmul.f32 %v613, 1.442695
      %v617 = vpow.pop %v616
      %v618 = vsel %vm325, %v615, 0.0
      %619 = vadd.xlane.f32.xlu0 %v618
      %v620 = vpop.xlane.xlu0 %619
      %v621 = vsel %vm325, %v617, 0.0
      %622 = vadd.xlane.f32.xlu0 %v621
      %v623 = vpop.xlane.xlu0 %622
      %v624 = vrcp.pop %v620
      %v625 = vrcp.pop %v623
      %v626 = vmul.f32 %v615, %v624
      %v627 = vmul.f32 %v617, %v625
      %v628 = vpack.c.bf16 %v627, %v626
      %629 = vrot.lane.b32.xlu0 %v353, 64
      %v630 = vpop.permute.xlu0 %629
      %v633 = vsel %vm325, %v628, 0
      %635 = vmatpush.bf16.msra.mxu0 0
      %636 = vmatpush.bf16.msra.mxu0 0
      %637 = vmatpush.bf16.msra.mxu0 0
      %638 = vmatpush.bf16.msra.mxu0 0
      %639 = vmatpush.bf16.msra.mxu0 0
      %640 = vmatpush.bf16.msra.mxu0 0
      %641 = vmatpush.bf16.msra.mxu0 0
      %642 = vmatpush.bf16.msra.mxu0 %v630
      %643 = vmatmul.bf16.gmra.mxu0 %v633
      %v644 = vpop.f32.mrf.mxu0
      %v645 = vadd.f32 0.0, %v644
      %v646 = vpop.f32.mrf.mxu0
      %v647 = vadd.f32 0.0, %v646
      %648 = vdwg.mxu0
      %v649 = vmul.f32 %v551, %v373
      %v650 = vmul.f32 %v552, %v375
      %v651 = vmul.f32 %v551, %v381
      %v652 = vmul.f32 %v552, %v383
      %655 = vrot.lane.b32.xlu0 %v651, 96
      %v656 = vpop.permute.xlu0 %655
      %657 = vrot.lane.b32.xlu0 %v652, 96
      %v658 = vpop.permute.xlu0 %657
      %v661 = vsub.f32 %v649, %v656
      %v662 = vsub.f32 %v650, %v658
      %v663 = vmul.f32 %v551, %v399
      %v664 = vmul.f32 %v552, %v401
      %v665 = vmul.f32 %v551, %v407
      %v666 = vmul.f32 %v552, %v409
      %669 = vrot.lane.b32.xlu0 %v665, 32
      %v670 = vpop.permute.xlu0 %669
      %671 = vrot.lane.b32.xlu0 %v666, 32
      %v672 = vpop.permute.xlu0 %671
      %v675 = vadd.f32 %v663, %v670
      %v676 = vadd.f32 %v664, %v672
      %679 = vrot.lane.b32.xlu0 %v661, 64
      %v680 = vpop.permute.xlu0 %679
      %681 = vrot.lane.b32.xlu0 %v662, 64
      %v682 = vpop.permute.xlu0 %681
      %687 = vrot.lane.b32.xlu0 %v675, 64
      %v688 = vpop.permute.xlu0 %687
      %689 = vrot.lane.b32.xlu0 %v676, 64
      %v690 = vpop.permute.xlu0 %689
      %v693 = vsel %vm261, %v680, %v688
      %v694 = vsel %vm261, %v682, %v690
      %v695 = vmul.f32 %v693, 0.125
      %v696 = vmul.f32 %v694, 0.125
      %v697 = vpack.c.bf16 %v696, %v695
      %v699 = vsel %vm304, %v697, 0
      %701 = vmatpush.bf16.xpose.msra.mxu0 0
      %702 = vmatpush.bf16.xpose.msra.mxu0 0
      %703 = vmatpush.bf16.xpose.msra.mxu0 0
      %704 = vmatpush.bf16.xpose.msra.mxu0 0
      %705 = vmatpush.bf16.xpose.msra.mxu0 0
      %706 = vmatpush.bf16.xpose.msra.mxu0 0
      %707 = vmatpush.bf16.xpose.msra.mxu0 0
      %708 = vmatpush.bf16.xpose.msra.mxu0 %v590
      %709 = vmatmul.bf16.gmra.mxu0 %v699
      %v710 = vpop.f32.mrf.mxu0
      %v711 = vadd.f32 %v211, %v710
      %v712 = vpop.f32.mrf.mxu0
      %v713 = vadd.f32 %v212, %v712
      %714 = vdwg.mxu0
      %v715 = vsel %vm325, %v711, -inf
      %716 = vmax.xlane.f32.xlu0 %v715
      %v717 = vpop.xlane.xlu0 %716
      %v718 = vsel %vm325, %v713, -inf
      %719 = vmax.xlane.f32.xlu0 %v718
      %v720 = vpop.xlane.xlu0 %719
      %v721 = vsub.f32 %v711, %v717
      %v722 = vsub.f32 %v713, %v720
      %v723 = vmul.f32 %v721, 1.442695
      %v724 = vpow.pop %v723
      %v725 = vmul.f32 %v722, 1.442695
      %v726 = vpow.pop %v725
      %v727 = vsel %vm325, %v724, 0.0
      %728 = vadd.xlane.f32.xlu0 %v727
      %v729 = vpop.xlane.xlu0 %728
      %v730 = vsel %vm325, %v726, 0.0
      %731 = vadd.xlane.f32.xlu0 %v730
      %v732 = vpop.xlane.xlu0 %731
      %v733 = vrcp.pop %v729
      %v734 = vrcp.pop %v732
      %v735 = vmul.f32 %v724, %v733
      %v736 = vmul.f32 %v726, %v734
      %v737 = vpack.c.bf16 %v736, %v735
      %v739 = vsel %vm325, %v737, 0
      %741 = vmatpush.bf16.msra.mxu0 0
      %742 = vmatpush.bf16.msra.mxu0 0
      %743 = vmatpush.bf16.msra.mxu0 0
      %744 = vmatpush.bf16.msra.mxu0 0
      %745 = vmatpush.bf16.msra.mxu0 0
      %746 = vmatpush.bf16.msra.mxu0 0
      %747 = vmatpush.bf16.msra.mxu0 0
      %748 = vmatpush.bf16.msra.mxu0 %v630
      %749 = vmatmul.bf16.gmra.mxu0 %v739
      %v750 = vpop.f32.mrf.mxu0
      %v751 = vadd.f32 0.0, %v750
      %v752 = vpop.f32.mrf.mxu0
      %v753 = vadd.f32 0.0, %v752
      %754 = vdwg.mxu0
      %757 = vrot.lane.b32.xlu0 %v498, 64
      %v758 = vpop.permute.xlu0 %757
      %759 = vrot.lane.b32.xlu0 %v500, 64
      %v760 = vpop.permute.xlu0 %759
      %765 = vrot.lane.b32.xlu0 %v751, 64
      %v766 = vpop.permute.xlu0 %765
      %767 = vrot.lane.b32.xlu0 %v753, 64
      %v768 = vpop.permute.xlu0 %767
      %v771 = vsel %vm304, %v368, %v758
      %v772 = vsel %vm304, %v370, %v760
      %v773 = vsel %vm304, %v645, %v766
      %v774 = vsel %vm304, %v647, %v768
      %v775 = vpack.c.bf16 %v773, %v771
      %v776 = vpack.c.bf16 %v774, %v772
      %777 = vst [vmem:[%s204] sm:$0xff] %v775
      %778 = vst [vmem:[%s204 + $0x8] sm:$0xff] %v776
      %s779 = smul.u32 2, %s15
      %p780 = scmp.lt.s32.totalorder %s779, 3
      %s781 = scalar_select %p780, %s779, 3
      %s782 = smul.addr %s781, 2
      %s783 = smul.addr %s782, 4
      %s784 = scalar_lea.vmem %s4, %s783
      // Predicated region
      $region37: #{transformer_block.6} parent=35 // pred_check
        %p785 = pneg %p122
      $region38: #{transformer_block.6} parent=35 // pred_check_branch
        %787 = sbr.rel (%p785) target = $region40
      $region39: #{transformer_block.6} parent=35 // pred_region
        %s788 = smul.u32 2, %s15
      $region40: #{transformer_block.6} parent=35 // pred_fallthru
        _
    $region36: #{transformer_block.6} parent=5 // pred_fallthru
      _
    %p789 = scmp.le.s32.totalorder 2, %s10
    // Predicated region
    $region41: #{transformer_block.6} parent=5 // pred_check
      %p790 = pneg %p789
    $region42: #{transformer_block.6} parent=5 // pred_check_branch
      %792 = sbr.rel (%p790) target = $region44
    $region43: #{transformer_block.6} parent=5 // pred_region
      %s793 = ssub.s32 %s10, 2
      // Predicated region
      $region45: #{transformer_block.6} parent=43 // pred_check
        %p794 = pneg %p128
      $region46: #{transformer_block.6} parent=43 // pred_check_branch
        %796 = sbr.rel (%p794) target = $region48
      $region47: #{transformer_block.6} parent=43 // pred_region
        %s797 = smul.u32 2, %s16
        %p798 = scmp.lt.s32.totalorder %s797, 3
        %s799 = scalar_select %p798, %s797, 3
        %s800 = smul.addr %s799, 2
        %s801 = smul.addr %s800, 4
        %s802 = scalar_lea.vmem %s4, %s801
      $region48: #{transformer_block.6} parent=43 // pred_fallthru
        _
    $region44: #{transformer_block.6} parent=5 // pred_fallthru
      _
  $region6: #{transformer_block.6} parent=0 // loop_footer
    %s14 = sadd.s32 1, %s10
  $region7: #{transformer_block.6} parent=0 // loop_footer_branch
    %9 = sbr.rel target = $region3
  $region8: #{transformer_block.6} parent=0 // loop_exit
    _

// kernel: transformer_block.8
$region0: #{transformer_block.8}
  #allocation0 [shape = 'u32[]', space=smem, size = 0x4, offset = 0x4, fixed_abs, tag = 'smem constant byte address 0x4 - core index']
  #allocation1 [shape = 'u32[72,128]{1,0:T(1,128)}', space=vmem, size = 0x9000, scoped, tag = 'internal scratch']
  #allocation2 [shape = 'bf16[32,256]{1,0:T(8,128)(2,1)}', space=vmem, size = 0x4000, scoped, tag = 'scratch operand']
  %s0 = inlined_call_operand.vmem [shape: f32[32,256], index: 0, kind: input, shape index: {}]
  %s1 = inlined_call_operand.vmem [shape: f32[1,256], index: 1, kind: input, shape index: {}]
  %s2 = inlined_call_operand.hbm [shape: bf16[256,512], index: 2, kind: input, shape index: {}]
  %s3 = inlined_call_operand.hbm [shape: bf16[256,512], index: 3, kind: input, shape index: {}]
  %s4 = inlined_call_operand.vmem [shape: bf16[32,512], index: 4, kind: output, shape index: {}]
  %s5 = sld [smem:[#allocation0]]
  $region95: #{transformer_block.8} parent=0
    _
  %s7 = ssub.s32 1, %s5
  %s8 = scalar_select 0, %s7, %s5
  $region1: #{transformer_block.8} parent=0
    #allocation3 [shape = 'u8[262144]{0}', space=vmem, size = 0x40000, scoped, tag = 'input window, operand 2']
    #allocation4 [shape = 's32[2]{0}', space=sflag, size = 0x8, scoped, tag = 'scoped memory for transformer_block.8']
    #allocation5 [shape = 'u8[262144]{0}', space=vmem, size = 0x40000, scoped, tag = 'input window, operand 3']
    #allocation6 [shape = 's32[2]{0}', space=sflag, size = 0x8, scoped, tag = 'scoped memory for transformer_block.8']
    #allocation7 [shape = 'u8[32768]{0}', space=vmem, size = 0x8000, scoped, tag = 'output window, operand 0']
    %9 = vsyncpa [#allocation4], 0
    %s10 = scalar_lea.sflag [#allocation4], 1
    %11 = vsyncpa %s10, 0
    %12 = vsyncpa [#allocation6], 0
    %s13 = scalar_lea.sflag [#allocation6], 1
    %14 = vsyncpa %s13, 0
    loop: start=0, step=1, limit=4
    $region2: #{transformer_block.8} parent=1 // loop_pre_header
      _
    $region3: #{transformer_block.8} parent=1 // loop_header
      %s16 = sphi 0, %s20
      %p17 = scmp.ge.s32.totalorder %s16, 4
      %s23 = sphi 0, %s35
      %s24 = sphi 0, %s31
      %s25 = sphi 0, %s23
      %s26 = sphi 0, %s24
      %s27 = sphi 0, %s25
      %s28 = sphi 0, %s26
      %s38 = sphi 0, %s40
      %s41 = sphi 0, %s38
      %s42 = sphi 0, %s41
      %s58 = sphi 0, %s42
      %s62 = sphi 0, %s62
      %s64 = sphi 0, %s62
      %s65 = sphi 0, %s64
      %s79 = sphi 0, %s65
      %s85 = sphi 0, %s87
      %s88 = sphi 0, %s85
      %s89 = sphi 0, %s88
      %s105 = sphi 0, %s89
      %s111 = sphi 0, %s113
      %s114 = sphi 0, %s111
      %s115 = sphi 0, %s114
      %s131 = sphi 0, %s115
      %s139 = sphi 0, %s141
      %s142 = sphi 0, %s139
      %s143 = sphi 0, %s142
      %s159 = sphi 0, %s143
    $region4: #{transformer_block.8} parent=1 // loop_header_branch
      %19 = sbr.rel (%p17) target = $region8
    $region5: #{transformer_block.8} parent=1 // loop_body
      %s21 = ssub.s32 %s16, 1
      %s22 = ssub.s32 %s16, 2
      %s29 = sadd.s32 1, %s24
      %p30 = scmp.ge.s32.totalorder %s29, 2
      %s31 = scalar_select %p30, 0, %s29
      %s32 = sadd.s32 1, %s23
      %s33 = scalar_select %p30, %s32, %s23
      %p34 = scmp.ge.s32.totalorder %s33, 1
      %s35 = scalar_select %p34, 0, %s33
      %s36 = ssub.s32 %s23, %s35
      %p37 = scmp.eq.s32.totalorder %s36, 0
      %s39 = sadd.s32 %s38, 1
      %s40 = scalar_select %p37, %s38, %s39
      %p43 = pneg %p37
      %p44 = scmp.eq.s32.totalorder %s16, 1
      %p45 = por %p43, %p44
      %p46 = scmp.ne.s32.totalorder %s38, %s41
      %p47 = scmp.eq.s32.totalorder %s16, 0
      %p48 = por %p46, %p47
      %p49 = scmp.ne.s32.totalorder %s38, %s41
      %p50 = scmp.eq.s32.totalorder %s21, 1
      %p51 = por %p49, %p50
      %p52 = scmp.ne.s32.totalorder %s41, %s42
      %p53 = scmp.eq.s32.totalorder %s21, 0
      %p54 = por %p52, %p53
      %p55 = scmp.ne.s32.totalorder %s41, %s42
      %p56 = scmp.eq.s32.totalorder %s22, 1
      %p57 = por %p55, %p56
      %p59 = scmp.ne.s32.totalorder %s42, %s58
      %p60 = scmp.eq.s32.totalorder %s22, 0
      %p61 = por %p59, %p60
      %s63 = sadd.s32 %s62, 1
      %p66 = scmp.eq.s32.totalorder %s16, 1
      %p67 = scmp.ne.s32.totalorder %s62, %s64
      %p68 = scmp.eq.s32.totalorder %s16, 0
      %p69 = por %p67, %p68
      %p70 = scmp.ne.s32.totalorder %s62, %s64
      %p71 = scmp.eq.s32.totalorder %s21, 1
      %p72 = por %p70, %p71
      %p73 = scmp.ne.s32.totalorder %s64, %s65
      %p74 = scmp.eq.s32.totalorder %s21, 0
      %p75 = por %p73, %p74
      %p76 = scmp.ne.s32.totalorder %s64, %s65
      %p77 = scmp.eq.s32.totalorder %s22, 1
      %p78 = por %p76, %p77
      %p80 = scmp.ne.s32.totalorder %s65, %s79
      %p81 = scmp.eq.s32.totalorder %s22, 0
      %p82 = por %p80, %p81
      %s83 = ssub.s32 %s24, %s31
      %p84 = scmp.eq.s32.totalorder %s83, 0
      %s86 = sadd.s32 %s85, 1
      %s87 = scalar_select %p84, %s85, %s86
      %p90 = pneg %p84
      %p91 = scmp.eq.s32.totalorder %s16, 1
      %p92 = por %p90, %p91
      %p93 = scmp.ne.s32.totalorder %s85, %s88
      %p94 = scmp.eq.s32.totalorder %s16, 0
      %p95 = por %p93, %p94
      %p96 = scmp.ne.s32.totalorder %s85, %s88
      %p97 = scmp.eq.s32.totalorder %s21, 1
      %p98 = por %p96, %p97
      %p99 = scmp.ne.s32.totalorder %s88, %s89
      %p100 = scmp.eq.s32.totalorder %s21, 0
      %p101 = por %p99, %p100
      %p102 = scmp.ne.s32.totalorder %s88, %s89
      %p103 = scmp.eq.s32.totalorder %s22, 1
      %p104 = por %p102, %p103
      %p106 = scmp.ne.s32.totalorder %s89, %s105
      %p107 = scmp.eq.s32.totalorder %s22, 0
      %p108 = por %p106, %p107
      %s109 = ssub.s32 %s24, %s31
      %p110 = scmp.eq.s32.totalorder %s109, 0
      %s112 = sadd.s32 %s111, 1
      %s113 = scalar_select %p110, %s111, %s112
      %p116 = pneg %p110
      %p117 = scmp.eq.s32.totalorder %s16, 1
      %p118 = por %p116, %p117
      %p119 = scmp.ne.s32.totalorder %s111, %s114
      %p120 = scmp.eq.s32.totalorder %s16, 0
      %p121 = por %p119, %p120
      %p122 = scmp.ne.s32.totalorder %s111, %s114
      %p123 = scmp.eq.s32.totalorder %s21, 1
      %p124 = por %p122, %p123
      %p125 = scmp.ne.s32.totalorder %s114, %s115
      %p126 = scmp.eq.s32.totalorder %s21, 0
      %p127 = por %p125, %p126
      %p128 = scmp.ne.s32.totalorder %s114, %s115
      %p129 = scmp.eq.s32.totalorder %s22, 1
      %p130 = por %p128, %p129
      %p132 = scmp.ne.s32.totalorder %s115, %s131
      %p133 = scmp.eq.s32.totalorder %s22, 0
      %p134 = por %p132, %p133
      %s135 = ssub.s32 %s23, %s35
      %s136 = ssub.s32 %s24, %s31
      %s137 = sor.u32 %s135, %s136
      %p138 = scmp.eq.s32.totalorder %s137, 0
      %s140 = sadd.s32 %s139, 1
      %s141 = scalar_select %p138, %s139, %s140
      %p144 = pneg %p138
      %p145 = scmp.eq.s32.totalorder %s16, 1
      %p146 = por %p144, %p145
      %p147 = scmp.ne.s32.totalorder %s139, %s142
      %p148 = scmp.eq.s32.totalorder %s16, 0
      %p149 = por %p147, %p148
      %p150 = scmp.ne.s32.totalorder %s139, %s142
      %p151 = scmp.eq.s32.totalorder %s21, 1
      %p152 = por %p150, %p151
      %p153 = scmp.ne.s32.totalorder %s142, %s143
      %p154 = scmp.eq.s32.totalorder %s21, 0
      %p155 = por %p153, %p154
      %p156 = scmp.ne.s32.totalorder %s142, %s143
      %p157 = scmp.eq.s32.totalorder %s22, 1
      %p158 = por %p156, %p157
      %p160 = scmp.ne.s32.totalorder %s143, %s159
      %p161 = scmp.eq.s32.totalorder %s22, 0
      %p162 = por %p160, %p161
      %p163 = scmp.le.s32.totalorder 1, %s16
      %p164 = scmp.lt.s32.totalorder %s16, 3
      %p165 = pnand %p163, %p164
      %p166 = pneg %p165
      // Predicated region
      $region9: #{transformer_block.8} parent=5 // pred_check
        _
      $region10: #{transformer_block.8} parent=5 // pred_check_branch
        %168 = sbr.rel (%p165) target = $region12
      $region11: #{transformer_block.8} parent=5 // pred_region
        %s169 = ssub.s32 %s16, 1
        // Predicated region
        $region13: #{transformer_block.8} parent=11 // pred_check
          %p170 = pneg %p54
        $region14: #{transformer_block.8} parent=11 // pred_check_branch
          %172 = sbr.rel (%p170) target = $region16
        $region15: #{transformer_block.8} parent=11 // pred_region
          %s173 = smul.u32 4, %s25
          %p174 = scmp.lt.s32.totalorder %s173, 3
          %s175 = scalar_select %p174, %s173, 3
          %s176 = smul.addr %s175, 2
          %s177 = smul.addr %s176, 8
          %s178 = scalar_lea.vmem %s0, %s177
          %s179 = smul.u32 4, %s25
        $region16: #{transformer_block.8} parent=11 // pred_fallthru
          _
        // Predicated region
        $region17: #{transformer_block.8} parent=11 // pred_check
          %p180 = pneg %p75
        $region18: #{transformer_block.8} parent=11 // pred_check_branch
          %182 = sbr.rel (%p180) target = $region20
        $region19: #{transformer_block.8} parent=11 // pred_region
          _
        $region20: #{transformer_block.8} parent=11 // pred_fallthru
          _
      $region12: #{transformer_block.8} parent=5 // pred_fallthru
        _
      %p183 = scmp.lt.s32.totalorder %s16, 2
      // Predicated region
      $region21: #{transformer_block.8} parent=5 // pred_check
        %p184 = pneg %p183
      $region22: #{transformer_block.8} parent=5 // pred_check_branch
        %186 = sbr.rel (%p184) target = $region24
      $region23: #{transformer_block.8} parent=5 // pred_region
        // Predicated region
        $region25: #{transformer_block.8} parent=23 // pred_check
          %p187 = pneg %p95
        $region26: #{transformer_block.8} parent=23 // pred_check_branch
          %189 = sbr.rel (%p187) target = $region28
        $region27: #{transformer_block.8} parent=23 // pred_region
          %s190 = sand.u32 %s85, 1
          %s191 = scalar_lea.sflag [#allocation4], %s190
          %s192 = sand.u32 %s85, 1
          %s193 = smul.addr %s192, 256
          %s194 = scalar_lea.vmem [#allocation3], %s193
          %s195 = smul.u32 2, %s24
          %197 = vsyncadd %s191, 0
          %s198 = smul.addr %s195, 4
          %s199 = scalar_lea.hbm %s2, %s198
          %s200 = sshll.u32 %s199, 4
          %s201 = int_to_ptr.hbm [resolvable:$true] %s200
          %s202 = sshll.u32 %s194, 4
          %s203 = int_to_ptr.vmem [resolvable:$true] %s202
          %208 = dma.hbm_to_vmem [thread:$0]  %s201, 4096, %s203, %s191, 256, 128, 8
        $region28: #{transformer_block.8} parent=23 // pred_fallthru
          _
        // Predicated region
        $region29: #{transformer_block.8} parent=23 // pred_check
          %p209 = pneg %p121
        $region30: #{transformer_block.8} parent=23 // pred_check_branch
          %211 = sbr.rel (%p209) target = $region32
        $region31: #{transformer_block.8} parent=23 // pred_region
          %s212 = sand.u32 %s111, 1
          %s213 = scalar_lea.sflag [#allocation6], %s212
          %s214 = sand.u32 %s111, 1
          %s215 = smul.addr %s214, 256
          %s216 = scalar_lea.vmem [#allocation5], %s215
          %s217 = smul.u32 2, %s24
          %219 = vsyncadd %s213, 0
          %s220 = smul.addr %s217, 4
          %s221 = scalar_lea.hbm %s3, %s220
          %s222 = sshll.u32 %s221, 4
          %s223 = int_to_ptr.hbm [resolvable:$true] %s222
          %s224 = sshll.u32 %s216, 4
          %s225 = int_to_ptr.vmem [resolvable:$true] %s224
          %230 = dma.hbm_to_vmem [thread:$0]  %s223, 4096, %s225, %s213, 256, 128, 8
        $region32: #{transformer_block.8} parent=23 // pred_fallthru
          _
      $region24: #{transformer_block.8} parent=5 // pred_fallthru
        _
      %p231 = scmp.le.s32.totalorder 1, %s16
      %p232 = scmp.lt.s32.totalorder %s16, 3
      %p233 = pnand %p231, %p232
      %p234 = pneg %p233
      // Predicated region
      $region33: #{transformer_block.8} parent=5 // pred_check
        _
      $region34: #{transformer_block.8} parent=5 // pred_check_branch
        %236 = sbr.rel (%p233) target = $region36
      $region35: #{transformer_block.8} parent=5 // pred_region
        %s237 = ssub.s32 %s16, 1
        %s238 = sand.u32 %s88, 1
        %s239 = scalar_lea.sflag [#allocation4], %s238
        %s240 = sand.u32 %s88, 1
        %s241 = smul.addr %s240, 256
        %s242 = scalar_lea.vmem [#allocation3], %s241
        // Predicated region
        $region37: #{transformer_block.8} parent=35 // pred_check
          %p243 = pneg %p101
        $region38: #{transformer_block.8} parent=35 // pred_check_branch
          %245 = sbr.rel (%p243) target = $region40
        $region39: #{transformer_block.8} parent=35 // pred_region
          %247 = dma.done %s239, 4096
        $region40: #{transformer_block.8} parent=35 // pred_fallthru
          _
        %s248 = sand.u32 %s114, 1
        %s249 = scalar_lea.sflag [#allocation6], %s248
        %s250 = sand.u32 %s114, 1
        %s251 = smul.addr %s250, 256
        %s252 = scalar_lea.vmem [#allocation5], %s251
        // Predicated region
        $region41: #{transformer_block.8} parent=35 // pred_check
          %p253 = pneg %p127
        $region42: #{transformer_block.8} parent=35 // pred_check_branch
          %255 = sbr.rel (%p253) target = $region44
        $region43: #{transformer_block.8} parent=35 // pred_region
          %257 = dma.done %s249, 4096
        $region44: #{transformer_block.8} parent=35 // pred_fallthru
          _
        %s258 = smul.u32 4, %s25
        %p259 = scmp.lt.s32.totalorder %s258, 3
        %s260 = scalar_select %p259, %s258, 3
        %s261 = smul.addr %s260, 2
        %s262 = smul.addr %s261, 8
        %s263 = scalar_lea.vmem %s0, %s262
        %p264 = pneg %p54
        %p265 = pneg %p51
        %p266 = pneg %p75
        %p267 = pneg %p72
        %s268 = sand.u32 %s88, 1
        %s269 = scalar_lea.sflag [#allocation4], %s268
        %s270 = sand.u32 %s88, 1
        %s271 = smul.addr %s270, 256
        %s272 = scalar_lea.vmem [#allocation3], %s271
        %p273 = pneg %p101
        %p274 = pneg %p98
        %s275 = sand.u32 %s114, 1
        %s276 = scalar_lea.sflag [#allocation6], %s275
        %s277 = sand.u32 %s114, 1
        %s278 = smul.addr %s277, 256
        %s279 = scalar_lea.vmem [#allocation5], %s278
        %p280 = pneg %p127
        %p281 = pneg %p124
        %p282 = pneg %p155
        %p283 = pneg %p152
        %s284 = sand.u32 %s142, 1
        %s285 = sand.u32 %s142, 1
        %s286 = smul.addr %s285, 32
        %s287 = scalar_lea.vmem [#allocation7], %s286
        %s288 = smul.u32 4, %s25
        %p289 = scmp.lt.s32.totalorder %s288, 3
        %s290 = scalar_select %p289, %s288, 3
        %s291 = smul.addr %s290, 2
        %s292 = smul.addr %s291, 8
        %s293 = scalar_lea.vmem %s0, %s292
        %s294 = smul.u32 4, %s25
        %s295 = smul.u32 2, %s26
        %s296 = smul.u32 2, %s26
        %s297 = smul.u32 4, %s25
        %s298 = smul.u32 2, %s26
        %p299 = scmp.eq.s32.totalorder %s26, 0
        // Predicated region
        $region45: #{transformer_block.8} parent=35 // pred_check
          %p300 = pneg %p299
        $region46: #{transformer_block.8} parent=35 // pred_check_branch
          %302 = sbr.rel (%p300) target = $region48
        $region47: #{transformer_block.8} parent=35 // pred_region
          %v303 = vld [vmem:[%s293] sm:$0xff]
          %v304 = vld [vmem:[%s293 + $0x8] sm:$0xff]
          %v305 = vld [vmem:[%s293 + $0x10] sm:$0xff]
          %v306 = vld [vmem:[%s293 + $0x18] sm:$0xff]
          %v307 = vld [vmem:[%s293 + $0x20] sm:$0xff]
          %v308 = vld [vmem:[%s293 + $0x28] sm:$0xff]
          %v309 = vld [vmem:[%s293 + $0x30] sm:$0xff]
          %v310 = vld [vmem:[%s293 + $0x38] sm:$0xff]
          %v311 = vmul.f32 %v303, %v303
          %v312 = vmul.f32 %v304, %v304
          %v313 = vmul.f32 %v305, %v305
          %v314 = vmul.f32 %v306, %v306
          %v315 = vmul.f32 %v307, %v307
          %v316 = vmul.f32 %v308, %v308
          %v317 = vmul.f32 %v309, %v309
          %v318 = vmul.f32 %v310, %v310
          %v319 = vadd.f32 %v311, %v312
          %320 = vadd.xlane.f32.xlu0 %v319
          %v321 = vpop.xlane.xlu0 %320
          %v322 = vadd.f32 %v313, %v314
          %323 = vadd.xlane.f32.xlu0 %v322
          %v324 = vpop.xlane.xlu0 %323
          %v325 = vadd.f32 %v315, %v316
          %326 = vadd.xlane.f32.xlu0 %v325
          %v327 = vpop.xlane.xlu0 %326
          %v328 = vadd.f32 %v317, %v318
          %329 = vadd.xlane.f32.xlu0 %v328
          %v330 = vpop.xlane.xlu0 %329
          %v331 = vmul.f32 %v321, 0.00390625
          %v332 = vmul.f32 %v324, 0.00390625
          %v333 = vmul.f32 %v327, 0.00390625
          %v334 = vmul.f32 %v330, 0.00390625
          %v335 = vadd.f32 %v331, 1e-05
          %v336 = vadd.f32 %v332, 1e-05
          %v337 = vadd.f32 %v333, 1e-05
          %v338 = vadd.f32 %v334, 1e-05
          %v339 = vrsqrt.pop %v335
          %v340 = vmul.f32 %v339, %v335
          %v341 = vmul.f32 %v340, %v339
          %v342 = vmul.f32 0.5, %v341
          %v343 = vsub.f32 1.5, %v342
          %v344 = vmul.f32 %v339, %v343
          %vm345 = vweird.f32 %v335
          %vm346 = vweird.f32 %v339
          %vm347 = vmor %vm345, %vm346
          %v348 = vsel %vm347, %v339, %v344
          %v349 = vrsqrt.pop %v336
          %v350 = vmul.f32 %v349, %v336
          %v351 = vmul.f32 %v350, %v349
          %v352 = vmul.f32 0.5, %v351
          %v353 = vsub.f32 1.5, %v352
          %v354 = vmul.f32 %v349, %v353
          %vm355 = vweird.f32 %v336
          %vm356 = vweird.f32 %v349
          %vm357 = vmor %vm355, %vm356
          %v358 = vsel %vm357, %v349, %v354
          %v359 = vrsqrt.pop %v337
          %v360 = vmul.f32 %v359, %v337
          %v361 = vmul.f32 %v360, %v359
          %v362 = vmul.f32 0.5, %v361
          %v363 = vsub.f32 1.5, %v362
          %v364 = vmul.f32 %v359, %v363
          %vm365 = vweird.f32 %v337
          %vm366 = vweird.f32 %v359
          %vm367 = vmor %vm365, %vm366
          %v368 = vsel %vm367, %v359, %v364
          %v369 = vrsqrt.pop %v338
          %v370 = vmul.f32 %v369, %v338
          %v371 = vmul.f32 %v370, %v369
          %v372 = vmul.f32 0.5, %v371
          %v373 = vsub.f32 1.5, %v372
          %v374 = vmul.f32 %v369, %v373
          %vm375 = vweird.f32 %v338
          %vm376 = vweird.f32 %v369
          %vm377 = vmor %vm375, %vm376
          %v378 = vsel %vm377, %v369, %v374
          %v379 = vmul.f32 %v303, %v348
          %v380 = vmul.f32 %v304, %v348
          %v381 = vmul.f32 %v305, %v358
          %v382 = vmul.f32 %v306, %v358
          %v383 = vmul.f32 %v307, %v368
          %v384 = vmul.f32 %v308, %v368
          %v385 = vmul.f32 %v309, %v378
          %v386 = vmul.f32 %v310, %v378
          %v387 = vld [vmem:[%s1] sm:$0x3]
          %v389 = vperm.slane %v387, 0
          %v390 = vperm.slane %v387, 1
          %v393 = vmul.f32 %v379, %v389
          %v394 = vmul.f32 %v380, %v390
          %v395 = vmul.f32 %v381, %v389
          %v396 = vmul.f32 %v382, %v390
          %v397 = vmul.f32 %v383, %v389
          %v398 = vmul.f32 %v384, %v390
          %v399 = vmul.f32 %v385, %v389
          %v400 = vmul.f32 %v386, %v390
          %v401 = vpack.c.bf16 %v394, %v393
          %v402 = vpack.c.bf16 %v396, %v395
          %v403 = vpack.c.bf16 %v398, %v397
          %v404 = vpack.c.bf16 %v400, %v399
          %405 = vst [vmem:[#allocation2] sm:$0xff] %v401
          %406 = vst [vmem:[#allocation2 + $0x8] sm:$0xff] %v402
          %407 = vst [vmem:[#allocation2 + $0x10] sm:$0xff] %v403
          %408 = vst [vmem:[#allocation2 + $0x18] sm:$0xff] %v404
        $region48: #{transformer_block.8} parent=35 // pred_fallthru
          _
        %v409 = vld [vmem:[#allocation2] sm:$0xff]
        %v410 = vld [vmem:[#allocation2 + $0x8] sm:$0xff]
        %v411 = vld [vmem:[#allocation2 + $0x10] sm:$0xff]
        %v412 = vld [vmem:[#allocation2 + $0x18] sm:$0xff]
        %v413 = vld [vmem:[%s242] sm:$0xff]
        %v414 = vld [vmem:[%s242 + $0x8] sm:$0xff]
        %v415 = vld [vmem:[%s242 + $0x10] sm:$0xff]
        %v416 = vld [vmem:[%s242 + $0x18] sm:$0xff]
        %v417 = vld [vmem:[%s242 + $0x20] sm:$0xff]
        %v418 = vld [vmem:[%s242 + $0x28] sm:$0xff]
        %v419 = vld [vmem:[%s242 + $0x30] sm:$0xff]
        %v420 = vld [vmem:[%s242 + $0x38] sm:$0xff]
        %v421 = vld [vmem:[%s242 + $0x40] sm:$0xff]
        %v422 = vld [vmem:[%s242 + $0x48] sm:$0xff]
        %v423 = vld [vmem:[%s242 + $0x50] sm:$0xff]
        %v424 = vld [vmem:[%s242 + $0x58] sm:$0xff]
        %v425 = vld [vmem:[%s242 + $0x60] sm:$0xff]
        %v426 = vld [vmem:[%s242 + $0x68] sm:$0xff]
        %v427 = vld [vmem:[%s242 + $0x70] sm:$0xff]
        %v428 = vld [vmem:[%s242 + $0x78] sm:$0xff]
        %v429 = vld [vmem:[%s242 + $0x80] sm:$0xff]
        %v430 = vld [vmem:[%s242 + $0x88] sm:$0xff]
        %v431 = vld [vmem:[%s242 + $0x90] sm:$0xff]
        %v432 = vld [vmem:[%s242 + $0x98] sm:$0xff]
        %v433 = vld [vmem:[%s242 + $0xa0] sm:$0xff]
        %v434 = vld [vmem:[%s242 + $0xa8] sm:$0xff]
        %v435 = vld [vmem:[%s242 + $0xb0] sm:$0xff]
        %v436 = vld [vmem:[%s242 + $0xb8] sm:$0xff]
        %v437 = vld [vmem:[%s242 + $0xc0] sm:$0xff]
        %v438 = vld [vmem:[%s242 + $0xc8] sm:$0xff]
        %v439 = vld [vmem:[%s242 + $0xd0] sm:$0xff]
        %v440 = vld [vmem:[%s242 + $0xd8] sm:$0xff]
        %v441 = vld [vmem:[%s242 + $0xe0] sm:$0xff]
        %v442 = vld [vmem:[%s242 + $0xe8] sm:$0xff]
        %v443 = vld [vmem:[%s242 + $0xf0] sm:$0xff]
        %v444 = vld [vmem:[%s242 + $0xf8] sm:$0xff]
        %v449 = vunpack.c.l.b16 %v409
        %v450 = vunpack.c.h.b16 %v409
        %v451 = vunpack.c.l.b16 %v410
        %v452 = vunpack.c.h.b16 %v410
        %v453 = vunpack.c.l.b16 %v411
        %v454 = vunpack.c.h.b16 %v411
        %v455 = vunpack.c.l.b16 %v412
        %v456 = vunpack.c.h.b16 %v412
        %v457 = vpack.c.b16 %v451, %v449
        %v458 = vpack.c.b16 %v452, %v450
        %v459 = vpack.c.b16 %v455, %v453
        %v460 = vpack.c.b16 %v456, %v454
        %v497 = vunpack.c.l.b16 %v413
        %v498 = vunpack.c.h.b16 %v413
        %v499 = vunpack.c.l.b16 %v414
        %v500 = vunpack.c.h.b16 %v414
        %v501 = vunpack.c.l.b16 %v415
        %v502 = vunpack.c.h.b16 %v415
        %v503 = vunpack.c.l.b16 %v416
        %v504 = vunpack.c.h.b16 %v416
        %v505 = vunpack.c.l.b16 %v417
        %v506 = vunpack.c.h.b16 %v417
        %v507 = vunpack.c.l.b16 %v418
        %v508 = vunpack.c.h.b16 %v418
        %v509 = vunpack.c.l.b16 %v419
        %v510 = vunpack.c.h.b16 %v419
        %v511 = vunpack.c.l.b16 %v420
        %v512 = vunpack.c.h.b16 %v420
        %v513 = vunpack.c.l.b16 %v421
        %v514 = vunpack.c.h.b16 %v421
        %v515 = vunpack.c.l.b16 %v422
        %v516 = vunpack.c.h.b16 %v422
        %v517 = vunpack.c.l.b16 %v423
        %v518 = vunpack.c.h.b16 %v423
        %v519 = vunpack.c.l.b16 %v424
        %v520 = vunpack.c.h.b16 %v424
        %v521 = vunpack.c.l.b16 %v425
        %v522 = vunpack.c.h.b16 %v425
        %v523 = vunpack.c.l.b16 %v426
        %v524 = vunpack.c.h.b16 %v426
        %v525 = vunpack.c.l.b16 %v427
        %v526 = vunpack.c.h.b16 %v427
        %v527 = vunpack.c.l.b16 %v428
        %v528 = vunpack.c.h.b16 %v428
        %v529 = vunpack.c.l.b16 %v429
        %v530 = vunpack.c.h.b16 %v429
        %v531 = vunpack.c.l.b16 %v430
        %v532 = vunpack.c.h.b16 %v430
        %v533 = vunpack.c.l.b16 %v431
        %v534 = vunpack.c.h.b16 %v431
        %v535 = vunpack.c.l.b16 %v432
        %v536 = vunpack.c.h.b16 %v432
        %v537 = vunpack.c.l.b16 %v433
        %v538 = vunpack.c.h.b16 %v433
        %v539 = vunpack.c.l.b16 %v434
        %v540 = vunpack.c.h.b16 %v434
        %v541 = vunpack.c.l.b16 %v435
        %v542 = vunpack.c.h.b16 %v435
        %v543 = vunpack.c.l.b16 %v436
        %v544 = vunpack.c.h.b16 %v436
        %v545 = vunpack.c.l.b16 %v437
        %v546 = vunpack.c.h.b16 %v437
        %v547 = vunpack.c.l.b16 %v438
        %v548 = vunpack.c.h.b16 %v438
        %v549 = vunpack.c.l.b16 %v439
        %v550 = vunpack.c.h.b16 %v439
        %v551 = vunpack.c.l.b16 %v440
        %v552 = vunpack.c.h.b16 %v440
        %v553 = vunpack.c.l.b16 %v441
        %v554 = vunpack.c.h.b16 %v441
        %v555 = vunpack.c.l.b16 %v442
        %v556 = vunpack.c.h.b16 %v442
        %v557 = vunpack.c.l.b16 %v443
        %v558 = vunpack.c.h.b16 %v443
        %v559 = vunpack.c.l.b16 %v444
        %v560 = vunpack.c.h.b16 %v444
        %v561 = vpack.c.b16 %v499, %v497
        %v562 = vpack.c.b16 %v500, %v498
        %v563 = vpack.c.b16 %v503, %v501
        %v564 = vpack.c.b16 %v504, %v502
        %v565 = vpack.c.b16 %v507, %v505
        %v566 = vpack.c.b16 %v508, %v506
        %v567 = vpack.c.b16 %v511, %v509
        %v568 = vpack.c.b16 %v512, %v510
        %v569 = vpack.c.b16 %v515, %v513
        %v570 = vpack.c.b16 %v516, %v514
        %v571 = vpack.c.b16 %v519, %v517
        %v572 = vpack.c.b16 %v520, %v518
        %v573 = vpack.c.b16 %v523, %v521
        %v574 = vpack.c.b16 %v524, %v522
        %v575 = vpack.c.b16 %v527, %v525
        %v576 = vpack.c.b16 %v528, %v526
        %v577 = vpack.c.b16 %v531, %v529
        %v578 = vpack.c.b16 %v532, %v530
        %v579 = vpack.c.b16 %v535, %v533
        %v580 = vpack.c.b16 %v536, %v534
        %v581 = vpack.c.b16 %v539, %v537
        %v582 = vpack.c.b16 %v540, %v538
        %v583 = vpack.c.b16 %v543, %v541
        %v584 = vpack.c.b16 %v544, %v542
        %v585 = vpack.c.b16 %v547, %v545
        %v586 = vpack.c.b16 %v548, %v546
        %v587 = vpack.c.b16 %v551, %v549
        %v588 = vpack.c.b16 %v552, %v550
        %v589 = vpack.c.b16 %v555, %v553
        %v590 = vpack.c.b16 %v556, %v554
        %v591 = vpack.c.b16 %v559, %v557
        %v592 = vpack.c.b16 %v560, %v558
        %625 = vmatpush.bf16.msra.mxu0 %v575
        %626 = vmatpush.bf16.msra.mxu0 %v573
        %627 = vmatpush.bf16.msra.mxu0 %v571
        %628 = vmatpush.bf16.msra.mxu0 %v569
        %629 = vmatpush.bf16.msra.mxu0 %v567
        %630 = vmatpush.bf16.msra.mxu0 %v565
        %631 = vmatpush.bf16.msra.mxu0 %v563
        %632 = vmatpush.bf16.msra.mxu0 %v561
        %633 = vmatmul.bf16.gmra.mxu0 %v457
        %v634 = vpop.f32.mrf.mxu0
        %v635 = vadd.f32 0.0, %v634
        %v636 = vpop.f32.mrf.mxu0
        %v637 = vadd.f32 0.0, %v636
        %638 = vmatmul.bf16.gmra.mxu0 %v459
        %v639 = vpop.f32.mrf.mxu0
        %v640 = vadd.f32 0.0, %v639
        %v641 = vpop.f32.mrf.mxu0
        %v642 = vadd.f32 0.0, %v641
        %643 = vdwg.mxu0
        %644 = vmatpush.bf16.msra.mxu0 %v591
        %645 = vmatpush.bf16.msra.mxu0 %v589
        %646 = vmatpush.bf16.msra.mxu0 %v587
        %647 = vmatpush.bf16.msra.mxu0 %v585
        %648 = vmatpush.bf16.msra.mxu0 %v583
        %649 = vmatpush.bf16.msra.mxu0 %v581
        %650 = vmatpush.bf16.msra.mxu0 %v579
        %651 = vmatpush.bf16.msra.mxu0 %v577
        %652 = vmatmul.bf16.gmra.mxu0 %v458
        %v653 = vpop.f32.mrf.mxu0
        %v654 = vadd.f32 %v635, %v653
        %v655 = vpop.f32.mrf.mxu0
        %v656 = vadd.f32 %v637, %v655
        %657 = vmatmul.bf16.gmra.mxu0 %v460
        %v658 = vpop.f32.mrf.mxu0
        %v659 = vadd.f32 %v640, %v658
        %v660 = vpop.f32.mrf.mxu0
        %v661 = vadd.f32 %v642, %v660
        %662 = vdwg.mxu0
        %663 = vmatpush.bf16.msra.mxu0 %v576
        %664 = vmatpush.bf16.msra.mxu0 %v574
        %665 = vmatpush.bf16.msra.mxu0 %v572
        %666 = vmatpush.bf16.msra.mxu0 %v570
        %667 = vmatpush.bf16.msra.mxu0 %v568
        %668 = vmatpush.bf16.msra.mxu0 %v566
        %669 = vmatpush.bf16.msra.mxu0 %v564
        %670 = vmatpush.bf16.msra.mxu0 %v562
        %671 = vmatmul.bf16.gmra.mxu0 %v457
        %v672 = vpop.f32.mrf.mxu0
        %v673 = vadd.f32 0.0, %v672
        %v674 = vpop.f32.mrf.mxu0
        %v675 = vadd.f32 0.0, %v674
        %676 = vmatmul.bf16.gmra.mxu0 %v459
        %v677 = vpop.f32.mrf.mxu0
        %v678 = vadd.f32 0.0, %v677
        %v679 = vpop.f32.mrf.mxu0
        %v680 = vadd.f32 0.0, %v679
        %681 = vdwg.mxu0
        %682 = vmatpush.bf16.msra.mxu0 %v592
        %683 = vmatpush.bf16.msra.mxu0 %v590
        %684 = vmatpush.bf16.msra.mxu0 %v588
        %685 = vmatpush.bf16.msra.mxu0 %v586
        %686 = vmatpush.bf16.msra.mxu0 %v584
        %687 = vmatpush.bf16.msra.mxu0 %v582
        %688 = vmatpush.bf16.msra.mxu0 %v580
        %689 = vmatpush.bf16.msra.mxu0 %v578
        %690 = vmatmul.bf16.gmra.mxu0 %v458
        %v691 = vpop.f32.mrf.mxu0
        %v692 = vadd.f32 %v673, %v691
        %v693 = vpop.f32.mrf.mxu0
        %v694 = vadd.f32 %v675, %v693
        %695 = vmatmul.bf16.gmra.mxu0 %v460
        %v696 = vpop.f32.mrf.mxu0
        %v697 = vadd.f32 %v678, %v696
        %v698 = vpop.f32.mrf.mxu0
        %v699 = vadd.f32 %v680, %v698
        %700 = vdwg.mxu0
        %v701 = vld [vmem:[%s252] sm:$0xff]
        %v702 = vld [vmem:[%s252 + $0x8] sm:$0xff]
        %v703 = vld [vmem:[%s252 + $0x10] sm:$0xff]
        %v704 = vld [vmem:[%s252 + $0x18] sm:$0xff]
        %v705 = vld [vmem:[%s252 + $0x20] sm:$0xff]
        %v706 = vld [vmem:[%s252 + $0x28] sm:$0xff]
        %v707 = vld [vmem:[%s252 + $0x30] sm:$0xff]
        %v708 = vld [vmem:[%s252 + $0x38] sm:$0xff]
        %v709 = vld [vmem:[%s252 + $0x40] sm:$0xff]
        %v710 = vld [vmem:[%s252 + $0x48] sm:$0xff]
        %v711 = vld [vmem:[%s252 + $0x50] sm:$0xff]
        %v712 = vld [vmem:[%s252 + $0x58] sm:$0xff]
        %v713 = vld [vmem:[%s252 + $0x60] sm:$0xff]
        %v714 = vld [vmem:[%s252 + $0x68] sm:$0xff]
        %v715 = vld [vmem:[%s252 + $0x70] sm:$0xff]
        %v716 = vld [vmem:[%s252 + $0x78] sm:$0xff]
        %v717 = vld [vmem:[%s252 + $0x80] sm:$0xff]
        %v718 = vld [vmem:[%s252 + $0x88] sm:$0xff]
        %v719 = vld [vmem:[%s252 + $0x90] sm:$0xff]
        %v720 = vld [vmem:[%s252 + $0x98] sm:$0xff]
        %v721 = vld [vmem:[%s252 + $0xa0] sm:$0xff]
        %v722 = vld [vmem:[%s252 + $0xa8] sm:$0xff]
        %v723 = vld [vmem:[%s252 + $0xb0] sm:$0xff]
        %v724 = vld [vmem:[%s252 + $0xb8] sm:$0xff]
        %v725 = vld [vmem:[%s252 + $0xc0] sm:$0xff]
        %v726 = vld [vmem:[%s252 + $0xc8] sm:$0xff]
        %v727 = vld [vmem:[%s252 + $0xd0] sm:$0xff]
        %v728 = vld [vmem:[%s252 + $0xd8] sm:$0xff]
        %v729 = vld [vmem:[%s252 + $0xe0] sm:$0xff]
        %v730 = vld [vmem:[%s252 + $0xe8] sm:$0xff]
        %v731 = vld [vmem:[%s252 + $0xf0] sm:$0xff]
        %v732 = vld [vmem:[%s252 + $0xf8] sm:$0xff]
        %v765 = vunpack.c.l.b16 %v701
        %v766 = vunpack.c.h.b16 %v701
        %v767 = vunpack.c.l.b16 %v702
        %v768 = vunpack.c.h.b16 %v702
        %v769 = vunpack.c.l.b16 %v703
        %v770 = vunpack.c.h.b16 %v703
        %v771 = vunpack.c.l.b16 %v704
        %v772 = vunpack.c.h.b16 %v704
        %v773 = vunpack.c.l.b16 %v705
        %v774 = vunpack.c.h.b16 %v705
        %v775 = vunpack.c.l.b16 %v706
        %v776 = vunpack.c.h.b16 %v706
        %v777 = vunpack.c.l.b16 %v707
        %v778 = vunpack.c.h.b16 %v707
        %v779 = vunpack.c.l.b16 %v708
        %v780 = vunpack.c.h.b16 %v708
        %v781 = vunpack.c.l.b16 %v709
        %v782 = vunpack.c.h.b16 %v709
        %v783 = vunpack.c.l.b16 %v710
        %v784 = vunpack.c.h.b16 %v710
        %v785 = vunpack.c.l.b16 %v711
        %v786 = vunpack.c.h.b16 %v711
        %v787 = vunpack.c.l.b16 %v712
        %v788 = vunpack.c.h.b16 %v712
        %v789 = vunpack.c.l.b16 %v713
        %v790 = vunpack.c.h.b16 %v713
        %v791 = vunpack.c.l.b16 %v714
        %v792 = vunpack.c.h.b16 %v714
        %v793 = vunpack.c.l.b16 %v715
        %v794 = vunpack.c.h.b16 %v715
        %v795 = vunpack.c.l.b16 %v716
        %v796 = vunpack.c.h.b16 %v716
        %v797 = vunpack.c.l.b16 %v717
        %v798 = vunpack.c.h.b16 %v717
        %v799 = vunpack.c.l.b16 %v718
        %v800 = vunpack.c.h.b16 %v718
        %v801 = vunpack.c.l.b16 %v719
        %v802 = vunpack.c.h.b16 %v719
        %v803 = vunpack.c.l.b16 %v720
        %v804 = vunpack.c.h.b16 %v720
        %v805 = vunpack.c.l.b16 %v721
        %v806 = vunpack.c.h.b16 %v721
        %v807 = vunpack.c.l.b16 %v722
        %v808 = vunpack.c.h.b16 %v722
        %v809 = vunpack.c.l.b16 %v723
        %v810 = vunpack.c.h.b16 %v723
        %v811 = vunpack.c.l.b16 %v724
        %v812 = vunpack.c.h.b16 %v724
        %v813 = vunpack.c.l.b16 %v725
        %v814 = vunpack.c.h.b16 %v725
        %v815 = vunpack.c.l.b16 %v726
        %v816 = vunpack.c.h.b16 %v726
        %v817 = vunpack.c.l.b16 %v727
        %v818 = vunpack.c.h.b16 %v727
        %v819 = vunpack.c.l.b16 %v728
        %v820 = vunpack.c.h.b16 %v728
        %v821 = vunpack.c.l.b16 %v729
        %v822 = vunpack.c.h.b16 %v729
        %v823 = vunpack.c.l.b16 %v730
        %v824 = vunpack.c.h.b16 %v730
        %v825 = vunpack.c.l.b16 %v731
        %v826 = vunpack.c.h.b16 %v731
        %v827 = vunpack.c.l.b16 %v732
        %v828 = vunpack.c.h.b16 %v732
        %v829 = vpack.c.b16 %v767, %v765
        %v830 = vpack.c.b16 %v768, %v766
        %v831 = vpack.c.b16 %v771, %v769
        %v832 = vpack.c.b16 %v772, %v770
        %v833 = vpack.c.b16 %v775, %v773
        %v834 = vpack.c.b16 %v776, %v774
        %v835 = vpack.c.b16 %v779, %v777
        %v836 = vpack.c.b16 %v780, %v778
        %v837 = vpack.c.b16 %v783, %v781
        %v838 = vpack.c.b16 %v784, %v782
        %v839 = vpack.c.b16 %v787, %v785
        %v840 = vpack.c.b16 %v788, %v786
        %v841 = vpack.c.b16 %v791, %v789
        %v842 = vpack.c.b16 %v792, %v790
        %v843 = vpack.c.b16 %v795, %v793
        %v844 = vpack.c.b16 %v796, %v794
        %v845 = vpack.c.b16 %v799, %v797
        %v846 = vpack.c.b16 %v800, %v798
        %v847 = vpack.c.b16 %v803, %v801
        %v848 = vpack.c.b16 %v804, %v802
        %v849 = vpack.c.b16 %v807, %v805
        %v850 = vpack.c.b16 %v808, %v806
        %v851 = vpack.c.b16 %v811, %v809
        %v852 = vpack.c.b16 %v812, %v810
        %v853 = vpack.c.b16 %v815, %v813
        %v854 = vpack.c.b16 %v816, %v814
        %v855 = vpack.c.b16 %v819, %v817
        %v856 = vpack.c.b16 %v820, %v818
        %v857 = vpack.c.b16 %v823, %v821
        %v858 = vpack.c.b16 %v824, %v822
        %v859 = vpack.c.b16 %v827, %v825
        %v860 = vpack.c.b16 %v828, %v826
        %893 = vmatpush.bf16.msra.mxu0 %v843
        %894 = vmatpush.bf16.msra.mxu0 %v841
        %895 = vmatpush.bf16.msra.mxu0 %v839
        %896 = vmatpush.bf16.msra.mxu0 %v837
        %897 = vmatpush.bf16.msra.mxu0 %v835
        %898 = vmatpush.bf16.msra.mxu0 %v833
        %899 = vmatpush.bf16.msra.mxu0 %v831
        %900 = vmatpush.bf16.msra.mxu0 %v829
        %901 = vmatmul.bf16.gmra.mxu0 %v457
        %v902 = vpop.f32.mrf.mxu0
        %v903 = vadd.f32 0.0, %v902
        %v904 = vpop.f32.mrf.mxu0
        %v905 = vadd.f32 0.0, %v904
        %906 = vmatmul.bf16.gmra.mxu0 %v459
        %v907 = vpop.f32.mrf.mxu0
        %v908 = vadd.f32 0.0, %v907
        %v909 = vpop.f32.mrf.mxu0
        %v910 = vadd.f32 0.0, %v909
        %911 = vdwg.mxu0
        %912 = vmatpush.bf16.msra.mxu0 %v859
        %913 = vmatpush.bf16.msra.mxu0 %v857
        %914 = vmatpush.bf16.msra.mxu0 %v855
        %915 = vmatpush.bf16.msra.mxu0 %v853
        %916 = vmatpush.bf16.msra.mxu0 %v851
        %917 = vmatpush.bf16.msra.mxu0 %v849
        %918 = vmatpush.bf16.msra.mxu0 %v847
        %919 = vmatpush.bf16.msra.mxu0 %v845
        %920 = vmatmul.bf16.gmra.mxu0 %v458
        %v921 = vpop.f32.mrf.mxu0
        %v922 = vadd.f32 %v903, %v921
        %v923 = vpop.f32.mrf.mxu0
        %v924 = vadd.f32 %v905, %v923
        %925 = vmatmul.bf16.gmra.mxu0 %v460
        %v926 = vpop.f32.mrf.mxu0
        %v927 = vadd.f32 %v908, %v926
        %v928 = vpop.f32.mrf.mxu0
        %v929 = vadd.f32 %v910, %v928
        %930 = vdwg.mxu0
        %931 = vmatpush.bf16.msra.mxu0 %v844
        %932 = vmatpush.bf16.msra.mxu0 %v842
        %933 = vmatpush.bf16.msra.mxu0 %v840
        %934 = vmatpush.bf16.msra.mxu0 %v838
        %935 = vmatpush.bf16.msra.mxu0 %v836
        %936 = vmatpush.bf16.msra.mxu0 %v834
        %937 = vmatpush.bf16.msra.mxu0 %v832
        %938 = vmatpush.bf16.msra.mxu0 %v830
        %939 = vmatmul.bf16.gmra.mxu0 %v457
        %v940 = vpop.f32.mrf.mxu0
        %v941 = vadd.f32 0.0, %v940
        %v942 = vpop.f32.mrf.mxu0
        %v943 = vadd.f32 0.0, %v942
        %944 = vmatmul.bf16.gmra.mxu0 %v459
        %v945 = vpop.f32.mrf.mxu0
        %v946 = vadd.f32 0.0, %v945
        %v947 = vpop.f32.mrf.mxu0
        %v948 = vadd.f32 0.0, %v947
        %949 = vdwg.mxu0
        %950 = vmatpush.bf16.msra.mxu0 %v860
        %951 = vmatpush.bf16.msra.mxu0 %v858
        %952 = vmatpush.bf16.msra.mxu0 %v856
        %953 = vmatpush.bf16.msra.mxu0 %v854
        %954 = vmatpush.bf16.msra.mxu0 %v852
        %955 = vmatpush.bf16.msra.mxu0 %v850
        %956 = vmatpush.bf16.msra.mxu0 %v848
        %957 = vmatpush.bf16.msra.mxu0 %v846
        %958 = vmatmul.bf16.gmra.mxu0 %v458
        %v959 = vpop.f32.mrf.mxu0
        %v960 = vadd.f32 %v941, %v959
        %v961 = vpop.f32.mrf.mxu0
        %v962 = vadd.f32 %v943, %v961
        %963 = vmatmul.bf16.gmra.mxu0 %v460
        %v964 = vpop.f32.mrf.mxu0
        %v965 = vadd.f32 %v946, %v964
        %v966 = vpop.f32.mrf.mxu0
        %v967 = vadd.f32 %v948, %v966
        %968 = vdwg.mxu0
        %v969 = vsub.f32 0.0, %v654
        %v970 = vsub.f32 0.0, %v692
        %v971 = vsub.f32 0.0, %v656
        %v972 = vsub.f32 0.0, %v694
        %v973 = vsub.f32 0.0, %v659
        %v974 = vsub.f32 0.0, %v697
        %v975 = vsub.f32 0.0, %v661
        %v976 = vsub.f32 0.0, %v699
        %v977 = vmul.f32 %v969, 1.442695
        %v978 = vpow.pop %v977
        %v979 = vmul.f32 %v970, 1.442695
        %v980 = vpow.pop %v979
        %v981 = vmul.f32 %v971, 1.442695
        %v982 = vpow.pop %v981
        %v983 = vmul.f32 %v972, 1.442695
        %v984 = vpow.pop %v983
        %v985 = vmul.f32 %v973, 1.442695
        %v986 = vpow.pop %v985
        %v987 = vmul.f32 %v974, 1.442695
        %v988 = vpow.pop %v987
        %v989 = vmul.f32 %v975, 1.442695
        %v990 = vpow.pop %v989
        %v991 = vmul.f32 %v976, 1.442695
        %v992 = vpow.pop %v991
        %v993 = vadd.f32 %v978, 1.0
        %v994 = vadd.f32 %v980, 1.0
        %v995 = vadd.f32 %v982, 1.0
        %v996 = vadd.f32 %v984, 1.0
        %v997 = vadd.f32 %v986, 1.0
        %v998 = vadd.f32 %v988, 1.0
        %v999 = vadd.f32 %v990, 1.0
        %v1000 = vadd.f32 %v992, 1.0
        %v1001 = vrcp.pop %v993
        %v1002 = vrcp.pop %v994
        %v1003 = vrcp.pop %v995
        %v1004 = vrcp.pop %v996
        %v1005 = vrcp.pop %v997
        %v1006 = vrcp.pop %v998
        %v1007 = vrcp.pop %v999
        %v1008 = vrcp.pop %v1000
        %v1009 = vmul.f32 %v654, %v1001
        %v1010 = vmul.f32 %v692, %v1002
        %v1011 = vmul.f32 %v656, %v1003
        %v1012 = vmul.f32 %v694, %v1004
        %v1013 = vmul.f32 %v659, %v1005
        %v1014 = vmul.f32 %v697, %v1006
        %v1015 = vmul.f32 %v661, %v1007
        %v1016 = vmul.f32 %v699, %v1008
        %v1017 = vmul.f32 %v1009, %v922
        %v1018 = vmul.f32 %v1010, %v960
        %v1019 = vmul.f32 %v1011, %v924
        %v1020 = vmul.f32 %v1012, %v962
        %v1021 = vmul.f32 %v1013, %v927
        %v1022 = vmul.f32 %v1014, %v965
        %v1023 = vmul.f32 %v1015, %v929
        %v1024 = vmul.f32 %v1016, %v967
        %v1025 = vpack.c.bf16 %v1018, %v1017
        %v1026 = vpack.c.bf16 %v1020, %v1019
        %v1027 = vpack.c.bf16 %v1022, %v1021
        %v1028 = vpack.c.bf16 %v1024, %v1023
        %1029 = vst [vmem:[%s287] sm:$0xff] %v1025
        %1030 = vst [vmem:[%s287 + $0x8] sm:$0xff] %v1026
        %1031 = vst [vmem:[%s287 + $0x10] sm:$0xff] %v1027
        %1032 = vst [vmem:[%s287 + $0x18] sm:$0xff] %v1028
        %s1033 = sand.u32 %s142, 1
        %s1034 = sand.u32 %s142, 1
        %s1035 = smul.addr %s1034, 32
        %s1036 = scalar_lea.vmem [#allocation7], %s1035
        // Predicated region
        $region49: #{transformer_block.8} parent=35 // pred_check
          %p1037 = pneg %p152
        $region50: #{transformer_block.8} parent=35 // pred_check_branch
          %1039 = sbr.rel (%p1037) target = $region52
        $region51: #{transformer_block.8} parent=35 // pred_region
          %s1040 = smul.u32 4, %s25
          %s1041 = smul.u32 2, %s26
          %s1042 = smul.addr %s1040, 4
          %s1043 = sadd.s32 %s1041, %s1042
          %s1044 = smul.addr %s1043, 4
          %s1045 = scalar_lea.vmem %s4, %s1044
          // Predicated region
          $region53: #{transformer_block.8} parent=51 // pred_check
            _
          $region54: #{transformer_block.8} parent=51 // pred_check_branch
            %1047 = sbr.rel (0) target = $region56
          $region55: #{transformer_block.8} parent=51 // pred_region
            // Predicated region
            $region57: #{transformer_block.8} parent=55 // pred_check
              _
            $region58: #{transformer_block.8} parent=55 // pred_check_branch
              %1049 = sbr.rel (0) target = $region60
            $region59: #{transformer_block.8} parent=55 // pred_region
              // Predicated region
              $region72: #{transformer_block.8} parent=59 // pred_check
                _
              $region73: #{transformer_block.8} parent=59 // pred_check_branch
                %1071 = sbr.rel (0) target = $region75
              $region74: #{transformer_block.8} parent=59 // pred_region
                loop: start=0, step=1, limit=1
                $region76: #{transformer_block.8} parent=74 // loop_pre_header
                  _
                $region77: #{transformer_block.8} parent=74 // loop_header
                  %s1073 = sphi 0, %s1077
                  %p1074 = scmp.ge.s32.totalorder %s1073, 1
                  %s1078 = sphi %s1036, %s1036
                  %s1079 = sphi %s1045, %s1045
                $region78: #{transformer_block.8} parent=74 // loop_header_branch
                  %1076 = sbr.rel (%p1074) target = $region82
                $region79: #{transformer_block.8} parent=74 // loop_body
                  %v1080 = vld [vmem:[%s1078] sm:$0xff]
                  %1081 = vst [vmem:[%s1079] sm:$0xff] %v1080
                  %v1082 = vld [vmem:[%s1078 + $0x8] sm:$0xff]
                  %1083 = vst [vmem:[%s1079 + $0x10] sm:$0xff] %v1082
                  %v1084 = vld [vmem:[%s1078 + $0x10] sm:$0xff]
                  %1085 = vst [vmem:[%s1079 + $0x20] sm:$0xff] %v1084
                  %v1086 = vld [vmem:[%s1078 + $0x18] sm:$0xff]
                  %1087 = vst [vmem:[%s1079 + $0x30] sm:$0xff] %v1086
                $region80: #{transformer_block.8} parent=74 // loop_footer
                  %s1077 = sadd.s32 1, %s1073
                $region81: #{transformer_block.8} parent=74 // loop_footer_branch
                  %1072 = sbr.rel target = $region77
                $region82: #{transformer_block.8} parent=74 // loop_exit
                  _
              $region75: #{transformer_block.8} parent=59 // pred_fallthru
                _
              // Predicated region
              $region83: #{transformer_block.8} parent=59 // pred_check
                _
              $region84: #{transformer_block.8} parent=59 // pred_check_branch
                %1089 = sbr.rel target = $region86
              $region85: #{transformer_block.8} parent=59 // pred_region
                _
              $region86: #{transformer_block.8} parent=59 // pred_fallthru
                _
            $region60: #{transformer_block.8} parent=55 // pred_fallthru
              _
            // Predicated region
            $region61: #{transformer_block.8} parent=55 // pred_check
              _
            $region62: #{transformer_block.8} parent=55 // pred_check_branch
              %1051 = sbr.rel target = $region64
            $region63: #{transformer_block.8} parent=55 // pred_region
              %s1053 = ssub.s32 256, 1
              loop: start=0, step=1, limit=1
              $region65: #{transformer_block.8} parent=63 // loop_pre_header
                _
              $region66: #{transformer_block.8} parent=63 // loop_header
                %s1055 = sphi 0, %s1059
                %p1056 = scmp.ge.s32.totalorder %s1055, 1
                %s1060 = sphi %s1036, %s1036
                %s1061 = sphi %s1045, %s1045
              $region67: #{transformer_block.8} parent=63 // loop_header_branch
                %1058 = sbr.rel (%p1056) target = $region71
              $region68: #{transformer_block.8} parent=63 // loop_body
                %v1062 = vld [vmem:[%s1060] sm:%s1053]
                %1063 = vst [vmem:[%s1061] sm:%s1053] %v1062
                %v1064 = vld [vmem:[%s1060 + $0x8] sm:%s1053]
                %1065 = vst [vmem:[%s1061 + $0x10] sm:%s1053] %v1064
                %v1066 = vld [vmem:[%s1060 + $0x10] sm:%s1053]
                %1067 = vst [vmem:[%s1061 + $0x20] sm:%s1053] %v1066
                %v1068 = vld [vmem:[%s1060 + $0x18] sm:%s1053]
                %1069 = vst [vmem:[%s1061 + $0x30] sm:%s1053] %v1068
              $region69: #{transformer_block.8} parent=63 // loop_footer
                %s1059 = sadd.s32 1, %s1055
              $region70: #{transformer_block.8} parent=63 // loop_footer_branch
                %1054 = sbr.rel target = $region66
              $region71: #{transformer_block.8} parent=63 // loop_exit
                _
            $region64: #{transformer_block.8} parent=55 // pred_fallthru
              _
          $region56: #{transformer_block.8} parent=51 // pred_fallthru
            _
          %1090 = vnop
        $region52: #{transformer_block.8} parent=35 // pred_fallthru
          _
      $region36: #{transformer_block.8} parent=5 // pred_fallthru
        _
      %p1091 = scmp.le.s32.totalorder 2, %s16
      // Predicated region
      $region87: #{transformer_block.8} parent=5 // pred_check
        %p1092 = pneg %p1091
      $region88: #{transformer_block.8} parent=5 // pred_check_branch
        %1094 = sbr.rel (%p1092) target = $region90
      $region89: #{transformer_block.8} parent=5 // pred_region
        %s1095 = ssub.s32 %s16, 2
        // Predicated region
        $region91: #{transformer_block.8} parent=89 // pred_check
          %p1096 = pneg %p158
        $region92: #{transformer_block.8} parent=89 // pred_check_branch
          %1098 = sbr.rel (%p1096) target = $region94
        $region93: #{transformer_block.8} parent=89 // pred_region
          %s1099 = sand.u32 %s143, 1
          %s1100 = sand.u32 %s143, 1
          %s1101 = smul.addr %s1100, 32
          %s1102 = scalar_lea.vmem [#allocation7], %s1101
        $region94: #{transformer_block.8} parent=89 // pred_fallthru
          _
      $region90: #{transformer_block.8} parent=5 // pred_fallthru
        _
    $region6: #{transformer_block.8} parent=1 // loop_footer
      %s20 = sadd.s32 1, %s16
    $region7: #{transformer_block.8} parent=1 // loop_footer_branch
      %15 = sbr.rel target = $region3
    $region8: #{transformer_block.8} parent=1 // loop_exit
      _
    %1103 = vsyncpa [#allocation4], 1
    %s1104 = scalar_lea.sflag [#allocation4], 1
    %1105 = vsyncpa %s1104, 1
    %1106 = vsyncpa [#allocation6], 1
    %s1107 = scalar_lea.sflag [#allocation6], 1
    %1108 = vsyncpa %s1107, 1

// kernel: transformer_block.9
$region0: #{transformer_block.9}
  #allocation0 [shape = 'u32[]', space=smem, size = 0x4, offset = 0x4, fixed_abs, tag = 'smem constant byte address 0x4 - core index']
  #allocation1 [shape = 'u32[72,128]{1,0:T(1,128)}', space=vmem, size = 0x9000, scoped, tag = 'internal scratch']
  %s0 = inlined_call_operand.vmem [shape: bf16[32,512], index: 0, kind: input, shape index: {}]
  %s1 = inlined_call_operand.hbm [shape: bf16[512,256], index: 1, kind: input, shape index: {}]
  %s2 = inlined_call_operand.vmem [shape: f32[32,256], index: 2, kind: input, shape index: {}, may-alias: {2,3}]
  %s3 = inlined_call_operand.vmem [shape: f32[32,256], index: 3, kind: output, shape index: {}, may-alias: {2,3}]
  %s4 = sld [smem:[#allocation0]]
  $region26: #{transformer_block.9} parent=0
    _
  %s6 = ssub.s32 1, %s4
  %s7 = scalar_select 0, %s6, %s4
  $region1: #{transformer_block.9} parent=0
    #allocation2 [shape = 'u8[262144]{0}', space=vmem, size = 0x40000, scoped, tag = 'input window, operand 1, single buffered']
    #allocation3 [shape = 's32[1]{0}', space=sflag, size = 0x4, scoped, tag = 'scoped memory for transformer_block.9']
    %8 = vsyncpa [#allocation3], 0
    // Predicated region
    $region2: #{transformer_block.9} parent=1 // pred_check
      _
    $region3: #{transformer_block.9} parent=1 // pred_check_branch
      %10 = sbr.rel (0) target = $region5
    $region4: #{transformer_block.9} parent=1 // pred_region
      _
    $region5: #{transformer_block.9} parent=1 // pred_fallthru
      _
    // Predicated region
    $region6: #{transformer_block.9} parent=1 // pred_check
      _
    $region7: #{transformer_block.9} parent=1 // pred_check_branch
      %12 = sbr.rel (0) target = $region9
    $region8: #{transformer_block.9} parent=1 // pred_region
      %14 = vsyncadd [#allocation3], 0
      %s15 = sshll.u32 %s1, 4
      %s16 = int_to_ptr.hbm [resolvable:$true] %s15
      %s17 = sshll.u32 [#allocation2], 4
      %s18 = int_to_ptr.vmem [resolvable:$true] %s17
      %23 = dma.hbm_to_vmem [thread:$0]  %s16, 8192, %s18, [#allocation3], 128, 128, 8
    $region9: #{transformer_block.9} parent=1 // pred_fallthru
      _
    // Predicated region
    $region10: #{transformer_block.9} parent=1 // pred_check
      _
    $region11: #{transformer_block.9} parent=1 // pred_check_branch
      %25 = sbr.rel (0) target = $region13
    $region12: #{transformer_block.9} parent=1 // pred_region
      _
    $region13: #{transformer_block.9} parent=1 // pred_fallthru
      _
    // Predicated region
    $region14: #{transformer_block.9} parent=1 // pred_check
      _
    $region15: #{transformer_block.9} parent=1 // pred_check_branch
      %27 = sbr.rel (0) target = $region17
    $region16: #{transformer_block.9} parent=1 // pred_region
      %29 = dma.done [#allocation3], 8192
    $region17: #{transformer_block.9} parent=1 // pred_fallthru
      _
    %v30 = vld [vmem:[%s0] sm:$0xff]
    %v31 = vld [vmem:[%s0 + $0x8] sm:$0xff]
    %v32 = vld [vmem:[%s0 + $0x10] sm:$0xff]
    %v33 = vld [vmem:[%s0 + $0x18] sm:$0xff]
    %v34 = vld [vmem:[%s0 + $0x20] sm:$0xff]
    %v35 = vld [vmem:[%s0 + $0x28] sm:$0xff]
    %v36 = vld [vmem:[%s0 + $0x30] sm:$0xff]
    %v37 = vld [vmem:[%s0 + $0x38] sm:$0xff]
    %v38 = vld [vmem:[#allocation2] sm:$0xff]
    %v39 = vld [vmem:[#allocation2 + $0x8] sm:$0xff]
    %v40 = vld [vmem:[#allocation2 + $0x10] sm:$0xff]
    %v41 = vld [vmem:[#allocation2 + $0x18] sm:$0xff]
    %v42 = vld [vmem:[#allocation2 + $0x20] sm:$0xff]
    %v43 = vld [vmem:[#allocation2 + $0x28] sm:$0xff]
    %v44 = vld [vmem:[#allocation2 + $0x30] sm:$0xff]
    %v45 = vld [vmem:[#allocation2 + $0x38] sm:$0xff]
    %v46 = vld [vmem:[#allocation2 + $0x40] sm:$0xff]
    %v47 = vld [vmem:[#allocation2 + $0x48] sm:$0xff]
    %v48 = vld [vmem:[#allocation2 + $0x50] sm:$0xff]
    %v49 = vld [vmem:[#allocation2 + $0x58] sm:$0xff]
    %v50 = vld [vmem:[#allocation2 + $0x60] sm:$0xff]
    %v51 = vld [vmem:[#allocation2 + $0x68] sm:$0xff]
    %v52 = vld [vmem:[#allocation2 + $0x70] sm:$0xff]
    %v53 = vld [vmem:[#allocation2 + $0x78] sm:$0xff]
    %v54 = vld [vmem:[#allocation2 + $0x80] sm:$0xff]
    %v55 = vld [vmem:[#allocation2 + $0x88] sm:$0xff]
    %v56 = vld [vmem:[#allocation2 + $0x90] sm:$0xff]
    %v57 = vld [vmem:[#allocation2 + $0x98] sm:$0xff]
    %v58 = vld [vmem:[#allocation2 + $0xa0] sm:$0xff]
    %v59 = vld [vmem:[#allocation2 + $0xa8] sm:$0xff]
    %v60 = vld [vmem:[#allocation2 + $0xb0] sm:$0xff]
    %v61 = vld [vmem:[#allocation2 + $0xb8] sm:$0xff]
    %v62 = vld [vmem:[#allocation2 + $0xc0] sm:$0xff]
    %v63 = vld [vmem:[#allocation2 + $0xc8] sm:$0xff]
    %v64 = vld [vmem:[#allocation2 + $0xd0] sm:$0xff]
    %v65 = vld [vmem:[#allocation2 + $0xd8] sm:$0xff]
    %v66 = vld [vmem:[#allocation2 + $0xe0] sm:$0xff]
    %v67 = vld [vmem:[#allocation2 + $0xe8] sm:$0xff]
    %v68 = vld [vmem:[#allocation2 + $0xf0] sm:$0xff]
    %v69 = vld [vmem:[#allocation2 + $0xf8] sm:$0xff]
    %v70 = vld [vmem:[#allocation2 + $0x100] sm:$0xff]
    %v71 = vld [vmem:[#allocation2 + $0x108] sm:$0xff]
    %v72 = vld [vmem:[#allocation2 + $0x110] sm:$0xff]
    %v73 = vld [vmem:[#allocation2 + $0x118] sm:$0xff]
    %v74 = vld [vmem:[#allocation2 + $0x120] sm:$0xff]
    %v75 = vld [vmem:[#allocation2 + $0x128] sm:$0xff]
    %v76 = vld [vmem:[#allocation2 + $0x130] sm:$0xff]
    %v77 = vld [vmem:[#allocation2 + $0x138] sm:$0xff]
    %v78 = vld [vmem:[#allocation2 + $0x140] sm:$0xff]
    %v79 = vld [vmem:[#allocation2 + $0x148] sm:$0xff]
    %v80 = vld [vmem:[#allocation2 + $0x150] sm:$0xff]
    %v81 = vld [vmem:[#allocation2 + $0x158] sm:$0xff]
    %v82 = vld [vmem:[#allocation2 + $0x160] sm:$0xff]
    %v83 = vld [vmem:[#allocation2 + $0x168] sm:$0xff]
    %v84 = vld [vmem:[#allocation2 + $0x170] sm:$0xff]
    %v85 = vld [vmem:[#allocation2 + $0x178] sm:$0xff]
    %v86 = vld [vmem:[#allocation2 + $0x180] sm:$0xff]
    %v87 = vld [vmem:[#allocation2 + $0x188] sm:$0xff]
    %v88 = vld [vmem:[#allocation2 + $0x190] sm:$0xff]
    %v89 = vld [vmem:[#allocation2 + $0x198] sm:$0xff]
    %v90 = vld [vmem:[#allocation2 + $0x1a0] sm:$0xff]
    %v91 = vld [vmem:[#allocation2 + $0x1a8] sm:$0xff]
    %v92 = vld [vmem:[#allocation2 + $0x1b0] sm:$0xff]
    %v93 = vld [vmem:[#allocation2 + $0x1b8] sm:$0xff]
    %v94 = vld [vmem:[#allocation2 + $0x1c0] sm:$0xff]
    %v95 = vld [vmem:[#allocation2 + $0x1c8] sm:$0xff]
    %v96 = vld [vmem:[#allocation2 + $0x1d0] sm:$0xff]
    %v97 = vld [vmem:[#allocation2 + $0x1d8] sm:$0xff]
    %v98 = vld [vmem:[#allocation2 + $0x1e0] sm:$0xff]
    %v99 = vld [vmem:[#allocation2 + $0x1e8] sm:$0xff]
    %v100 = vld [vmem:[#allocation2 + $0x1f0] sm:$0xff]
    %v101 = vld [vmem:[#allocation2 + $0x1f8] sm:$0xff]
    %v102 = vld [vmem:[%s2] sm:$0xff]
    %v103 = vld [vmem:[%s2 + $0x8] sm:$0xff]
    %v104 = vld [vmem:[%s2 + $0x10] sm:$0xff]
    %v105 = vld [vmem:[%s2 + $0x18] sm:$0xff]
    %v106 = vld [vmem:[%s2 + $0x20] sm:$0xff]
    %v107 = vld [vmem:[%s2 + $0x28] sm:$0xff]
    %v108 = vld [vmem:[%s2 + $0x30] sm:$0xff]
    %v109 = vld [vmem:[%s2 + $0x38] sm:$0xff]
    %v118 = vunpack.c.l.b16 %v30
    %v119 = vunpack.c.h.b16 %v30
    %v120 = vunpack.c.l.b16 %v31
    %v121 = vunpack.c.h.b16 %v31
    %v122 = vunpack.c.l.b16 %v32
    %v123 = vunpack.c.h.b16 %v32
    %v124 = vunpack.c.l.b16 %v33
    %v125 = vunpack.c.h.b16 %v33
    %v126 = vunpack.c.l.b16 %v34
    %v127 = vunpack.c.h.b16 %v34
    %v128 = vunpack.c.l.b16 %v35
    %v129 = vunpack.c.h.b16 %v35
    %v130 = vunpack.c.l.b16 %v36
    %v131 = vunpack.c.h.b16 %v36
    %v132 = vunpack.c.l.b16 %v37
    %v133 = vunpack.c.h.b16 %v37
    %v134 = vpack.c.b16 %v122, %v118
    %v135 = vpack.c.b16 %v123, %v119
    %v136 = vpack.c.b16 %v124, %v120
    %v137 = vpack.c.b16 %v125, %v121
    %v138 = vpack.c.b16 %v130, %v126
    %v139 = vpack.c.b16 %v131, %v127
    %v140 = vpack.c.b16 %v132, %v128
    %v141 = vpack.c.b16 %v133, %v129
    %v214 = vunpack.c.l.b16 %v38
    %v215 = vunpack.c.h.b16 %v38
    %v216 = vunpack.c.l.b16 %v39
    %v217 = vunpack.c.h.b16 %v39
    %v218 = vunpack.c.l.b16 %v40
    %v219 = vunpack.c.h.b16 %v40
    %v220 = vunpack.c.l.b16 %v41
    %v221 = vunpack.c.h.b16 %v41
    %v222 = vunpack.c.l.b16 %v42
    %v223 = vunpack.c.h.b16 %v42
    %v224 = vunpack.c.l.b16 %v43
    %v225 = vunpack.c.h.b16 %v43
    %v226 = vunpack.c.l.b16 %v44
    %v227 = vunpack.c.h.b16 %v44
    %v228 = vunpack.c.l.b16 %v45
    %v229 = vunpack.c.h.b16 %v45
    %v230 = vunpack.c.l.b16 %v46
    %v231 = vunpack.c.h.b16 %v46
    %v232 = vunpack.c.l.b16 %v47
    %v233 = vunpack.c.h.b16 %v47
    %v234 = vunpack.c.l.b16 %v48
    %v235 = vunpack.c.h.b16 %v48
    %v236 = vunpack.c.l.b16 %v49
    %v237 = vunpack.c.h.b16 %v49
    %v238 = vunpack.c.l.b16 %v50
    %v239 = vunpack.c.h.b16 %v50
    %v240 = vunpack.c.l.b16 %v51
    %v241 = vunpack.c.h.b16 %v51
    %v242 = vunpack.c.l.b16 %v52
    %v243 = vunpack.c.h.b16 %v52
    %v244 = vunpack.c.l.b16 %v53
    %v245 = vunpack.c.h.b16 %v53
    %v246 = vunpack.c.l.b16 %v54
    %v247 = vunpack.c.h.b16 %v54
    %v248 = vunpack.c.l.b16 %v55
    %v249 = vunpack.c.h.b16 %v55
    %v250 = vunpack.c.l.b16 %v56
    %v251 = vunpack.c.h.b16 %v56
    %v252 = vunpack.c.l.b16 %v57
    %v253 = vunpack.c.h.b16 %v57
    %v254 = vunpack.c.l.b16 %v58
    %v255 = vunpack.c.h.b16 %v58
    %v256 = vunpack.c.l.b16 %v59
    %v257 = vunpack.c.h.b16 %v59
    %v258 = vunpack.c.l.b16 %v60
    %v259 = vunpack.c.h.b16 %v60
    %v260 = vunpack.c.l.b16 %v61
    %v261 = vunpack.c.h.b16 %v61
    %v262 = vunpack.c.l.b16 %v62
    %v263 = vunpack.c.h.b16 %v62
    %v264 = vunpack.c.l.b16 %v63
    %v265 = vunpack.c.h.b16 %v63
    %v266 = vunpack.c.l.b16 %v64
    %v267 = vunpack.c.h.b16 %v64
    %v268 = vunpack.c.l.b16 %v65
    %v269 = vunpack.c.h.b16 %v65
    %v270 = vunpack.c.l.b16 %v66
    %v271 = vunpack.c.h.b16 %v66
    %v272 = vunpack.c.l.b16 %v67
    %v273 = vunpack.c.h.b16 %v67
    %v274 = vunpack.c.l.b16 %v68
    %v275 = vunpack.c.h.b16 %v68
    %v276 = vunpack.c.l.b16 %v69
    %v277 = vunpack.c.h.b16 %v69
    %v278 = vunpack.c.l.b16 %v70
    %v279 = vunpack.c.h.b16 %v70
    %v280 = vunpack.c.l.b16 %v71
    %v281 = vunpack.c.h.b16 %v71
    %v282 = vunpack.c.l.b16 %v72
    %v283 = vunpack.c.h.b16 %v72
    %v284 = vunpack.c.l.b16 %v73
    %v285 = vunpack.c.h.b16 %v73
    %v286 = vunpack.c.l.b16 %v74
    %v287 = vunpack.c.h.b16 %v74
    %v288 = vunpack.c.l.b16 %v75
    %v289 = vunpack.c.h.b16 %v75
    %v290 = vunpack.c.l.b16 %v76
    %v291 = vunpack.c.h.b16 %v76
    %v292 = vunpack.c.l.b16 %v77
    %v293 = vunpack.c.h.b16 %v77
    %v294 = vunpack.c.l.b16 %v78
    %v295 = vunpack.c.h.b16 %v78
    %v296 = vunpack.c.l.b16 %v79
    %v297 = vunpack.c.h.b16 %v79
    %v298 = vunpack.c.l.b16 %v80
    %v299 = vunpack.c.h.b16 %v80
    %v300 = vunpack.c.l.b16 %v81
    %v301 = vunpack.c.h.b16 %v81
    %v302 = vunpack.c.l.b16 %v82
    %v303 = vunpack.c.h.b16 %v82
    %v304 = vunpack.c.l.b16 %v83
    %v305 = vunpack.c.h.b16 %v83
    %v306 = vunpack.c.l.b16 %v84
    %v307 = vunpack.c.h.b16 %v84
    %v308 = vunpack.c.l.b16 %v85
    %v309 = vunpack.c.h.b16 %v85
    %v310 = vunpack.c.l.b16 %v86
    %v311 = vunpack.c.h.b16 %v86
    %v312 = vunpack.c.l.b16 %v87
    %v313 = vunpack.c.h.b16 %v87
    %v314 = vunpack.c.l.b16 %v88
    %v315 = vunpack.c.h.b16 %v88
    %v316 = vunpack.c.l.b16 %v89
    %v317 = vunpack.c.h.b16 %v89
    %v318 = vunpack.c.l.b16 %v90
    %v319 = vunpack.c.h.b16 %v90
    %v320 = vunpack.c.l.b16 %v91
    %v321 = vunpack.c.h.b16 %v91
    %v322 = vunpack.c.l.b16 %v92
    %v323 = vunpack.c.h.b16 %v92
    %v324 = vunpack.c.l.b16 %v93
    %v325 = vunpack.c.h.b16 %v93
    %v326 = vunpack.c.l.b16 %v94
    %v327 = vunpack.c.h.b16 %v94
    %v328 = vunpack.c.l.b16 %v95
    %v329 = vunpack.c.h.b16 %v95
    %v330 = vunpack.c.l.b16 %v96
    %v331 = vunpack.c.h.b16 %v96
    %v332 = vunpack.c.l.b16 %v97
    %v333 = vunpack.c.h.b16 %v97
    %v334 = vunpack.c.l.b16 %v98
    %v335 = vunpack.c.h.b16 %v98
    %v336 = vunpack.c.l.b16 %v99
    %v337 = vunpack.c.h.b16 %v99
    %v338 = vunpack.c.l.b16 %v100
    %v339 = vunpack.c.h.b16 %v100
    %v340 = vunpack.c.l.b16 %v101
    %v341 = vunpack.c.h.b16 %v101
    %v342 = vpack.c.b16 %v216, %v214
    %v343 = vpack.c.b16 %v217, %v215
    %v344 = vpack.c.b16 %v220, %v218
    %v345 = vpack.c.b16 %v221, %v219
    %v346 = vpack.c.b16 %v224, %v222
    %v347 = vpack.c.b16 %v225, %v223
    %v348 = vpack.c.b16 %v228, %v226
    %v349 = vpack.c.b16 %v229, %v227
    %v350 = vpack.c.b16 %v232, %v230
    %v351 = vpack.c.b16 %v233, %v231
    %v352 = vpack.c.b16 %v236, %v234
    %v353 = vpack.c.b16 %v237, %v235
    %v354 = vpack.c.b16 %v240, %v238
    %v355 = vpack.c.b16 %v241, %v239
    %v356 = vpack.c.b16 %v244, %v242
    %v357 = vpack.c.b16 %v245, %v243
    %v358 = vpack.c.b16 %v248, %v246
    %v359 = vpack.c.b16 %v249, %v247
    %v360 = vpack.c.b16 %v252, %v250
    %v361 = vpack.c.b16 %v253, %v251
    %v362 = vpack.c.b16 %v256, %v254
    %v363 = vpack.c.b16 %v257, %v255
    %v364 = vpack.c.b16 %v260, %v258
    %v365 = vpack.c.b16 %v261, %v259
    %v366 = vpack.c.b16 %v264, %v262
    %v367 = vpack.c.b16 %v265, %v263
    %v368 = vpack.c.b16 %v268, %v266
    %v369 = vpack.c.b16 %v269, %v267
    %v370 = vpack.c.b16 %v272, %v270
    %v371 = vpack.c.b16 %v273, %v271
    %v372 = vpack.c.b16 %v276, %v274
    %v373 = vpack.c.b16 %v277, %v275
    %v374 = vpack.c.b16 %v280, %v278
    %v375 = vpack.c.b16 %v281, %v279
    %v376 = vpack.c.b16 %v284, %v282
    %v377 = vpack.c.b16 %v285, %v283
    %v378 = vpack.c.b16 %v288, %v286
    %v379 = vpack.c.b16 %v289, %v287
    %v380 = vpack.c.b16 %v292, %v290
    %v381 = vpack.c.b16 %v293, %v291
    %v382 = vpack.c.b16 %v296, %v294
    %v383 = vpack.c.b16 %v297, %v295
    %v384 = vpack.c.b16 %v300, %v298
    %v385 = vpack.c.b16 %v301, %v299
    %v386 = vpack.c.b16 %v304, %v302
    %v387 = vpack.c.b16 %v305, %v303
    %v388 = vpack.c.b16 %v308, %v306
    %v389 = vpack.c.b16 %v309, %v307
    %v390 = vpack.c.b16 %v312, %v310
    %v391 = vpack.c.b16 %v313, %v311
    %v392 = vpack.c.b16 %v316, %v314
    %v393 = vpack.c.b16 %v317, %v315
    %v394 = vpack.c.b16 %v320, %v318
    %v395 = vpack.c.b16 %v321, %v319
    %v396 = vpack.c.b16 %v324, %v322
    %v397 = vpack.c.b16 %v325, %v323
    %v398 = vpack.c.b16 %v328, %v326
    %v399 = vpack.c.b16 %v329, %v327
    %v400 = vpack.c.b16 %v332, %v330
    %v401 = vpack.c.b16 %v333, %v331
    %v402 = vpack.c.b16 %v336, %v334
    %v403 = vpack.c.b16 %v337, %v335
    %v404 = vpack.c.b16 %v340, %v338
    %v405 = vpack.c.b16 %v341, %v339
    %470 = vmatpush.bf16.msra.mxu0 %v356
    %471 = vmatpush.bf16.msra.mxu0 %v354
    %472 = vmatpush.bf16.msra.mxu0 %v352
    %473 = vmatpush.bf16.msra.mxu0 %v350
    %474 = vmatpush.bf16.msra.mxu0 %v348
    %475 = vmatpush.bf16.msra.mxu0 %v346
    %476 = vmatpush.bf16.msra.mxu0 %v344
    %477 = vmatpush.bf16.msra.mxu0 %v342
    %478 = vmatmul.bf16.gmra.mxu0 %v134
    %v479 = vpop.f32.mrf.mxu0
    %v480 = vadd.f32 %v102, %v479
    %v481 = vpop.f32.mrf.mxu0
    %v482 = vadd.f32 %v104, %v481
    %483 = vmatmul.bf16.gmra.mxu0 %v138
    %v484 = vpop.f32.mrf.mxu0
    %v485 = vadd.f32 %v106, %v484
    %v486 = vpop.f32.mrf.mxu0
    %v487 = vadd.f32 %v108, %v486
    %488 = vdwg.mxu0
    %489 = vmatpush.bf16.msra.mxu0 %v372
    %490 = vmatpush.bf16.msra.mxu0 %v370
    %491 = vmatpush.bf16.msra.mxu0 %v368
    %492 = vmatpush.bf16.msra.mxu0 %v366
    %493 = vmatpush.bf16.msra.mxu0 %v364
    %494 = vmatpush.bf16.msra.mxu0 %v362
    %495 = vmatpush.bf16.msra.mxu0 %v360
    %496 = vmatpush.bf16.msra.mxu0 %v358
    %497 = vmatmul.bf16.gmra.mxu0 %v135
    %v498 = vpop.f32.mrf.mxu0
    %v499 = vadd.f32 %v480, %v498
    %v500 = vpop.f32.mrf.mxu0
    %v501 = vadd.f32 %v482, %v500
    %502 = vmatmul.bf16.gmra.mxu0 %v139
    %v503 = vpop.f32.mrf.mxu0
    %v504 = vadd.f32 %v485, %v503
    %v505 = vpop.f32.mrf.mxu0
    %v506 = vadd.f32 %v487, %v505
    %507 = vdwg.mxu0
    %508 = vmatpush.bf16.msra.mxu0 %v388
    %509 = vmatpush.bf16.msra.mxu0 %v386
    %510 = vmatpush.bf16.msra.mxu0 %v384
    %511 = vmatpush.bf16.msra.mxu0 %v382
    %512 = vmatpush.bf16.msra.mxu0 %v380
    %513 = vmatpush.bf16.msra.mxu0 %v378
    %514 = vmatpush.bf16.msra.mxu0 %v376
    %515 = vmatpush.bf16.msra.mxu0 %v374
    %516 = vmatmul.bf16.gmra.mxu0 %v136
    %v517 = vpop.f32.mrf.mxu0
    %v518 = vadd.f32 %v499, %v517
    %v519 = vpop.f32.mrf.mxu0
    %v520 = vadd.f32 %v501, %v519
    %521 = vmatmul.bf16.gmra.mxu0 %v140
    %v522 = vpop.f32.mrf.mxu0
    %v523 = vadd.f32 %v504, %v522
    %v524 = vpop.f32.mrf.mxu0
    %v525 = vadd.f32 %v506, %v524
    %526 = vdwg.mxu0
    %527 = vmatpush.bf16.msra.mxu0 %v404
    %528 = vmatpush.bf16.msra.mxu0 %v402
    %529 = vmatpush.bf16.msra.mxu0 %v400
    %530 = vmatpush.bf16.msra.mxu0 %v398
    %531 = vmatpush.bf16.msra.mxu0 %v396
    %532 = vmatpush.bf16.msra.mxu0 %v394
    %533 = vmatpush.bf16.msra.mxu0 %v392
    %534 = vmatpush.bf16.msra.mxu0 %v390
    %535 = vmatmul.bf16.gmra.mxu0 %v137
    %v536 = vpop.f32.mrf.mxu0
    %v537 = vadd.f32 %v518, %v536
    %v538 = vpop.f32.mrf.mxu0
    %v539 = vadd.f32 %v520, %v538
    %540 = vmatmul.bf16.gmra.mxu0 %v141
    %v541 = vpop.f32.mrf.mxu0
    %v542 = vadd.f32 %v523, %v541
    %v543 = vpop.f32.mrf.mxu0
    %v544 = vadd.f32 %v525, %v543
    %545 = vdwg.mxu0
    %546 = vmatpush.bf16.msra.mxu0 %v357
    %547 = vmatpush.bf16.msra.mxu0 %v355
    %548 = vmatpush.bf16.msra.mxu0 %v353
    %549 = vmatpush.bf16.msra.mxu0 %v351
    %550 = vmatpush.bf16.msra.mxu0 %v349
    %551 = vmatpush.bf16.msra.mxu0 %v347
    %552 = vmatpush.bf16.msra.mxu0 %v345
    %553 = vmatpush.bf16.msra.mxu0 %v343
    %554 = vmatmul.bf16.gmra.mxu0 %v134
    %v555 = vpop.f32.mrf.mxu0
    %v556 = vadd.f32 %v103, %v555
    %v557 = vpop.f32.mrf.mxu0
    %v558 = vadd.f32 %v105, %v557
    %559 = vmatmul.bf16.gmra.mxu0 %v138
    %v560 = vpop.f32.mrf.mxu0
    %v561 = vadd.f32 %v107, %v560
    %v562 = vpop.f32.mrf.mxu0
    %v563 = vadd.f32 %v109, %v562
    %564 = vdwg.mxu0
    %565 = vmatpush.bf16.msra.mxu0 %v373
    %566 = vmatpush.bf16.msra.mxu0 %v371
    %567 = vmatpush.bf16.msra.mxu0 %v369
    %568 = vmatpush.bf16.msra.mxu0 %v367
    %569 = vmatpush.bf16.msra.mxu0 %v365
    %570 = vmatpush.bf16.msra.mxu0 %v363
    %571 = vmatpush.bf16.msra.mxu0 %v361
    %572 = vmatpush.bf16.msra.mxu0 %v359
    %573 = vmatmul.bf16.gmra.mxu0 %v135
    %v574 = vpop.f32.mrf.mxu0
    %v575 = vadd.f32 %v556, %v574
    %v576 = vpop.f32.mrf.mxu0
    %v577 = vadd.f32 %v558, %v576
    %578 = vmatmul.bf16.gmra.mxu0 %v139
    %v579 = vpop.f32.mrf.mxu0
    %v580 = vadd.f32 %v561, %v579
    %v581 = vpop.f32.mrf.mxu0
    %v582 = vadd.f32 %v563, %v581
    %583 = vdwg.mxu0
    %584 = vmatpush.bf16.msra.mxu0 %v389
    %585 = vmatpush.bf16.msra.mxu0 %v387
    %586 = vmatpush.bf16.msra.mxu0 %v385
    %587 = vmatpush.bf16.msra.mxu0 %v383
    %588 = vmatpush.bf16.msra.mxu0 %v381
    %589 = vmatpush.bf16.msra.mxu0 %v379
    %590 = vmatpush.bf16.msra.mxu0 %v377
    %591 = vmatpush.bf16.msra.mxu0 %v375
    %592 = vmatmul.bf16.gmra.mxu0 %v136
    %v593 = vpop.f32.mrf.mxu0
    %v594 = vadd.f32 %v575, %v593
    %v595 = vpop.f32.mrf.mxu0
    %v596 = vadd.f32 %v577, %v595
    %597 = vmatmul.bf16.gmra.mxu0 %v140
    %v598 = vpop.f32.mrf.mxu0
    %v599 = vadd.f32 %v580, %v598
    %v600 = vpop.f32.mrf.mxu0
    %v601 = vadd.f32 %v582, %v600
    %602 = vdwg.mxu0
    %603 = vmatpush.bf16.msra.mxu0 %v405
    %604 = vmatpush.bf16.msra.mxu0 %v403
    %605 = vmatpush.bf16.msra.mxu0 %v401
    %606 = vmatpush.bf16.msra.mxu0 %v399
    %607 = vmatpush.bf16.msra.mxu0 %v397
    %608 = vmatpush.bf16.msra.mxu0 %v395
    %609 = vmatpush.bf16.msra.mxu0 %v393
    %610 = vmatpush.bf16.msra.mxu0 %v391
    %611 = vmatmul.bf16.gmra.mxu0 %v137
    %v612 = vpop.f32.mrf.mxu0
    %v613 = vadd.f32 %v594, %v612
    %v614 = vpop.f32.mrf.mxu0
    %v615 = vadd.f32 %v596, %v614
    %616 = vmatmul.bf16.gmra.mxu0 %v141
    %v617 = vpop.f32.mrf.mxu0
    %v618 = vadd.f32 %v599, %v617
    %v619 = vpop.f32.mrf.mxu0
    %v620 = vadd.f32 %v601, %v619
    %621 = vdwg.mxu0
    %622 = vst [vmem:[%s3] sm:$0xff] %v537
    %623 = vst [vmem:[%s3 + $0x8] sm:$0xff] %v613
    %624 = vst [vmem:[%s3 + $0x10] sm:$0xff] %v539
    %625 = vst [vmem:[%s3 + $0x18] sm:$0xff] %v615
    %626 = vst [vmem:[%s3 + $0x20] sm:$0xff] %v542
    %627 = vst [vmem:[%s3 + $0x28] sm:$0xff] %v618
    %628 = vst [vmem:[%s3 + $0x30] sm:$0xff] %v544
    %629 = vst [vmem:[%s3 + $0x38] sm:$0xff] %v620
    // Predicated region
    $region18: #{transformer_block.9} parent=1 // pred_check
      _
    $region19: #{transformer_block.9} parent=1 // pred_check_branch
      %631 = sbr.rel (0) target = $region21
    $region20: #{transformer_block.9} parent=1 // pred_region
      _
    $region21: #{transformer_block.9} parent=1 // pred_fallthru
      _
    // Predicated region
    $region22: #{transformer_block.9} parent=1 // pred_check
      _
    $region23: #{transformer_block.9} parent=1 // pred_check_branch
      %633 = sbr.rel (0) target = $region25
    $region24: #{transformer_block.9} parent=1 // pred_region
      _
    $region25: #{transformer_block.9} parent=1 // pred_fallthru
      _
    %634 = vsyncpa [#allocation3], 1

</llo_original>
